<compile_context>
chip_gen: v7x
topology: tpu7x:2x2x1
jax: 0.10.0
libtpu: 0.0.40
codegen_flags: <defaults>
</compile_context>

<pallas_src>
import functools

import jax
import jax.numpy as jnp
from jax import lax
from jax.experimental import pallas as pl
from jax.experimental.pallas import tpu as pltpu


# ---------------------------------------------------------------------------
# Fused kernel: FF1(+residual) -> BN+affine -> FF2 -> permuted output Linear
# ---------------------------------------------------------------------------
def _fused_output_block_kernel(
    x_ref,
    w11_ref, b11_ref, w12_ref, b12_ref,
    g_ref, be_ref, al_ref, ab_ref,
    w21_ref, b21_ref, w22_ref, b22_ref,
    wo_ref, bo_ref,
    o_ref,
    *, B, L, N, D, O, C, eps,
):
    x = x_ref[...]                                            # (M, D), M = B*L*N

    # ---- FeedForward1 + residual add (AddAndNorm1's "x + y") ----
    h = jnp.dot(x, w11_ref[...], preferred_element_type=jnp.float32) + b11_ref[...]
    h = jnp.maximum(h, 0.0)
    z = x + jnp.dot(h, w12_ref[...], preferred_element_type=jnp.float32) + b12_ref[...]

    # ---- BatchNorm1d over (B, L*N) per channel: training-mode batch stats,
    #      biased variance, then bn affine, then AddBatchNorm alpha/bias ----
    mean = jnp.mean(z, axis=0, keepdims=True)                 # (1, D)
    var = jnp.mean(jnp.square(z - mean), axis=0, keepdims=True)
    zn = (z - mean) * lax.rsqrt(var + eps)
    zn = zn * g_ref[...] + be_ref[...]                        # BatchNorm affine
    zn = al_ref[...] * zn + ab_ref[...]                       # AddBatchNorm affine

    # ---- FeedForward2 ----
    h2 = jnp.dot(zn, w21_ref[...], preferred_element_type=jnp.float32) + b21_ref[...]
    h2 = jnp.maximum(h2, 0.0)
    z2 = jnp.dot(h2, w22_ref[...], preferred_element_type=jnp.float32) + b22_ref[...]  # (M, D)

    # ---- Output Linear with the (B,L,N,D) -> (B,N,L*D) permute folded in.
    #      Row index of z2 is b*L*N + l*N + n, so for each l the rows
    #      belonging to (b, n) are aligned static slices.  Accumulate
    #      acc[b*N+n, :] = sum_l z2[b,l,n,:] @ W[l*D:(l+1)*D, :].
    acc = jnp.zeros((B * N, O * C), jnp.float32)
    for l in range(L):
        rows = jnp.concatenate(
            [z2[b * L * N + l * N: b * L * N + (l + 1) * N, :] for b in range(B)],
            axis=0,
        )                                                     # (B*N, D), row order (b, n)
        wl = wo_ref[l * D:(l + 1) * D, :]                     # (D, O*C)
        acc = acc + jnp.dot(rows, wl, preferred_element_type=jnp.float32)
    acc = acc + bo_ref[...]                                   # (B*N, O*C)

    # ---- Write the result directly in the final (B, O, N, C) layout:
    #      out[b, o, n, c] = acc[b*N + n, o*C + c]  (no follow-up XLA transpose)
    for b in range(B):
        for o in range(O):
            o_ref[b, o, :, :] = acc[b * N:(b + 1) * N,
                                    o * C:(o + 1) * C].astype(o_ref.dtype)


def output_block_forward(x, params, *, output_len, channel, eps=1e-5):
    """Full OutputBlock forward as one pallas_call. x: (B, L, N, D)."""
    B, L, N, D = x.shape
    O, C = output_len, channel
    M = B * L * N
    xf = x.reshape(M, D)          # contiguous -> metadata-only reshape

    def full(shape):
        n = len(shape)
        return pl.BlockSpec(shape, lambda i, _n=n: (0,) * _n)

    kernel = functools.partial(
        _fused_output_block_kernel, B=B, L=L, N=N, D=D, O=O, C=C, eps=eps)

    # TODO(synk): if B*L*N grows by orders of magnitude, tile M (two-pass BN
    # with a cross-step accumulator) instead of a single full-array block so
    # the working set stays inside v7x's 64 MiB VMEM.
    return pl.pallas_call(
        kernel,
        out_shape=jax.ShapeDtypeStruct((B, O, N, C), x.dtype),
        grid=(1,),
        in_specs=[
            full((M, D)),
            full((D, D)), full((1, D)), full((D, D)), full((1, D)),
            full((1, D)), full((1, D)), full((1, D)), full((1, D)),
            full((D, D)), full((1, D)), full((D, D)), full((1, D)),
            full((L * D, O * C)), full((1, O * C)),
        ],
        out_specs=full((B, O, N, C)),
        compiler_params=pltpu.CompilerParams(
            dimension_semantics=("arbitrary",)),
    )(
        xf,
        params["ff1_w1"], params["ff1_b1"][None, :],
        params["ff1_w2"], params["ff1_b2"][None, :],
        params["bn_gamma"][None, :], params["bn_beta"][None, :],
        params["an_alpha"][None, :], params["an_bias"][None, :],
        params["ff2_w1"], params["ff2_b1"][None, :],
        params["ff2_w2"], params["ff2_b2"][None, :],
        params["out_w"], params["out_b"][None, :],
    )


# ---------------------------------------------------------------------------
# Pure-JAX reference (mirrors the PyTorch module in training mode)
# ---------------------------------------------------------------------------
def output_block_reference(x, params, *, output_len, channel, eps=1e-5):
    B, L, N, D = x.shape

    def ff(v, w1, b1, w2, b2):
        h = jnp.maximum(v @ w1 + b1, 0.0)
        return h @ w2 + b2

    xf = x.reshape(B * L * N, D)
    z = xf + ff(xf, params["ff1_w1"], params["ff1_b1"],
                params["ff1_w2"], params["ff1_b2"])
    mean = jnp.mean(z, axis=0, keepdims=True)
    var = jnp.mean(jnp.square(z - mean), axis=0, keepdims=True)
    z = (z - mean) / jnp.sqrt(var + eps)
    z = z * params["bn_gamma"] + params["bn_beta"]
    z = params["an_alpha"] * z + params["an_bias"]
    z = ff(z, params["ff2_w1"], params["ff2_b1"],
           params["ff2_w2"], params["ff2_b2"])
    z = z.reshape(B, L, N, D).transpose(0, 2, 1, 3).reshape(B * N, L * D)
    out = z @ params["out_w"] + params["out_b"]
    return out.reshape(B, N, output_len, channel).transpose(0, 2, 1, 3)


# ---------------------------------------------------------------------------
# Deterministic parameter construction (PyTorch-style uniform bounds)
# ---------------------------------------------------------------------------
def init_params(key, input_dim, input_len, output_len, channel):
    def lin(key, fan_in, fan_out):
        kw, kb = jax.random.split(key)
        bound = 1.0 / (fan_in ** 0.5)
        w = jax.random.uniform(kw, (fan_in, fan_out), jnp.float32, -bound, bound)
        b = jax.random.uniform(kb, (fan_out,), jnp.float32, -bound, bound)
        return w, b

    keys = jax.random.split(key, 5)
    p = {}
    p["ff1_w1"], p["ff1_b1"] = lin(keys[0], input_dim, input_dim)
    p["ff1_w2"], p["ff1_b2"] = lin(keys[1], input_dim, input_dim)
    p["ff2_w1"], p["ff2_b1"] = lin(keys[2], input_dim, input_dim)
    p["ff2_w2"], p["ff2_b2"] = lin(keys[3], input_dim, input_dim)
    p["out_w"], p["out_b"] = lin(keys[4], input_len * input_dim,
                                 output_len * channel)
    # BatchNorm1d: weight=1, bias=0 ; AddBatchNorm: alpha=1, bias=0
    p["bn_gamma"] = jnp.ones((input_dim,), jnp.float32)
    p["bn_beta"] = jnp.zeros((input_dim,), jnp.float32)
    p["an_alpha"] = jnp.ones((input_dim,), jnp.float32)
    p["an_bias"] = jnp.zeros((input_dim,), jnp.float32)
    return p


if __name__ == "__main__":
    model_args = dict(
        feature_embedding_dim=8,
        diw_embedding_dim=8,
        tid_embedding_dim=8,
        adaptive_embedding_dim=8,
        channel=2,
        input_len=8,
        output_len=4,
        num_nodes=16,
    )
    input_dim = (model_args["feature_embedding_dim"]
                 + model_args["diw_embedding_dim"]
                 + model_args["tid_embedding_dim"]
                 + model_args["adaptive_embedding_dim"])          # 32
    L = model_args["input_len"]
    N = model_args["num_nodes"]
    O = model_args["output_len"]
    C = model_args["channel"]
    B = 2

    key = jax.random.PRNGKey(0)
    k_x, k_p = jax.random.split(key)
    x = jax.random.normal(k_x, (B, L, N, input_dim), jnp.float32)
    params = init_params(k_p, input_dim, L, O, C)

    fwd = jax.jit(functools.partial(output_block_forward,
                                    output_len=O, channel=C))
    out = jax.block_until_ready(fwd(x, params))

    assert out.shape == (B, O, N, C), out.shape
    ref = output_block_reference(x, params, output_len=O, channel=C)
    assert jnp.allclose(out, ref, rtol=1e-4, atol=1e-4), (
        float(jnp.max(jnp.abs(out - ref))))

    print("KERNEL_OK")
</pallas_src>

<mosaic_0001>
module attributes {stable_mosaic.version = 11 : i64} {
  func.func @_fused_output_block_kernel(%arg0: i32, %arg1: memref<256x32xf32, #tpu.memory_space<vmem>>, %arg2: memref<32x32xf32, #tpu.memory_space<vmem>>, %arg3: memref<1x32xf32, #tpu.memory_space<vmem>>, %arg4: memref<32x32xf32, #tpu.memory_space<vmem>>, %arg5: memref<1x32xf32, #tpu.memory_space<vmem>>, %arg6: memref<1x32xf32, #tpu.memory_space<vmem>>, %arg7: memref<1x32xf32, #tpu.memory_space<vmem>>, %arg8: memref<1x32xf32, #tpu.memory_space<vmem>>, %arg9: memref<1x32xf32, #tpu.memory_space<vmem>>, %arg10: memref<32x32xf32, #tpu.memory_space<vmem>>, %arg11: memref<1x32xf32, #tpu.memory_space<vmem>>, %arg12: memref<32x32xf32, #tpu.memory_space<vmem>>, %arg13: memref<1x32xf32, #tpu.memory_space<vmem>>, %arg14: memref<256x8xf32, #tpu.memory_space<vmem>>, %arg15: memref<1x8xf32, #tpu.memory_space<vmem>>, %arg16: memref<2x4x16x2xf32, #tpu.memory_space<vmem>>) attributes {dimension_semantics = [#tpu.dimension_semantics<arbitrary>], iteration_bounds = array<i64: 1>, scalar_prefetch = 0 : i64, scratch_operands = 0 : i64, tpu.core_type = #tpu.core_type<tc>, window_params = [{pipeline_mode = #tpu.pipeline_mode<synchronous>, transform_indices = @transform_0, window_bounds = array<i64: 256, 32>}, {pipeline_mode = #tpu.pipeline_mode<synchronous>, transform_indices = @transform_1, window_bounds = array<i64: 32, 32>}, {pipeline_mode = #tpu.pipeline_mode<synchronous>, transform_indices = @transform_2, window_bounds = array<i64: 1, 32>}, {pipeline_mode = #tpu.pipeline_mode<synchronous>, transform_indices = @transform_3, window_bounds = array<i64: 32, 32>}, {pipeline_mode = #tpu.pipeline_mode<synchronous>, transform_indices = @transform_4, window_bounds = array<i64: 1, 32>}, {pipeline_mode = #tpu.pipeline_mode<synchronous>, transform_indices = @transform_5, window_bounds = array<i64: 1, 32>}, {pipeline_mode = #tpu.pipeline_mode<synchronous>, transform_indices = @transform_6, window_bounds = array<i64: 1, 32>}, {pipeline_mode = #tpu.pipeline_mode<synchronous>, transform_indices = @transform_7, window_bounds = array<i64: 1, 32>}, {pipeline_mode = #tpu.pipeline_mode<synchronous>, transform_indices = @transform_8, window_bounds = array<i64: 1, 32>}, {pipeline_mode = #tpu.pipeline_mode<synchronous>, transform_indices = @transform_9, window_bounds = array<i64: 32, 32>}, {pipeline_mode = #tpu.pipeline_mode<synchronous>, transform_indices = @transform_10, window_bounds = array<i64: 1, 32>}, {pipeline_mode = #tpu.pipeline_mode<synchronous>, transform_indices = @transform_11, window_bounds = array<i64: 32, 32>}, {pipeline_mode = #tpu.pipeline_mode<synchronous>, transform_indices = @transform_12, window_bounds = array<i64: 1, 32>}, {pipeline_mode = #tpu.pipeline_mode<synchronous>, transform_indices = @transform_13, window_bounds = array<i64: 256, 8>}, {pipeline_mode = #tpu.pipeline_mode<synchronous>, transform_indices = @transform_14, window_bounds = array<i64: 1, 8>}, {pipeline_mode = #tpu.pipeline_mode<synchronous>, transform_indices = @transform_15, window_bounds = array<i64: 2, 4, 16, 2>}]} {
    %c0 = arith.constant 0 : index
    %c0_0 = arith.constant 0 : index
    %0 = vector.load %arg1[%c0, %c0_0] : memref<256x32xf32, #tpu.memory_space<vmem>>, vector<256x32xf32>
    %c0_1 = arith.constant 0 : index
    %c0_2 = arith.constant 0 : index
    %1 = vector.load %arg2[%c0_1, %c0_2] : memref<32x32xf32, #tpu.memory_space<vmem>>, vector<32x32xf32>
    %cst = arith.constant dense<0.000000e+00> : vector<256x32xf32>
    %2 = tpu.matmul %0, %1, %cst {dimension_numbers = #tpu.dot_dimension_numbers<[1], [0], [0], [1], [0, 0, 1, 1], [], []>} : vector<256x32xf32>, vector<32x32xf32>, vector<256x32xf32> -> vector<256x32xf32>
    %c0_3 = arith.constant 0 : index
    %c0_4 = arith.constant 0 : index
    %3 = vector.load %arg3[%c0_3, %c0_4] : memref<1x32xf32, #tpu.memory_space<vmem>>, vector<1x32xf32>
    %4 = vector.broadcast %3 : vector<1x32xf32> to vector<256x32xf32>
    %5 = arith.addf %2, %4 : vector<256x32xf32>
    %cst_5 = arith.constant 0.000000e+00 : f32
    %6 = vector.broadcast %cst_5 : f32 to vector<256x32xf32>
    %7 = arith.maximumf %5, %6 : vector<256x32xf32>
    %c0_6 = arith.constant 0 : index
    %c0_7 = arith.constant 0 : index
    %8 = vector.load %arg4[%c0_6, %c0_7] : memref<32x32xf32, #tpu.memory_space<vmem>>, vector<32x32xf32>
    %cst_8 = arith.constant dense<0.000000e+00> : vector<256x32xf32>
    %9 = tpu.matmul %7, %8, %cst_8 {dimension_numbers = #tpu.dot_dimension_numbers<[1], [0], [0], [1], [0, 0, 1, 1], [], []>} : vector<256x32xf32>, vector<32x32xf32>, vector<256x32xf32> -> vector<256x32xf32>
    %10 = arith.addf %0, %9 : vector<256x32xf32>
    %c0_9 = arith.constant 0 : index
    %c0_10 = arith.constant 0 : index
    %11 = vector.load %arg5[%c0_9, %c0_10] : memref<1x32xf32, #tpu.memory_space<vmem>>, vector<1x32xf32>
    %12 = vector.broadcast %11 : vector<1x32xf32> to vector<256x32xf32>
    %13 = arith.addf %10, %12 : vector<256x32xf32>
    %cst_11 = arith.constant dense<0.000000e+00> : vector<32xf32>
    %14 = vector.multi_reduction <add>, %13, %cst_11 [0] : vector<256x32xf32> to vector<32xf32>
    %15 = vector.shape_cast %14 : vector<32xf32> to vector<1x32xf32>
    %cst_12 = arith.constant 2.560000e+02 : f32
    %16 = vector.broadcast %cst_12 : f32 to vector<1x32xf32>
    %17 = arith.divf %15, %16 : vector<1x32xf32>
    %18 = vector.broadcast %17 : vector<1x32xf32> to vector<256x32xf32>
    %19 = arith.subf %13, %18 : vector<256x32xf32>
    %20 = arith.mulf %19, %19 : vector<256x32xf32>
    %cst_13 = arith.constant dense<0.000000e+00> : vector<32xf32>
    %21 = vector.multi_reduction <add>, %20, %cst_13 [0] : vector<256x32xf32> to vector<32xf32>
    %22 = vector.shape_cast %21 : vector<32xf32> to vector<1x32xf32>
    %cst_14 = arith.constant 2.560000e+02 : f32
    %23 = vector.broadcast %cst_14 : f32 to vector<1x32xf32>
    %24 = arith.divf %22, %23 : vector<1x32xf32>
    %25 = vector.broadcast %17 : vector<1x32xf32> to vector<256x32xf32>
    %26 = arith.subf %13, %25 : vector<256x32xf32>
    %cst_15 = arith.constant 9.99999974E-6 : f32
    %27 = vector.broadcast %cst_15 : f32 to vector<1x32xf32>
    %28 = arith.addf %24, %27 : vector<1x32xf32>
    %29 = math.rsqrt %28 : vector<1x32xf32>
    %30 = vector.broadcast %29 : vector<1x32xf32> to vector<256x32xf32>
    %31 = arith.mulf %26, %30 : vector<256x32xf32>
    %c0_16 = arith.constant 0 : index
    %c0_17 = arith.constant 0 : index
    %32 = vector.load %arg6[%c0_16, %c0_17] : memref<1x32xf32, #tpu.memory_space<vmem>>, vector<1x32xf32>
    %33 = vector.broadcast %32 : vector<1x32xf32> to vector<256x32xf32>
    %34 = arith.mulf %31, %33 : vector<256x32xf32>
    %c0_18 = arith.constant 0 : index
    %c0_19 = arith.constant 0 : index
    %35 = vector.load %arg7[%c0_18, %c0_19] : memref<1x32xf32, #tpu.memory_space<vmem>>, vector<1x32xf32>
    %36 = vector.broadcast %35 : vector<1x32xf32> to vector<256x32xf32>
    %37 = arith.addf %34, %36 : vector<256x32xf32>
    %c0_20 = arith.constant 0 : index
    %c0_21 = arith.constant 0 : index
    %38 = vector.load %arg8[%c0_20, %c0_21] : memref<1x32xf32, #tpu.memory_space<vmem>>, vector<1x32xf32>
    %39 = vector.broadcast %38 : vector<1x32xf32> to vector<256x32xf32>
    %40 = arith.mulf %39, %37 : vector<256x32xf32>
    %c0_22 = arith.constant 0 : index
    %c0_23 = arith.constant 0 : index
    %41 = vector.load %arg9[%c0_22, %c0_23] : memref<1x32xf32, #tpu.memory_space<vmem>>, vector<1x32xf32>
    %42 = vector.broadcast %41 : vector<1x32xf32> to vector<256x32xf32>
    %43 = arith.addf %40, %42 : vector<256x32xf32>
    %c0_24 = arith.constant 0 : index
    %c0_25 = arith.constant 0 : index
    %44 = vector.load %arg10[%c0_24, %c0_25] : memref<32x32xf32, #tpu.memory_space<vmem>>, vector<32x32xf32>
    %cst_26 = arith.constant dense<0.000000e+00> : vector<256x32xf32>
    %45 = tpu.matmul %43, %44, %cst_26 {dimension_numbers = #tpu.dot_dimension_numbers<[1], [0], [0], [1], [0, 0, 1, 1], [], []>} : vector<256x32xf32>, vector<32x32xf32>, vector<256x32xf32> -> vector<256x32xf32>
    %c0_27 = arith.constant 0 : index
    %c0_28 = arith.constant 0 : index
    %46 = vector.load %arg11[%c0_27, %c0_28] : memref<1x32xf32, #tpu.memory_space<vmem>>, vector<1x32xf32>
    %47 = vector.broadcast %46 : vector<1x32xf32> to vector<256x32xf32>
    %48 = arith.addf %45, %47 : vector<256x32xf32>
    %cst_29 = arith.constant 0.000000e+00 : f32
    %49 = vector.broadcast %cst_29 : f32 to vector<256x32xf32>
    %50 = arith.maximumf %48, %49 : vector<256x32xf32>
    %c0_30 = arith.constant 0 : index
    %c0_31 = arith.constant 0 : index
    %51 = vector.load %arg12[%c0_30, %c0_31] : memref<32x32xf32, #tpu.memory_space<vmem>>, vector<32x32xf32>
    %cst_32 = arith.constant dense<0.000000e+00> : vector<256x32xf32>
    %52 = tpu.matmul %50, %51, %cst_32 {dimension_numbers = #tpu.dot_dimension_numbers<[1], [0], [0], [1], [0, 0, 1, 1], [], []>} : vector<256x32xf32>, vector<32x32xf32>, vector<256x32xf32> -> vector<256x32xf32>
    %c0_33 = arith.constant 0 : index
    %c0_34 = arith.constant 0 : index
    %53 = vector.load %arg13[%c0_33, %c0_34] : memref<1x32xf32, #tpu.memory_space<vmem>>, vector<1x32xf32>
    %54 = vector.broadcast %53 : vector<1x32xf32> to vector<256x32xf32>
    %55 = arith.addf %52, %54 : vector<256x32xf32>
    %cst_35 = arith.constant 0.000000e+00 : f32
    %56 = vector.broadcast %cst_35 : f32 to vector<32x8xf32>
    %57 = vector.extract_strided_slice %55 {offsets = [0, 0], sizes = [16, 32], strides = [1, 1]} : vector<256x32xf32> to vector<16x32xf32>
    %58 = vector.extract_strided_slice %55 {offsets = [128, 0], sizes = [16, 32], strides = [1, 1]} : vector<256x32xf32> to vector<16x32xf32>
    %59 = tpu.concatenate %57, %58 in 0 : vector<16x32xf32>, vector<16x32xf32> -> vector<32x32xf32>
    %c0_36 = arith.constant 0 : index
    %c0_37 = arith.constant 0 : index
    %60 = vector.load %arg14[%c0_36, %c0_37] : memref<256x8xf32, #tpu.memory_space<vmem>>, vector<32x8xf32>
    %cst_38 = arith.constant dense<0.000000e+00> : vector<32x8xf32>
    %61 = tpu.matmul %59, %60, %cst_38 {dimension_numbers = #tpu.dot_dimension_numbers<[1], [0], [0], [1], [0, 0, 1, 1], [], []>} : vector<32x32xf32>, vector<32x8xf32>, vector<32x8xf32> -> vector<32x8xf32>
    %62 = arith.addf %56, %61 : vector<32x8xf32>
    %63 = vector.extract_strided_slice %55 {offsets = [16, 0], sizes = [16, 32], strides = [1, 1]} : vector<256x32xf32> to vector<16x32xf32>
    %64 = vector.extract_strided_slice %55 {offsets = [144, 0], sizes = [16, 32], strides = [1, 1]} : vector<256x32xf32> to vector<16x32xf32>
    %65 = tpu.concatenate %63, %64 in 0 : vector<16x32xf32>, vector<16x32xf32> -> vector<32x32xf32>
    %c32 = arith.constant 32 : index
    %c0_39 = arith.constant 0 : index
    %66 = vector.load %arg14[%c32, %c0_39] : memref<256x8xf32, #tpu.memory_space<vmem>>, vector<32x8xf32>
    %cst_40 = arith.constant dense<0.000000e+00> : vector<32x8xf32>
    %67 = tpu.matmul %65, %66, %cst_40 {dimension_numbers = #tpu.dot_dimension_numbers<[1], [0], [0], [1], [0, 0, 1, 1], [], []>} : vector<32x32xf32>, vector<32x8xf32>, vector<32x8xf32> -> vector<32x8xf32>
    %68 = arith.addf %62, %67 : vector<32x8xf32>
    %69 = vector.extract_strided_slice %55 {offsets = [32, 0], sizes = [16, 32], strides = [1, 1]} : vector<256x32xf32> to vector<16x32xf32>
    %70 = vector.extract_strided_slice %55 {offsets = [160, 0], sizes = [16, 32], strides = [1, 1]} : vector<256x32xf32> to vector<16x32xf32>
    %71 = tpu.concatenate %69, %70 in 0 : vector<16x32xf32>, vector<16x32xf32> -> vector<32x32xf32>
    %c64 = arith.constant 64 : index
    %c0_41 = arith.constant 0 : index
    %72 = vector.load %arg14[%c64, %c0_41] : memref<256x8xf32, #tpu.memory_space<vmem>>, vector<32x8xf32>
    %cst_42 = arith.constant dense<0.000000e+00> : vector<32x8xf32>
    %73 = tpu.matmul %71, %72, %cst_42 {dimension_numbers = #tpu.dot_dimension_numbers<[1], [0], [0], [1], [0, 0, 1, 1], [], []>} : vector<32x32xf32>, vector<32x8xf32>, vector<32x8xf32> -> vector<32x8xf32>
    %74 = arith.addf %68, %73 : vector<32x8xf32>
    %75 = vector.extract_strided_slice %55 {offsets = [48, 0], sizes = [16, 32], strides = [1, 1]} : vector<256x32xf32> to vector<16x32xf32>
    %76 = vector.extract_strided_slice %55 {offsets = [176, 0], sizes = [16, 32], strides = [1, 1]} : vector<256x32xf32> to vector<16x32xf32>
    %77 = tpu.concatenate %75, %76 in 0 : vector<16x32xf32>, vector<16x32xf32> -> vector<32x32xf32>
    %c96 = arith.constant 96 : index
    %c0_43 = arith.constant 0 : index
    %78 = vector.load %arg14[%c96, %c0_43] : memref<256x8xf32, #tpu.memory_space<vmem>>, vector<32x8xf32>
    %cst_44 = arith.constant dense<0.000000e+00> : vector<32x8xf32>
    %79 = tpu.matmul %77, %78, %cst_44 {dimension_numbers = #tpu.dot_dimension_numbers<[1], [0], [0], [1], [0, 0, 1, 1], [], []>} : vector<32x32xf32>, vector<32x8xf32>, vector<32x8xf32> -> vector<32x8xf32>
    %80 = arith.addf %74, %79 : vector<32x8xf32>
    %81 = vector.extract_strided_slice %55 {offsets = [64, 0], sizes = [16, 32], strides = [1, 1]} : vector<256x32xf32> to vector<16x32xf32>
    %82 = vector.extract_strided_slice %55 {offsets = [192, 0], sizes = [16, 32], strides = [1, 1]} : vector<256x32xf32> to vector<16x32xf32>
    %83 = tpu.concatenate %81, %82 in 0 : vector<16x32xf32>, vector<16x32xf32> -> vector<32x32xf32>
    %c128 = arith.constant 128 : index
    %c0_45 = arith.constant 0 : index
    %84 = vector.load %arg14[%c128, %c0_45] : memref<256x8xf32, #tpu.memory_space<vmem>>, vector<32x8xf32>
    %cst_46 = arith.constant dense<0.000000e+00> : vector<32x8xf32>
    %85 = tpu.matmul %83, %84, %cst_46 {dimension_numbers = #tpu.dot_dimension_numbers<[1], [0], [0], [1], [0, 0, 1, 1], [], []>} : vector<32x32xf32>, vector<32x8xf32>, vector<32x8xf32> -> vector<32x8xf32>
    %86 = arith.addf %80, %85 : vector<32x8xf32>
    %87 = vector.extract_strided_slice %55 {offsets = [80, 0], sizes = [16, 32], strides = [1, 1]} : vector<256x32xf32> to vector<16x32xf32>
    %88 = vector.extract_strided_slice %55 {offsets = [208, 0], sizes = [16, 32], strides = [1, 1]} : vector<256x32xf32> to vector<16x32xf32>
    %89 = tpu.concatenate %87, %88 in 0 : vector<16x32xf32>, vector<16x32xf32> -> vector<32x32xf32>
    %c160 = arith.constant 160 : index
    %c0_47 = arith.constant 0 : index
    %90 = vector.load %arg14[%c160, %c0_47] : memref<256x8xf32, #tpu.memory_space<vmem>>, vector<32x8xf32>
    %cst_48 = arith.constant dense<0.000000e+00> : vector<32x8xf32>
    %91 = tpu.matmul %89, %90, %cst_48 {dimension_numbers = #tpu.dot_dimension_numbers<[1], [0], [0], [1], [0, 0, 1, 1], [], []>} : vector<32x32xf32>, vector<32x8xf32>, vector<32x8xf32> -> vector<32x8xf32>
    %92 = arith.addf %86, %91 : vector<32x8xf32>
    %93 = vector.extract_strided_slice %55 {offsets = [96, 0], sizes = [16, 32], strides = [1, 1]} : vector<256x32xf32> to vector<16x32xf32>
    %94 = vector.extract_strided_slice %55 {offsets = [224, 0], sizes = [16, 32], strides = [1, 1]} : vector<256x32xf32> to vector<16x32xf32>
    %95 = tpu.concatenate %93, %94 in 0 : vector<16x32xf32>, vector<16x32xf32> -> vector<32x32xf32>
    %c192 = arith.constant 192 : index
    %c0_49 = arith.constant 0 : index
    %96 = vector.load %arg14[%c192, %c0_49] : memref<256x8xf32, #tpu.memory_space<vmem>>, vector<32x8xf32>
    %cst_50 = arith.constant dense<0.000000e+00> : vector<32x8xf32>
    %97 = tpu.matmul %95, %96, %cst_50 {dimension_numbers = #tpu.dot_dimension_numbers<[1], [0], [0], [1], [0, 0, 1, 1], [], []>} : vector<32x32xf32>, vector<32x8xf32>, vector<32x8xf32> -> vector<32x8xf32>
    %98 = arith.addf %92, %97 : vector<32x8xf32>
    %99 = vector.extract_strided_slice %55 {offsets = [112, 0], sizes = [16, 32], strides = [1, 1]} : vector<256x32xf32> to vector<16x32xf32>
    %100 = vector.extract_strided_slice %55 {offsets = [240, 0], sizes = [16, 32], strides = [1, 1]} : vector<256x32xf32> to vector<16x32xf32>
    %101 = tpu.concatenate %99, %100 in 0 : vector<16x32xf32>, vector<16x32xf32> -> vector<32x32xf32>
    %c224 = arith.constant 224 : index
    %c0_51 = arith.constant 0 : index
    %102 = vector.load %arg14[%c224, %c0_51] : memref<256x8xf32, #tpu.memory_space<vmem>>, vector<32x8xf32>
    %cst_52 = arith.constant dense<0.000000e+00> : vector<32x8xf32>
    %103 = tpu.matmul %101, %102, %cst_52 {dimension_numbers = #tpu.dot_dimension_numbers<[1], [0], [0], [1], [0, 0, 1, 1], [], []>} : vector<32x32xf32>, vector<32x8xf32>, vector<32x8xf32> -> vector<32x8xf32>
    %104 = arith.addf %98, %103 : vector<32x8xf32>
    %c0_53 = arith.constant 0 : index
    %c0_54 = arith.constant 0 : index
    %105 = vector.load %arg15[%c0_53, %c0_54] : memref<1x8xf32, #tpu.memory_space<vmem>>, vector<1x8xf32>
    %106 = vector.broadcast %105 : vector<1x8xf32> to vector<32x8xf32>
    %107 = arith.addf %104, %106 : vector<32x8xf32>
    %108 = vector.extract_strided_slice %107 {offsets = [0, 0], sizes = [16, 2], strides = [1, 1]} : vector<32x8xf32> to vector<16x2xf32>
    %c0_55 = arith.constant 0 : index
    %c0_56 = arith.constant 0 : index
    %c0_57 = arith.constant 0 : index
    %c0_58 = arith.constant 0 : index
    %109 = vector.load %arg16[%c0_55, %c0_56, %c0_57, %c0_58] : memref<2x4x16x2xf32, #tpu.memory_space<vmem>>, vector<1x1x16x2xf32>
    %110 = vector.shape_cast %109 : vector<1x1x16x2xf32> to vector<16x2xf32>
    %111 = vector.shape_cast %108 : vector<16x2xf32> to vector<1x1x16x2xf32>
    tpu.vector_store %arg16[%c0_55, %c0_56, %c0_57, %c0_58], %111 {strides = array<i32>} : memref<2x4x16x2xf32, #tpu.memory_space<vmem>>, vector<1x1x16x2xf32>,
    %112 = vector.extract_strided_slice %107 {offsets = [0, 2], sizes = [16, 2], strides = [1, 1]} : vector<32x8xf32> to vector<16x2xf32>
    %c0_59 = arith.constant 0 : index
    %c1 = arith.constant 1 : index
    %c0_60 = arith.constant 0 : index
    %c0_61 = arith.constant 0 : index
    %113 = vector.load %arg16[%c0_59, %c1, %c0_60, %c0_61] : memref<2x4x16x2xf32, #tpu.memory_space<vmem>>, vector<1x1x16x2xf32>
    %114 = vector.shape_cast %113 : vector<1x1x16x2xf32> to vector<16x2xf32>
    %115 = vector.shape_cast %112 : vector<16x2xf32> to vector<1x1x16x2xf32>
    tpu.vector_store %arg16[%c0_59, %c1, %c0_60, %c0_61], %115 {strides = array<i32>} : memref<2x4x16x2xf32, #tpu.memory_space<vmem>>, vector<1x1x16x2xf32>,
    %116 = vector.extract_strided_slice %107 {offsets = [0, 4], sizes = [16, 2], strides = [1, 1]} : vector<32x8xf32> to vector<16x2xf32>
    %c0_62 = arith.constant 0 : index
    %c2 = arith.constant 2 : index
    %c0_63 = arith.constant 0 : index
    %c0_64 = arith.constant 0 : index
    %117 = vector.load %arg16[%c0_62, %c2, %c0_63, %c0_64] : memref<2x4x16x2xf32, #tpu.memory_space<vmem>>, vector<1x1x16x2xf32>
    %118 = vector.shape_cast %117 : vector<1x1x16x2xf32> to vector<16x2xf32>
    %119 = vector.shape_cast %116 : vector<16x2xf32> to vector<1x1x16x2xf32>
    tpu.vector_store %arg16[%c0_62, %c2, %c0_63, %c0_64], %119 {strides = array<i32>} : memref<2x4x16x2xf32, #tpu.memory_space<vmem>>, vector<1x1x16x2xf32>,
    %120 = vector.extract_strided_slice %107 {offsets = [0, 6], sizes = [16, 2], strides = [1, 1]} : vector<32x8xf32> to vector<16x2xf32>
    %c0_65 = arith.constant 0 : index
    %c3 = arith.constant 3 : index
    %c0_66 = arith.constant 0 : index
    %c0_67 = arith.constant 0 : index
    %121 = vector.load %arg16[%c0_65, %c3, %c0_66, %c0_67] : memref<2x4x16x2xf32, #tpu.memory_space<vmem>>, vector<1x1x16x2xf32>
    %122 = vector.shape_cast %121 : vector<1x1x16x2xf32> to vector<16x2xf32>
    %123 = vector.shape_cast %120 : vector<16x2xf32> to vector<1x1x16x2xf32>
    tpu.vector_store %arg16[%c0_65, %c3, %c0_66, %c0_67], %123 {strides = array<i32>} : memref<2x4x16x2xf32, #tpu.memory_space<vmem>>, vector<1x1x16x2xf32>,
    %124 = vector.extract_strided_slice %107 {offsets = [16, 0], sizes = [16, 2], strides = [1, 1]} : vector<32x8xf32> to vector<16x2xf32>
    %c1_68 = arith.constant 1 : index
    %c0_69 = arith.constant 0 : index
    %c0_70 = arith.constant 0 : index
    %c0_71 = arith.constant 0 : index
    %125 = vector.load %arg16[%c1_68, %c0_69, %c0_70, %c0_71] : memref<2x4x16x2xf32, #tpu.memory_space<vmem>>, vector<1x1x16x2xf32>
    %126 = vector.shape_cast %125 : vector<1x1x16x2xf32> to vector<16x2xf32>
    %127 = vector.shape_cast %124 : vector<16x2xf32> to vector<1x1x16x2xf32>
    tpu.vector_store %arg16[%c1_68, %c0_69, %c0_70, %c0_71], %127 {strides = array<i32>} : memref<2x4x16x2xf32, #tpu.memory_space<vmem>>, vector<1x1x16x2xf32>,
    %128 = vector.extract_strided_slice %107 {offsets = [16, 2], sizes = [16, 2], strides = [1, 1]} : vector<32x8xf32> to vector<16x2xf32>
    %c1_72 = arith.constant 1 : index
    %c1_73 = arith.constant 1 : index
    %c0_74 = arith.constant 0 : index
    %c0_75 = arith.constant 0 : index
    %129 = vector.load %arg16[%c1_72, %c1_73, %c0_74, %c0_75] : memref<2x4x16x2xf32, #tpu.memory_space<vmem>>, vector<1x1x16x2xf32>
    %130 = vector.shape_cast %129 : vector<1x1x16x2xf32> to vector<16x2xf32>
    %131 = vector.shape_cast %128 : vector<16x2xf32> to vector<1x1x16x2xf32>
    tpu.vector_store %arg16[%c1_72, %c1_73, %c0_74, %c0_75], %131 {strides = array<i32>} : memref<2x4x16x2xf32, #tpu.memory_space<vmem>>, vector<1x1x16x2xf32>,
    %132 = vector.extract_strided_slice %107 {offsets = [16, 4], sizes = [16, 2], strides = [1, 1]} : vector<32x8xf32> to vector<16x2xf32>
    %c1_76 = arith.constant 1 : index
    %c2_77 = arith.constant 2 : index
    %c0_78 = arith.constant 0 : index
    %c0_79 = arith.constant 0 : index
    %133 = vector.load %arg16[%c1_76, %c2_77, %c0_78, %c0_79] : memref<2x4x16x2xf32, #tpu.memory_space<vmem>>, vector<1x1x16x2xf32>
    %134 = vector.shape_cast %133 : vector<1x1x16x2xf32> to vector<16x2xf32>
    %135 = vector.shape_cast %132 : vector<16x2xf32> to vector<1x1x16x2xf32>
    tpu.vector_store %arg16[%c1_76, %c2_77, %c0_78, %c0_79], %135 {strides = array<i32>} : memref<2x4x16x2xf32, #tpu.memory_space<vmem>>, vector<1x1x16x2xf32>,
    %136 = vector.extract_strided_slice %107 {offsets = [16, 6], sizes = [16, 2], strides = [1, 1]} : vector<32x8xf32> to vector<16x2xf32>
    %c1_80 = arith.constant 1 : index
    %c3_81 = arith.constant 3 : index
    %c0_82 = arith.constant 0 : index
    %c0_83 = arith.constant 0 : index
    %137 = vector.load %arg16[%c1_80, %c3_81, %c0_82, %c0_83] : memref<2x4x16x2xf32, #tpu.memory_space<vmem>>, vector<1x1x16x2xf32>
    %138 = vector.shape_cast %137 : vector<1x1x16x2xf32> to vector<16x2xf32>
    %139 = vector.shape_cast %136 : vector<16x2xf32> to vector<1x1x16x2xf32>
    tpu.vector_store %arg16[%c1_80, %c3_81, %c0_82, %c0_83], %139 {strides = array<i32>} : memref<2x4x16x2xf32, #tpu.memory_space<vmem>>, vector<1x1x16x2xf32>,
    return
  }
  func.func @transform_0(%arg0: i32) -> (i32, i32) {
    %c0_i32 = arith.constant 0 : i32
    %c0_i32_0 = arith.constant 0 : i32
    %c0_i32_1 = arith.constant 0 : i32
    return %c0_i32, %c0_i32_0 : i32, i32
  }
  func.func @transform_1(%arg0: i32) -> (i32, i32) {
    %c0_i32 = arith.constant 0 : i32
    %c0_i32_0 = arith.constant 0 : i32
    %c0_i32_1 = arith.constant 0 : i32
    return %c0_i32, %c0_i32_0 : i32, i32
  }
  func.func @transform_2(%arg0: i32) -> (i32, i32) {
    %c0_i32 = arith.constant 0 : i32
    %c0_i32_0 = arith.constant 0 : i32
    %c0_i32_1 = arith.constant 0 : i32
    return %c0_i32, %c0_i32_0 : i32, i32
  }
  func.func @transform_3(%arg0: i32) -> (i32, i32) {
    %c0_i32 = arith.constant 0 : i32
    %c0_i32_0 = arith.constant 0 : i32
    %c0_i32_1 = arith.constant 0 : i32
    return %c0_i32, %c0_i32_0 : i32, i32
  }
  func.func @transform_4(%arg0: i32) -> (i32, i32) {
    %c0_i32 = arith.constant 0 : i32
    %c0_i32_0 = arith.constant 0 : i32
    %c0_i32_1 = arith.constant 0 : i32
    return %c0_i32, %c0_i32_0 : i32, i32
  }
  func.func @transform_5(%arg0: i32) -> (i32, i32) {
    %c0_i32 = arith.constant 0 : i32
    %c0_i32_0 = arith.constant 0 : i32
    %c0_i32_1 = arith.constant 0 : i32
    return %c0_i32, %c0_i32_0 : i32, i32
  }
  func.func @transform_6(%arg0: i32) -> (i32, i32) {
    %c0_i32 = arith.constant 0 : i32
    %c0_i32_0 = arith.constant 0 : i32
    %c0_i32_1 = arith.constant 0 : i32
    return %c0_i32, %c0_i32_0 : i32, i32
  }
  func.func @transform_7(%arg0: i32) -> (i32, i32) {
    %c0_i32 = arith.constant 0 : i32
    %c0_i32_0 = arith.constant 0 : i32
    %c0_i32_1 = arith.constant 0 : i32
    return %c0_i32, %c0_i32_0 : i32, i32
  }
  func.func @transform_8(%arg0: i32) -> (i32, i32) {
    %c0_i32 = arith.constant 0 : i32
    %c0_i32_0 = arith.constant 0 : i32
    %c0_i32_1 = arith.constant 0 : i32
    return %c0_i32, %c0_i32_0 : i32, i32
  }
  func.func @transform_9(%arg0: i32) -> (i32, i32) {
    %c0_i32 = arith.constant 0 : i32
    %c0_i32_0 = arith.constant 0 : i32
    %c0_i32_1 = arith.constant 0 : i32
    return %c0_i32, %c0_i32_0 : i32, i32
  }
  func.func @transform_10(%arg0: i32) -> (i32, i32) {
    %c0_i32 = arith.constant 0 : i32
    %c0_i32_0 = arith.constant 0 : i32
    %c0_i32_1 = arith.constant 0 : i32
    return %c0_i32, %c0_i32_0 : i32, i32
  }
  func.func @transform_11(%arg0: i32) -> (i32, i32) {
    %c0_i32 = arith.constant 0 : i32
    %c0_i32_0 = arith.constant 0 : i32
    %c0_i32_1 = arith.constant 0 : i32
    return %c0_i32, %c0_i32_0 : i32, i32
  }
  func.func @transform_12(%arg0: i32) -> (i32, i32) {
    %c0_i32 = arith.constant 0 : i32
    %c0_i32_0 = arith.constant 0 : i32
    %c0_i32_1 = arith.constant 0 : i32
    return %c0_i32, %c0_i32_0 : i32, i32
  }
  func.func @transform_13(%arg0: i32) -> (i32, i32) {
    %c0_i32 = arith.constant 0 : i32
    %c0_i32_0 = arith.constant 0 : i32
    %c0_i32_1 = arith.constant 0 : i32
    return %c0_i32, %c0_i32_0 : i32, i32
  }
  func.func @transform_14(%arg0: i32) -> (i32, i32) {
    %c0_i32 = arith.constant 0 : i32
    %c0_i32_0 = arith.constant 0 : i32
    %c0_i32_1 = arith.constant 0 : i32
    return %c0_i32, %c0_i32_0 : i32, i32
  }
  func.func @transform_15(%arg0: i32) -> (i32, i32, i32, i32) {
    %c0_i32 = arith.constant 0 : i32
    %c0_i32_0 = arith.constant 0 : i32
    %c0_i32_1 = arith.constant 0 : i32
    %c0_i32_2 = arith.constant 0 : i32
    %c0_i32_3 = arith.constant 0 : i32
    return %c0_i32, %c0_i32_0, %c0_i32_1, %c0_i32_2 : i32, i32, i32, i32
  }
}

</mosaic_0001>

<llo_original>
// kernel: output_block_forward.1
$region0: #{output_block_forward.1}
  #allocation0 [shape = 'u32[]', space=smem, size = 0x4, offset = 0x4, fixed_abs, tag = 'smem constant byte address 0x4 - core index']
  #allocation1 [shape = 'u32[144,128]{1,0:T(1,128)}', space=vmem, size = 0x12000, scoped, tag = 'internal scratch']
  %s0 = inlined_call_operand.vmem [shape: f32[256,32], index: 0, kind: input, shape index: {}]
  %s1 = inlined_call_operand.vmem [shape: f32[32,32], index: 1, kind: input, shape index: {}]
  %s2 = inlined_call_operand.vmem [shape: f32[1,32], index: 2, kind: input, shape index: {}]
  %s3 = inlined_call_operand.vmem [shape: f32[32,32], index: 3, kind: input, shape index: {}]
  %s4 = inlined_call_operand.vmem [shape: f32[1,32], index: 4, kind: input, shape index: {}]
  %s5 = inlined_call_operand.vmem [shape: f32[1,32], index: 5, kind: input, shape index: {}]
  %s6 = inlined_call_operand.hbm [shape: f32[1,32], index: 6, kind: input, shape index: {}]
  %s7 = inlined_call_operand.hbm [shape: f32[1,32], index: 7, kind: input, shape index: {}]
  %s8 = inlined_call_operand.hbm [shape: f32[1,32], index: 8, kind: input, shape index: {}]
  %s9 = inlined_call_operand.hbm [shape: f32[32,32], index: 9, kind: input, shape index: {}]
  %s10 = inlined_call_operand.hbm [shape: f32[1,32], index: 10, kind: input, shape index: {}]
  %s11 = inlined_call_operand.vmem [shape: f32[32,32], index: 11, kind: input, shape index: {}]
  %s12 = inlined_call_operand.hbm [shape: f32[1,32], index: 12, kind: input, shape index: {}]
  %s13 = inlined_call_operand.vmem [shape: f32[256,8], index: 13, kind: input, shape index: {}]
  %s14 = inlined_call_operand.vmem [shape: f32[1,8], index: 14, kind: input, shape index: {}]
  %s15 = inlined_call_operand.vmem [shape: f32[2,4,16,2], index: 15, kind: output, shape index: {}]
  %s16 = sld [smem:[#allocation0]]
  $region94: #{output_block_forward.1} parent=0
    _
  %s18 = ssub.s32 1, %s16
  %s19 = scalar_select 0, %s18, %s16
  $region1: #{output_block_forward.1} parent=0
    #allocation2 [shape = 'u8[512]{0}', space=vmem, size = 0x400, scoped, tag = 'input window, operand 6, single buffered']
    #allocation3 [shape = 's32[1]{0}', space=sflag, size = 0x4, scoped, tag = 'scoped memory for output_block_forward.1']
    #allocation4 [shape = 'u8[512]{0}', space=vmem, size = 0x400, scoped, tag = 'input window, operand 7, single buffered']
    #allocation5 [shape = 's32[1]{0}', space=sflag, size = 0x4, scoped, tag = 'scoped memory for output_block_forward.1']
    #allocation6 [shape = 'u8[512]{0}', space=vmem, size = 0x400, scoped, tag = 'input window, operand 8, single buffered']
    #allocation7 [shape = 'u8[16384]{0}', space=vmem, size = 0x4000, scoped, tag = 'input window, operand 9, single buffered']
    #allocation8 [shape = 's32[1]{0}', space=sflag, size = 0x4, scoped, tag = 'scoped memory for output_block_forward.1']
    #allocation9 [shape = 'u8[512]{0}', space=vmem, size = 0x400, scoped, tag = 'input window, operand 10, single buffered']
    #allocation10 [shape = 'u8[512]{0}', space=vmem, size = 0x400, scoped, tag = 'input window, operand 12, single buffered']
    #allocation11 [shape = 's32[1]{0}', space=sflag, size = 0x4, scoped, tag = 'scoped memory for output_block_forward.1']
    %20 = vsyncpa [#allocation3], 0
    %21 = vsyncpa [#allocation5], 0
    %22 = vsyncpa [#allocation8], 0
    %23 = vsyncpa [#allocation11], 0
    // Predicated region
    $region2: #{output_block_forward.1} parent=1 // pred_check
      _
    $region3: #{output_block_forward.1} parent=1 // pred_check_branch
      %25 = sbr.rel (0) target = $region5
    $region4: #{output_block_forward.1} parent=1 // pred_region
      _
    $region5: #{output_block_forward.1} parent=1 // pred_fallthru
      _
    // Predicated region
    $region6: #{output_block_forward.1} parent=1 // pred_check
      _
    $region7: #{output_block_forward.1} parent=1 // pred_check_branch
      %27 = sbr.rel (0) target = $region9
    $region8: #{output_block_forward.1} parent=1 // pred_region
      _
    $region9: #{output_block_forward.1} parent=1 // pred_fallthru
      _
    // Predicated region
    $region10: #{output_block_forward.1} parent=1 // pred_check
      _
    $region11: #{output_block_forward.1} parent=1 // pred_check_branch
      %29 = sbr.rel (0) target = $region13
    $region12: #{output_block_forward.1} parent=1 // pred_region
      _
    $region13: #{output_block_forward.1} parent=1 // pred_fallthru
      _
    // Predicated region
    $region14: #{output_block_forward.1} parent=1 // pred_check
      _
    $region15: #{output_block_forward.1} parent=1 // pred_check_branch
      %31 = sbr.rel (0) target = $region17
    $region16: #{output_block_forward.1} parent=1 // pred_region
      _
    $region17: #{output_block_forward.1} parent=1 // pred_fallthru
      _
    // Predicated region
    $region18: #{output_block_forward.1} parent=1 // pred_check
      _
    $region19: #{output_block_forward.1} parent=1 // pred_check_branch
      %33 = sbr.rel (0) target = $region21
    $region20: #{output_block_forward.1} parent=1 // pred_region
      _
    $region21: #{output_block_forward.1} parent=1 // pred_fallthru
      _
    // Predicated region
    $region22: #{output_block_forward.1} parent=1 // pred_check
      _
    $region23: #{output_block_forward.1} parent=1 // pred_check_branch
      %35 = sbr.rel (0) target = $region25
    $region24: #{output_block_forward.1} parent=1 // pred_region
      _
    $region25: #{output_block_forward.1} parent=1 // pred_fallthru
      _
    // Predicated region
    $region26: #{output_block_forward.1} parent=1 // pred_check
      _
    $region27: #{output_block_forward.1} parent=1 // pred_check_branch
      %37 = sbr.rel (0) target = $region29
    $region28: #{output_block_forward.1} parent=1 // pred_region
      %s39 = ssub.s32 16, 16
      %40 = vsyncadd [#allocation3], %s39
      %s42 = sshll.u32 [#allocation2], 4
      %s43 = int_to_ptr.vmem [resolvable:$true] %s42
      %45 = dma.hbm_to_vmem [thread:$0]  %s6, 16, %s43, [#allocation3]
    $region29: #{output_block_forward.1} parent=1 // pred_fallthru
      _
    // Predicated region
    $region30: #{output_block_forward.1} parent=1 // pred_check
      _
    $region31: #{output_block_forward.1} parent=1 // pred_check_branch
      %47 = sbr.rel (0) target = $region33
    $region32: #{output_block_forward.1} parent=1 // pred_region
      %s49 = ssub.s32 16, 16
      %50 = vsyncadd [#allocation5], %s49
      %s52 = sshll.u32 [#allocation4], 4
      %s53 = int_to_ptr.vmem [resolvable:$true] %s52
      %55 = dma.hbm_to_vmem [thread:$0]  %s7, 16, %s53, [#allocation5]
    $region33: #{output_block_forward.1} parent=1 // pred_fallthru
      _
    // Predicated region
    $region34: #{output_block_forward.1} parent=1 // pred_check
      _
    $region35: #{output_block_forward.1} parent=1 // pred_check_branch
      %57 = sbr.rel (0) target = $region37
    $region36: #{output_block_forward.1} parent=1 // pred_region
      %s59 = ssub.s32 16, 16
      %60 = vsyncadd [#allocation5], %s59
      %s62 = sshll.u32 [#allocation6], 4
      %s63 = int_to_ptr.vmem [resolvable:$true] %s62
      %65 = dma.hbm_to_vmem [thread:$0]  %s8, 16, %s63, [#allocation5]
    $region37: #{output_block_forward.1} parent=1 // pred_fallthru
      _
    // Predicated region
    $region38: #{output_block_forward.1} parent=1 // pred_check
      _
    $region39: #{output_block_forward.1} parent=1 // pred_check_branch
      %67 = sbr.rel (0) target = $region41
    $region40: #{output_block_forward.1} parent=1 // pred_region
      %s69 = ssub.s32 512, 512
      %70 = vsyncadd [#allocation8], %s69
      %s71 = sshll.u32 [#allocation7], 4
      %s72 = int_to_ptr.vmem [resolvable:$true] %s71
      %77 = dma.hbm_to_vmem [thread:$0]  %s9, 512, %s72, [#allocation8], 128, 128, 8
    $region41: #{output_block_forward.1} parent=1 // pred_fallthru
      _
    // Predicated region
    $region42: #{output_block_forward.1} parent=1 // pred_check
      _
    $region43: #{output_block_forward.1} parent=1 // pred_check_branch
      %79 = sbr.rel (0) target = $region45
    $region44: #{output_block_forward.1} parent=1 // pred_region
      %s81 = ssub.s32 16, 16
      %82 = vsyncadd [#allocation8], %s81
      %s84 = sshll.u32 [#allocation9], 4
      %s85 = int_to_ptr.vmem [resolvable:$true] %s84
      %87 = dma.hbm_to_vmem [thread:$0]  %s10, 16, %s85, [#allocation8]
    $region45: #{output_block_forward.1} parent=1 // pred_fallthru
      _
    // Predicated region
    $region46: #{output_block_forward.1} parent=1 // pred_check
      _
    $region47: #{output_block_forward.1} parent=1 // pred_check_branch
      %89 = sbr.rel (0) target = $region49
    $region48: #{output_block_forward.1} parent=1 // pred_region
      _
    $region49: #{output_block_forward.1} parent=1 // pred_fallthru
      _
    // Predicated region
    $region50: #{output_block_forward.1} parent=1 // pred_check
      _
    $region51: #{output_block_forward.1} parent=1 // pred_check_branch
      %91 = sbr.rel (0) target = $region53
    $region52: #{output_block_forward.1} parent=1 // pred_region
      %s93 = ssub.s32 16, 16
      %94 = vsyncadd [#allocation11], %s93
      %s96 = sshll.u32 [#allocation10], 4
      %s97 = int_to_ptr.vmem [resolvable:$true] %s96
      %99 = dma.hbm_to_vmem [thread:$0]  %s12, 16, %s97, [#allocation11]
    $region53: #{output_block_forward.1} parent=1 // pred_fallthru
      _
    // Predicated region
    $region54: #{output_block_forward.1} parent=1 // pred_check
      _
    $region55: #{output_block_forward.1} parent=1 // pred_check_branch
      %101 = sbr.rel (0) target = $region57
    $region56: #{output_block_forward.1} parent=1 // pred_region
      _
    $region57: #{output_block_forward.1} parent=1 // pred_fallthru
      _
    // Predicated region
    $region58: #{output_block_forward.1} parent=1 // pred_check
      _
    $region59: #{output_block_forward.1} parent=1 // pred_check_branch
      %103 = sbr.rel (0) target = $region61
    $region60: #{output_block_forward.1} parent=1 // pred_region
      _
    $region61: #{output_block_forward.1} parent=1 // pred_fallthru
      _
    // Predicated region
    $region62: #{output_block_forward.1} parent=1 // pred_check
      _
    $region63: #{output_block_forward.1} parent=1 // pred_check_branch
      %105 = sbr.rel (0) target = $region65
    $region64: #{output_block_forward.1} parent=1 // pred_region
      %106 = dma.done [#allocation3], 16
    $region65: #{output_block_forward.1} parent=1 // pred_fallthru
      _
    // Predicated region
    $region66: #{output_block_forward.1} parent=1 // pred_check
      _
    $region67: #{output_block_forward.1} parent=1 // pred_check_branch
      %108 = sbr.rel (0) target = $region69
    $region68: #{output_block_forward.1} parent=1 // pred_region
      %109 = dma.done [#allocation5], 16
    $region69: #{output_block_forward.1} parent=1 // pred_fallthru
      _
    // Predicated region
    $region70: #{output_block_forward.1} parent=1 // pred_check
      _
    $region71: #{output_block_forward.1} parent=1 // pred_check_branch
      %111 = sbr.rel (0) target = $region73
    $region72: #{output_block_forward.1} parent=1 // pred_region
      %112 = dma.done [#allocation5], 16
    $region73: #{output_block_forward.1} parent=1 // pred_fallthru
      _
    // Predicated region
    $region74: #{output_block_forward.1} parent=1 // pred_check
      _
    $region75: #{output_block_forward.1} parent=1 // pred_check_branch
      %114 = sbr.rel (0) target = $region77
    $region76: #{output_block_forward.1} parent=1 // pred_region
      %115 = dma.done [#allocation8], 512
    $region77: #{output_block_forward.1} parent=1 // pred_fallthru
      _
    // Predicated region
    $region78: #{output_block_forward.1} parent=1 // pred_check
      _
    $region79: #{output_block_forward.1} parent=1 // pred_check_branch
      %117 = sbr.rel (0) target = $region81
    $region80: #{output_block_forward.1} parent=1 // pred_region
      %118 = dma.done [#allocation8], 16
    $region81: #{output_block_forward.1} parent=1 // pred_fallthru
      _
    // Predicated region
    $region82: #{output_block_forward.1} parent=1 // pred_check
      _
    $region83: #{output_block_forward.1} parent=1 // pred_check_branch
      %120 = sbr.rel (0) target = $region85
    $region84: #{output_block_forward.1} parent=1 // pred_region
      %121 = dma.done [#allocation11], 16
    $region85: #{output_block_forward.1} parent=1 // pred_fallthru
      _
    %v122 = vld [vmem:[%s0] sm:$0xff]
    %v123 = vld [vmem:[%s0 + $0x8] sm:$0xff]
    %v124 = vld [vmem:[%s0 + $0x10] sm:$0xff]
    %v125 = vld [vmem:[%s0 + $0x18] sm:$0xff]
    %v126 = vld [vmem:[%s0 + $0x20] sm:$0xff]
    %v127 = vld [vmem:[%s0 + $0x28] sm:$0xff]
    %v128 = vld [vmem:[%s0 + $0x30] sm:$0xff]
    %v129 = vld [vmem:[%s0 + $0x38] sm:$0xff]
    %v130 = vld [vmem:[%s0 + $0x40] sm:$0xff]
    %v131 = vld [vmem:[%s0 + $0x48] sm:$0xff]
    %v132 = vld [vmem:[%s0 + $0x50] sm:$0xff]
    %v133 = vld [vmem:[%s0 + $0x58] sm:$0xff]
    %v134 = vld [vmem:[%s0 + $0x60] sm:$0xff]
    %v135 = vld [vmem:[%s0 + $0x68] sm:$0xff]
    %v136 = vld [vmem:[%s0 + $0x70] sm:$0xff]
    %v137 = vld [vmem:[%s0 + $0x78] sm:$0xff]
    %v138 = vld [vmem:[%s0 + $0x80] sm:$0xff]
    %v139 = vld [vmem:[%s0 + $0x88] sm:$0xff]
    %v140 = vld [vmem:[%s0 + $0x90] sm:$0xff]
    %v141 = vld [vmem:[%s0 + $0x98] sm:$0xff]
    %v142 = vld [vmem:[%s0 + $0xa0] sm:$0xff]
    %v143 = vld [vmem:[%s0 + $0xa8] sm:$0xff]
    %v144 = vld [vmem:[%s0 + $0xb0] sm:$0xff]
    %v145 = vld [vmem:[%s0 + $0xb8] sm:$0xff]
    %v146 = vld [vmem:[%s0 + $0xc0] sm:$0xff]
    %v147 = vld [vmem:[%s0 + $0xc8] sm:$0xff]
    %v148 = vld [vmem:[%s0 + $0xd0] sm:$0xff]
    %v149 = vld [vmem:[%s0 + $0xd8] sm:$0xff]
    %v150 = vld [vmem:[%s0 + $0xe0] sm:$0xff]
    %v151 = vld [vmem:[%s0 + $0xe8] sm:$0xff]
    %v152 = vld [vmem:[%s0 + $0xf0] sm:$0xff]
    %v153 = vld [vmem:[%s0 + $0xf8] sm:$0xff]
    %v154 = vld [vmem:[%s1] sm:$0xff]
    %v155 = vld [vmem:[%s1 + $0x8] sm:$0xff]
    %v156 = vld [vmem:[%s1 + $0x10] sm:$0xff]
    %v157 = vld [vmem:[%s1 + $0x18] sm:$0xff]
    %v158 = vld [vmem:[%s2] sm:$0x1]
    %v160 = vlaneseq
    %v161 = vshrl.u32 %v160, 7
    %v162 = vsub.s32 0, %v161
    %v163 = vrot.slane %v158, %v162
    %vm165 = vcmask 261120
    %v167 = vsel %vm165, %v122, 0
    %v170 = vsel %vm165, %v123, 0
    %v173 = vsel %vm165, %v124, 0
    %v176 = vsel %vm165, %v125, 0
    %v179 = vsel %vm165, %v126, 0
    %v182 = vsel %vm165, %v127, 0
    %v185 = vsel %vm165, %v128, 0
    %v188 = vsel %vm165, %v129, 0
    %v191 = vsel %vm165, %v130, 0
    %v194 = vsel %vm165, %v131, 0
    %v197 = vsel %vm165, %v132, 0
    %v200 = vsel %vm165, %v133, 0
    %v203 = vsel %vm165, %v134, 0
    %v206 = vsel %vm165, %v135, 0
    %v209 = vsel %vm165, %v136, 0
    %v212 = vsel %vm165, %v137, 0
    %v215 = vsel %vm165, %v138, 0
    %v218 = vsel %vm165, %v139, 0
    %v221 = vsel %vm165, %v140, 0
    %v224 = vsel %vm165, %v141, 0
    %v227 = vsel %vm165, %v142, 0
    %v230 = vsel %vm165, %v143, 0
    %v233 = vsel %vm165, %v144, 0
    %v236 = vsel %vm165, %v145, 0
    %v239 = vsel %vm165, %v146, 0
    %v242 = vsel %vm165, %v147, 0
    %v245 = vsel %vm165, %v148, 0
    %v248 = vsel %vm165, %v149, 0
    %v251 = vsel %vm165, %v150, 0
    %v254 = vsel %vm165, %v151, 0
    %v257 = vsel %vm165, %v152, 0
    %v260 = vsel %vm165, %v153, 0
    %262 = vmatprep.subr.mxu0 0.0
    %263 = vmatpush1.msra.mxu0 %v154
    %264 = vmatprep.subr.mxu0 0.0
    %265 = vmatpush1.msra.mxu0 %v155
    %266 = vmatprep.subr.mxu0 0.0
    %267 = vmatpush1.msra.mxu0 %v156
    %268 = vmatprep.subr.mxu0 0.0
    %269 = vmatpush1.msra.mxu0 %v157
    %270 = vmatprep.subr.mxu0 0.0
    %271 = vmatpush1.msra.mxu0 0.0
    %272 = vmatprep.subr.mxu0 0.0
    %273 = vmatpush1.msra.mxu0 0.0
    %274 = vmatprep.subr.mxu0 0.0
    %275 = vmatpush1.msra.mxu0 0.0
    %276 = vmatprep.subr.mxu0 0.0
    %277 = vmatpush1.msra.mxu0 0.0
    %278 = vmatprep.subr.mxu0 0.0
    %279 = vmatpush1.msra.mxu0 0.0
    %280 = vmatprep.subr.mxu0 0.0
    %281 = vmatpush1.msra.mxu0 0.0
    %282 = vmatprep.subr.mxu0 0.0
    %283 = vmatpush1.msra.mxu0 0.0
    %284 = vmatprep.subr.mxu0 0.0
    %285 = vmatpush1.msra.mxu0 0.0
    %286 = vmatprep.subr.mxu0 0.0
    %287 = vmatpush1.msra.mxu0 0.0
    %288 = vmatprep.subr.mxu0 0.0
    %289 = vmatpush1.msra.mxu0 0.0
    %290 = vmatprep.subr.mxu0 0.0
    %291 = vmatpush1.msra.mxu0 0.0
    %292 = vmatprep.subr.mxu0 0.0
    %293 = vmatpush1.msra.mxu0 0.0
    %294 = vmatprep.subr.mxu0 0.0
    %295 = vmatpush1.msra.mxu0 0.0
    %296 = vmatprep.subr.mxu0 0.0
    %297 = vmatpush1.msra.mxu0 0.0
    %298 = vmatprep.subr.mxu0 0.0
    %299 = vmatpush1.msra.mxu0 0.0
    %300 = vmatprep.subr.mxu0 0.0
    %301 = vmatpush1.msra.mxu0 0.0
    %302 = vmatprep.subr.mxu0 0.0
    %303 = vmatpush1.msra.mxu0 0.0
    %304 = vmatprep.subr.mxu0 0.0
    %305 = vmatpush1.msra.mxu0 0.0
    %306 = vmatprep.subr.mxu0 0.0
    %307 = vmatpush1.msra.mxu0 0.0
    %308 = vmatprep.subr.mxu0 0.0
    %309 = vmatpush1.msra.mxu0 0.0
    %310 = vmatprep.subr.mxu0 0.0
    %311 = vmatpush1.msra.mxu0 0.0
    %312 = vmatprep.subr.mxu0 0.0
    %313 = vmatpush1.msra.mxu0 0.0
    %314 = vmatprep.subr.mxu0 0.0
    %315 = vmatpush1.msra.mxu0 0.0
    %316 = vmatprep.subr.mxu0 0.0
    %317 = vmatpush1.msra.mxu0 0.0
    %318 = vmatprep.subr.mxu0 0.0
    %319 = vmatpush1.msra.mxu0 0.0
    %320 = vmatprep.subr.mxu0 0.0
    %321 = vmatpush1.msra.mxu0 0.0
    %322 = vmatprep.subr.mxu0 0.0
    %323 = vmatpush1.msra.mxu0 0.0
    %324 = vmatprep.subr.mxu0 0.0
    %325 = vmatpush1.msra.mxu0 0.0
    %326 = vmatprep.mubr.f32.mxu0 0.0
    %327 = vmatmul.mubr.f32.gmra.mrb[0].mxu0 %v167
    %v328 = vpop.f32.mrb[0].mxu0
    %v329 = vadd.f32 %v163, %v328
    %v330 = vpop.f32.mrb[0].mxu0
    %331 = vmatprep.mubr.f32.mxu0 0.0
    %332 = vmatmul.mubr.f32.gmra.mrb[0].mxu0 %v170
    %v333 = vpop.f32.mrb[0].mxu0
    %v334 = vadd.f32 %v163, %v333
    %v335 = vpop.f32.mrb[0].mxu0
    %336 = vmatprep.mubr.f32.mxu0 0.0
    %337 = vmatmul.mubr.f32.gmra.mrb[0].mxu0 %v173
    %v338 = vpop.f32.mrb[0].mxu0
    %v339 = vadd.f32 %v163, %v338
    %v340 = vpop.f32.mrb[0].mxu0
    %341 = vmatprep.mubr.f32.mxu0 0.0
    %342 = vmatmul.mubr.f32.gmra.mrb[0].mxu0 %v176
    %v343 = vpop.f32.mrb[0].mxu0
    %v344 = vadd.f32 %v163, %v343
    %v345 = vpop.f32.mrb[0].mxu0
    %346 = vmatprep.mubr.f32.mxu0 0.0
    %347 = vmatmul.mubr.f32.gmra.mrb[0].mxu0 %v179
    %v348 = vpop.f32.mrb[0].mxu0
    %v349 = vadd.f32 %v163, %v348
    %v350 = vpop.f32.mrb[0].mxu0
    %351 = vmatprep.mubr.f32.mxu0 0.0
    %352 = vmatmul.mubr.f32.gmra.mrb[0].mxu0 %v182
    %v353 = vpop.f32.mrb[0].mxu0
    %v354 = vadd.f32 %v163, %v353
    %v355 = vpop.f32.mrb[0].mxu0
    %356 = vmatprep.mubr.f32.mxu0 0.0
    %357 = vmatmul.mubr.f32.gmra.mrb[0].mxu0 %v185
    %v358 = vpop.f32.mrb[0].mxu0
    %v359 = vadd.f32 %v163, %v358
    %v360 = vpop.f32.mrb[0].mxu0
    %361 = vmatprep.mubr.f32.mxu0 0.0
    %362 = vmatmul.mubr.f32.gmra.mrb[0].mxu0 %v188
    %v363 = vpop.f32.mrb[0].mxu0
    %v364 = vadd.f32 %v163, %v363
    %v365 = vpop.f32.mrb[0].mxu0
    %366 = vmatprep.mubr.f32.mxu0 0.0
    %367 = vmatmul.mubr.f32.gmra.mrb[0].mxu0 %v191
    %v368 = vpop.f32.mrb[0].mxu0
    %v369 = vadd.f32 %v163, %v368
    %v370 = vpop.f32.mrb[0].mxu0
    %371 = vmatprep.mubr.f32.mxu0 0.0
    %372 = vmatmul.mubr.f32.gmra.mrb[0].mxu0 %v194
    %v373 = vpop.f32.mrb[0].mxu0
    %v374 = vadd.f32 %v163, %v373
    %v375 = vpop.f32.mrb[0].mxu0
    %376 = vmatprep.mubr.f32.mxu0 0.0
    %377 = vmatmul.mubr.f32.gmra.mrb[0].mxu0 %v197
    %v378 = vpop.f32.mrb[0].mxu0
    %v379 = vadd.f32 %v163, %v378
    %v380 = vpop.f32.mrb[0].mxu0
    %381 = vmatprep.mubr.f32.mxu0 0.0
    %382 = vmatmul.mubr.f32.gmra.mrb[0].mxu0 %v200
    %v383 = vpop.f32.mrb[0].mxu0
    %v384 = vadd.f32 %v163, %v383
    %v385 = vpop.f32.mrb[0].mxu0
    %386 = vmatprep.mubr.f32.mxu0 0.0
    %387 = vmatmul.mubr.f32.gmra.mrb[0].mxu0 %v203
    %v388 = vpop.f32.mrb[0].mxu0
    %v389 = vadd.f32 %v163, %v388
    %v390 = vpop.f32.mrb[0].mxu0
    %391 = vmatprep.mubr.f32.mxu0 0.0
    %392 = vmatmul.mubr.f32.gmra.mrb[0].mxu0 %v206
    %v393 = vpop.f32.mrb[0].mxu0
    %v394 = vadd.f32 %v163, %v393
    %v395 = vpop.f32.mrb[0].mxu0
    %396 = vmatprep.mubr.f32.mxu0 0.0
    %397 = vmatmul.mubr.f32.gmra.mrb[0].mxu0 %v209
    %v398 = vpop.f32.mrb[0].mxu0
    %v399 = vadd.f32 %v163, %v398
    %v400 = vpop.f32.mrb[0].mxu0
    %401 = vmatprep.mubr.f32.mxu0 0.0
    %402 = vmatmul.mubr.f32.gmra.mrb[0].mxu0 %v212
    %v403 = vpop.f32.mrb[0].mxu0
    %v404 = vadd.f32 %v163, %v403
    %v405 = vpop.f32.mrb[0].mxu0
    %406 = vmatprep.mubr.f32.mxu0 0.0
    %407 = vmatmul.mubr.f32.gmra.mrb[0].mxu0 %v215
    %v408 = vpop.f32.mrb[0].mxu0
    %v409 = vadd.f32 %v163, %v408
    %v410 = vpop.f32.mrb[0].mxu0
    %411 = vmatprep.mubr.f32.mxu0 0.0
    %412 = vmatmul.mubr.f32.gmra.mrb[0].mxu0 %v218
    %v413 = vpop.f32.mrb[0].mxu0
    %v414 = vadd.f32 %v163, %v413
    %v415 = vpop.f32.mrb[0].mxu0
    %416 = vmatprep.mubr.f32.mxu0 0.0
    %417 = vmatmul.mubr.f32.gmra.mrb[0].mxu0 %v221
    %v418 = vpop.f32.mrb[0].mxu0
    %v419 = vadd.f32 %v163, %v418
    %v420 = vpop.f32.mrb[0].mxu0
    %421 = vmatprep.mubr.f32.mxu0 0.0
    %422 = vmatmul.mubr.f32.gmra.mrb[0].mxu0 %v224
    %v423 = vpop.f32.mrb[0].mxu0
    %v424 = vadd.f32 %v163, %v423
    %v425 = vpop.f32.mrb[0].mxu0
    %426 = vmatprep.mubr.f32.mxu0 0.0
    %427 = vmatmul.mubr.f32.gmra.mrb[0].mxu0 %v227
    %v428 = vpop.f32.mrb[0].mxu0
    %v429 = vadd.f32 %v163, %v428
    %v430 = vpop.f32.mrb[0].mxu0
    %431 = vmatprep.mubr.f32.mxu0 0.0
    %432 = vmatmul.mubr.f32.gmra.mrb[0].mxu0 %v230
    %v433 = vpop.f32.mrb[0].mxu0
    %v434 = vadd.f32 %v163, %v433
    %v435 = vpop.f32.mrb[0].mxu0
    %436 = vmatprep.mubr.f32.mxu0 0.0
    %437 = vmatmul.mubr.f32.gmra.mrb[0].mxu0 %v233
    %v438 = vpop.f32.mrb[0].mxu0
    %v439 = vadd.f32 %v163, %v438
    %v440 = vpop.f32.mrb[0].mxu0
    %441 = vmatprep.mubr.f32.mxu0 0.0
    %442 = vmatmul.mubr.f32.gmra.mrb[0].mxu0 %v236
    %v443 = vpop.f32.mrb[0].mxu0
    %v444 = vadd.f32 %v163, %v443
    %v445 = vpop.f32.mrb[0].mxu0
    %446 = vmatprep.mubr.f32.mxu0 0.0
    %447 = vmatmul.mubr.f32.gmra.mrb[0].mxu0 %v239
    %v448 = vpop.f32.mrb[0].mxu0
    %v449 = vadd.f32 %v163, %v448
    %v450 = vpop.f32.mrb[0].mxu0
    %451 = vmatprep.mubr.f32.mxu0 0.0
    %452 = vmatmul.mubr.f32.gmra.mrb[0].mxu0 %v242
    %v453 = vpop.f32.mrb[0].mxu0
    %v454 = vadd.f32 %v163, %v453
    %v455 = vpop.f32.mrb[0].mxu0
    %456 = vmatprep.mubr.f32.mxu0 0.0
    %457 = vmatmul.mubr.f32.gmra.mrb[0].mxu0 %v245
    %v458 = vpop.f32.mrb[0].mxu0
    %v459 = vadd.f32 %v163, %v458
    %v460 = vpop.f32.mrb[0].mxu0
    %461 = vmatprep.mubr.f32.mxu0 0.0
    %462 = vmatmul.mubr.f32.gmra.mrb[0].mxu0 %v248
    %v463 = vpop.f32.mrb[0].mxu0
    %v464 = vadd.f32 %v163, %v463
    %v465 = vpop.f32.mrb[0].mxu0
    %466 = vmatprep.mubr.f32.mxu0 0.0
    %467 = vmatmul.mubr.f32.gmra.mrb[0].mxu0 %v251
    %v468 = vpop.f32.mrb[0].mxu0
    %v469 = vadd.f32 %v163, %v468
    %v470 = vpop.f32.mrb[0].mxu0
    %471 = vmatprep.mubr.f32.mxu0 0.0
    %472 = vmatmul.mubr.f32.gmra.mrb[0].mxu0 %v254
    %v473 = vpop.f32.mrb[0].mxu0
    %v474 = vadd.f32 %v163, %v473
    %v475 = vpop.f32.mrb[0].mxu0
    %476 = vmatprep.mubr.f32.mxu0 0.0
    %477 = vmatmul.mubr.f32.gmra.mrb[0].mxu0 %v257
    %v478 = vpop.f32.mrb[0].mxu0
    %v479 = vadd.f32 %v163, %v478
    %v480 = vpop.f32.mrb[0].mxu0
    %481 = vmatprep.mubr.f32.mxu0 0.0
    %482 = vmatmul.mubr.f32.gmra.mrb[0].mxu0 %v260
    %v483 = vpop.f32.mrb[0].mxu0
    %v484 = vadd.f32 %v163, %v483
    %v485 = vpop.f32.mrb[0].mxu0
    %486 = vdwg.mxu0
    %v487 = vmax.f32 %v329, 0.0
    %v488 = vmax.f32 %v334, 0.0
    %v489 = vmax.f32 %v339, 0.0
    %v490 = vmax.f32 %v344, 0.0
    %v491 = vmax.f32 %v349, 0.0
    %v492 = vmax.f32 %v354, 0.0
    %v493 = vmax.f32 %v359, 0.0
    %v494 = vmax.f32 %v364, 0.0
    %v495 = vmax.f32 %v369, 0.0
    %v496 = vmax.f32 %v374, 0.0
    %v497 = vmax.f32 %v379, 0.0
    %v498 = vmax.f32 %v384, 0.0
    %v499 = vmax.f32 %v389, 0.0
    %v500 = vmax.f32 %v394, 0.0
    %v501 = vmax.f32 %v399, 0.0
    %v502 = vmax.f32 %v404, 0.0
    %v503 = vmax.f32 %v409, 0.0
    %v504 = vmax.f32 %v414, 0.0
    %v505 = vmax.f32 %v419, 0.0
    %v506 = vmax.f32 %v424, 0.0
    %v507 = vmax.f32 %v429, 0.0
    %v508 = vmax.f32 %v434, 0.0
    %v509 = vmax.f32 %v439, 0.0
    %v510 = vmax.f32 %v444, 0.0
    %v511 = vmax.f32 %v449, 0.0
    %v512 = vmax.f32 %v454, 0.0
    %v513 = vmax.f32 %v459, 0.0
    %v514 = vmax.f32 %v464, 0.0
    %v515 = vmax.f32 %v469, 0.0
    %v516 = vmax.f32 %v474, 0.0
    %v517 = vmax.f32 %v479, 0.0
    %v518 = vmax.f32 %v484, 0.0
    %v519 = vld [vmem:[%s3] sm:$0xff]
    %v520 = vld [vmem:[%s3 + $0x8] sm:$0xff]
    %v521 = vld [vmem:[%s3 + $0x10] sm:$0xff]
    %v522 = vld [vmem:[%s3 + $0x18] sm:$0xff]
    %v524 = vsel %vm165, %v487, 0
    %v527 = vsel %vm165, %v488, 0
    %v530 = vsel %vm165, %v489, 0
    %v533 = vsel %vm165, %v490, 0
    %v536 = vsel %vm165, %v491, 0
    %v539 = vsel %vm165, %v492, 0
    %v542 = vsel %vm165, %v493, 0
    %v545 = vsel %vm165, %v494, 0
    %v548 = vsel %vm165, %v495, 0
    %v551 = vsel %vm165, %v496, 0
    %v554 = vsel %vm165, %v497, 0
    %v557 = vsel %vm165, %v498, 0
    %v560 = vsel %vm165, %v499, 0
    %v563 = vsel %vm165, %v500, 0
    %v566 = vsel %vm165, %v501, 0
    %v569 = vsel %vm165, %v502, 0
    %v572 = vsel %vm165, %v503, 0
    %v575 = vsel %vm165, %v504, 0
    %v578 = vsel %vm165, %v505, 0
    %v581 = vsel %vm165, %v506, 0
    %v584 = vsel %vm165, %v507, 0
    %v587 = vsel %vm165, %v508, 0
    %v590 = vsel %vm165, %v509, 0
    %v593 = vsel %vm165, %v510, 0
    %v596 = vsel %vm165, %v511, 0
    %v599 = vsel %vm165, %v512, 0
    %v602 = vsel %vm165, %v513, 0
    %v605 = vsel %vm165, %v514, 0
    %v608 = vsel %vm165, %v515, 0
    %v611 = vsel %vm165, %v516, 0
    %v614 = vsel %vm165, %v517, 0
    %v617 = vsel %vm165, %v518, 0
    %619 = vmatprep.subr.mxu0 0.0
    %620 = vmatpush1.msra.mxu0 %v519
    %621 = vmatprep.subr.mxu0 0.0
    %622 = vmatpush1.msra.mxu0 %v520
    %623 = vmatprep.subr.mxu0 0.0
    %624 = vmatpush1.msra.mxu0 %v521
    %625 = vmatprep.subr.mxu0 0.0
    %626 = vmatpush1.msra.mxu0 %v522
    %627 = vmatprep.subr.mxu0 0.0
    %628 = vmatpush1.msra.mxu0 0.0
    %629 = vmatprep.subr.mxu0 0.0
    %630 = vmatpush1.msra.mxu0 0.0
    %631 = vmatprep.subr.mxu0 0.0
    %632 = vmatpush1.msra.mxu0 0.0
    %633 = vmatprep.subr.mxu0 0.0
    %634 = vmatpush1.msra.mxu0 0.0
    %635 = vmatprep.subr.mxu0 0.0
    %636 = vmatpush1.msra.mxu0 0.0
    %637 = vmatprep.subr.mxu0 0.0
    %638 = vmatpush1.msra.mxu0 0.0
    %639 = vmatprep.subr.mxu0 0.0
    %640 = vmatpush1.msra.mxu0 0.0
    %641 = vmatprep.subr.mxu0 0.0
    %642 = vmatpush1.msra.mxu0 0.0
    %643 = vmatprep.subr.mxu0 0.0
    %644 = vmatpush1.msra.mxu0 0.0
    %645 = vmatprep.subr.mxu0 0.0
    %646 = vmatpush1.msra.mxu0 0.0
    %647 = vmatprep.subr.mxu0 0.0
    %648 = vmatpush1.msra.mxu0 0.0
    %649 = vmatprep.subr.mxu0 0.0
    %650 = vmatpush1.msra.mxu0 0.0
    %651 = vmatprep.subr.mxu0 0.0
    %652 = vmatpush1.msra.mxu0 0.0
    %653 = vmatprep.subr.mxu0 0.0
    %654 = vmatpush1.msra.mxu0 0.0
    %655 = vmatprep.subr.mxu0 0.0
    %656 = vmatpush1.msra.mxu0 0.0
    %657 = vmatprep.subr.mxu0 0.0
    %658 = vmatpush1.msra.mxu0 0.0
    %659 = vmatprep.subr.mxu0 0.0
    %660 = vmatpush1.msra.mxu0 0.0
    %661 = vmatprep.subr.mxu0 0.0
    %662 = vmatpush1.msra.mxu0 0.0
    %663 = vmatprep.subr.mxu0 0.0
    %664 = vmatpush1.msra.mxu0 0.0
    %665 = vmatprep.subr.mxu0 0.0
    %666 = vmatpush1.msra.mxu0 0.0
    %667 = vmatprep.subr.mxu0 0.0
    %668 = vmatpush1.msra.mxu0 0.0
    %669 = vmatprep.subr.mxu0 0.0
    %670 = vmatpush1.msra.mxu0 0.0
    %671 = vmatprep.subr.mxu0 0.0
    %672 = vmatpush1.msra.mxu0 0.0
    %673 = vmatprep.subr.mxu0 0.0
    %674 = vmatpush1.msra.mxu0 0.0
    %675 = vmatprep.subr.mxu0 0.0
    %676 = vmatpush1.msra.mxu0 0.0
    %677 = vmatprep.subr.mxu0 0.0
    %678 = vmatpush1.msra.mxu0 0.0
    %679 = vmatprep.subr.mxu0 0.0
    %680 = vmatpush1.msra.mxu0 0.0
    %681 = vmatprep.subr.mxu0 0.0
    %682 = vmatpush1.msra.mxu0 0.0
    %683 = vmatprep.mubr.f32.mxu0 0.0
    %684 = vmatmul.mubr.f32.gmra.mrb[0].mxu0 %v524
    %v685 = vpop.f32.mrb[0].mxu0
    %v686 = vadd.f32 0.0, %v685
    %v687 = vpop.f32.mrb[0].mxu0
    %688 = vmatprep.mubr.f32.mxu0 0.0
    %689 = vmatmul.mubr.f32.gmra.mrb[0].mxu0 %v527
    %v690 = vpop.f32.mrb[0].mxu0
    %v691 = vadd.f32 0.0, %v690
    %v692 = vpop.f32.mrb[0].mxu0
    %693 = vmatprep.mubr.f32.mxu0 0.0
    %694 = vmatmul.mubr.f32.gmra.mrb[0].mxu0 %v530
    %v695 = vpop.f32.mrb[0].mxu0
    %v696 = vadd.f32 0.0, %v695
    %v697 = vpop.f32.mrb[0].mxu0
    %698 = vmatprep.mubr.f32.mxu0 0.0
    %699 = vmatmul.mubr.f32.gmra.mrb[0].mxu0 %v533
    %v700 = vpop.f32.mrb[0].mxu0
    %v701 = vadd.f32 0.0, %v700
    %v702 = vpop.f32.mrb[0].mxu0
    %703 = vmatprep.mubr.f32.mxu0 0.0
    %704 = vmatmul.mubr.f32.gmra.mrb[0].mxu0 %v536
    %v705 = vpop.f32.mrb[0].mxu0
    %v706 = vadd.f32 0.0, %v705
    %v707 = vpop.f32.mrb[0].mxu0
    %708 = vmatprep.mubr.f32.mxu0 0.0
    %709 = vmatmul.mubr.f32.gmra.mrb[0].mxu0 %v539
    %v710 = vpop.f32.mrb[0].mxu0
    %v711 = vadd.f32 0.0, %v710
    %v712 = vpop.f32.mrb[0].mxu0
    %713 = vmatprep.mubr.f32.mxu0 0.0
    %714 = vmatmul.mubr.f32.gmra.mrb[0].mxu0 %v542
    %v715 = vpop.f32.mrb[0].mxu0
    %v716 = vadd.f32 0.0, %v715
    %v717 = vpop.f32.mrb[0].mxu0
    %718 = vmatprep.mubr.f32.mxu0 0.0
    %719 = vmatmul.mubr.f32.gmra.mrb[0].mxu0 %v545
    %v720 = vpop.f32.mrb[0].mxu0
    %v721 = vadd.f32 0.0, %v720
    %v722 = vpop.f32.mrb[0].mxu0
    %723 = vmatprep.mubr.f32.mxu0 0.0
    %724 = vmatmul.mubr.f32.gmra.mrb[0].mxu0 %v548
    %v725 = vpop.f32.mrb[0].mxu0
    %v726 = vadd.f32 0.0, %v725
    %v727 = vpop.f32.mrb[0].mxu0
    %728 = vmatprep.mubr.f32.mxu0 0.0
    %729 = vmatmul.mubr.f32.gmra.mrb[0].mxu0 %v551
    %v730 = vpop.f32.mrb[0].mxu0
    %v731 = vadd.f32 0.0, %v730
    %v732 = vpop.f32.mrb[0].mxu0
    %733 = vmatprep.mubr.f32.mxu0 0.0
    %734 = vmatmul.mubr.f32.gmra.mrb[0].mxu0 %v554
    %v735 = vpop.f32.mrb[0].mxu0
    %v736 = vadd.f32 0.0, %v735
    %v737 = vpop.f32.mrb[0].mxu0
    %738 = vmatprep.mubr.f32.mxu0 0.0
    %739 = vmatmul.mubr.f32.gmra.mrb[0].mxu0 %v557
    %v740 = vpop.f32.mrb[0].mxu0
    %v741 = vadd.f32 0.0, %v740
    %v742 = vpop.f32.mrb[0].mxu0
    %743 = vmatprep.mubr.f32.mxu0 0.0
    %744 = vmatmul.mubr.f32.gmra.mrb[0].mxu0 %v560
    %v745 = vpop.f32.mrb[0].mxu0
    %v746 = vadd.f32 0.0, %v745
    %v747 = vpop.f32.mrb[0].mxu0
    %748 = vmatprep.mubr.f32.mxu0 0.0
    %749 = vmatmul.mubr.f32.gmra.mrb[0].mxu0 %v563
    %v750 = vpop.f32.mrb[0].mxu0
    %v751 = vadd.f32 0.0, %v750
    %v752 = vpop.f32.mrb[0].mxu0
    %753 = vmatprep.mubr.f32.mxu0 0.0
    %754 = vmatmul.mubr.f32.gmra.mrb[0].mxu0 %v566
    %v755 = vpop.f32.mrb[0].mxu0
    %v756 = vadd.f32 0.0, %v755
    %v757 = vpop.f32.mrb[0].mxu0
    %758 = vmatprep.mubr.f32.mxu0 0.0
    %759 = vmatmul.mubr.f32.gmra.mrb[0].mxu0 %v569
    %v760 = vpop.f32.mrb[0].mxu0
    %v761 = vadd.f32 0.0, %v760
    %v762 = vpop.f32.mrb[0].mxu0
    %763 = vmatprep.mubr.f32.mxu0 0.0
    %764 = vmatmul.mubr.f32.gmra.mrb[0].mxu0 %v572
    %v765 = vpop.f32.mrb[0].mxu0
    %v766 = vadd.f32 0.0, %v765
    %v767 = vpop.f32.mrb[0].mxu0
    %768 = vmatprep.mubr.f32.mxu0 0.0
    %769 = vmatmul.mubr.f32.gmra.mrb[0].mxu0 %v575
    %v770 = vpop.f32.mrb[0].mxu0
    %v771 = vadd.f32 0.0, %v770
    %v772 = vpop.f32.mrb[0].mxu0
    %773 = vmatprep.mubr.f32.mxu0 0.0
    %774 = vmatmul.mubr.f32.gmra.mrb[0].mxu0 %v578
    %v775 = vpop.f32.mrb[0].mxu0
    %v776 = vadd.f32 0.0, %v775
    %v777 = vpop.f32.mrb[0].mxu0
    %778 = vmatprep.mubr.f32.mxu0 0.0
    %779 = vmatmul.mubr.f32.gmra.mrb[0].mxu0 %v581
    %v780 = vpop.f32.mrb[0].mxu0
    %v781 = vadd.f32 0.0, %v780
    %v782 = vpop.f32.mrb[0].mxu0
    %783 = vmatprep.mubr.f32.mxu0 0.0
    %784 = vmatmul.mubr.f32.gmra.mrb[0].mxu0 %v584
    %v785 = vpop.f32.mrb[0].mxu0
    %v786 = vadd.f32 0.0, %v785
    %v787 = vpop.f32.mrb[0].mxu0
    %788 = vmatprep.mubr.f32.mxu0 0.0
    %789 = vmatmul.mubr.f32.gmra.mrb[0].mxu0 %v587
    %v790 = vpop.f32.mrb[0].mxu0
    %v791 = vadd.f32 0.0, %v790
    %v792 = vpop.f32.mrb[0].mxu0
    %793 = vmatprep.mubr.f32.mxu0 0.0
    %794 = vmatmul.mubr.f32.gmra.mrb[0].mxu0 %v590
    %v795 = vpop.f32.mrb[0].mxu0
    %v796 = vadd.f32 0.0, %v795
    %v797 = vpop.f32.mrb[0].mxu0
    %798 = vmatprep.mubr.f32.mxu0 0.0
    %799 = vmatmul.mubr.f32.gmra.mrb[0].mxu0 %v593
    %v800 = vpop.f32.mrb[0].mxu0
    %v801 = vadd.f32 0.0, %v800
    %v802 = vpop.f32.mrb[0].mxu0
    %803 = vmatprep.mubr.f32.mxu0 0.0
    %804 = vmatmul.mubr.f32.gmra.mrb[0].mxu0 %v596
    %v805 = vpop.f32.mrb[0].mxu0
    %v806 = vadd.f32 0.0, %v805
    %v807 = vpop.f32.mrb[0].mxu0
    %808 = vmatprep.mubr.f32.mxu0 0.0
    %809 = vmatmul.mubr.f32.gmra.mrb[0].mxu0 %v599
    %v810 = vpop.f32.mrb[0].mxu0
    %v811 = vadd.f32 0.0, %v810
    %v812 = vpop.f32.mrb[0].mxu0
    %813 = vmatprep.mubr.f32.mxu0 0.0
    %814 = vmatmul.mubr.f32.gmra.mrb[0].mxu0 %v602
    %v815 = vpop.f32.mrb[0].mxu0
    %v816 = vadd.f32 0.0, %v815
    %v817 = vpop.f32.mrb[0].mxu0
    %818 = vmatprep.mubr.f32.mxu0 0.0
    %819 = vmatmul.mubr.f32.gmra.mrb[0].mxu0 %v605
    %v820 = vpop.f32.mrb[0].mxu0
    %v821 = vadd.f32 0.0, %v820
    %v822 = vpop.f32.mrb[0].mxu0
    %823 = vmatprep.mubr.f32.mxu0 0.0
    %824 = vmatmul.mubr.f32.gmra.mrb[0].mxu0 %v608
    %v825 = vpop.f32.mrb[0].mxu0
    %v826 = vadd.f32 0.0, %v825
    %v827 = vpop.f32.mrb[0].mxu0
    %828 = vmatprep.mubr.f32.mxu0 0.0
    %829 = vmatmul.mubr.f32.gmra.mrb[0].mxu0 %v611
    %v830 = vpop.f32.mrb[0].mxu0
    %v831 = vadd.f32 0.0, %v830
    %v832 = vpop.f32.mrb[0].mxu0
    %833 = vmatprep.mubr.f32.mxu0 0.0
    %834 = vmatmul.mubr.f32.gmra.mrb[0].mxu0 %v614
    %v835 = vpop.f32.mrb[0].mxu0
    %v836 = vadd.f32 0.0, %v835
    %v837 = vpop.f32.mrb[0].mxu0
    %838 = vmatprep.mubr.f32.mxu0 0.0
    %839 = vmatmul.mubr.f32.gmra.mrb[0].mxu0 %v617
    %v840 = vpop.f32.mrb[0].mxu0
    %v841 = vadd.f32 0.0, %v840
    %v842 = vpop.f32.mrb[0].mxu0
    %843 = vdwg.mxu0
    %v844 = vadd.f32 %v122, %v686
    %v845 = vadd.f32 %v123, %v691
    %v846 = vadd.f32 %v124, %v696
    %v847 = vadd.f32 %v125, %v701
    %v848 = vadd.f32 %v126, %v706
    %v849 = vadd.f32 %v127, %v711
    %v850 = vadd.f32 %v128, %v716
    %v851 = vadd.f32 %v129, %v721
    %v852 = vadd.f32 %v130, %v726
    %v853 = vadd.f32 %v131, %v731
    %v854 = vadd.f32 %v132, %v736
    %v855 = vadd.f32 %v133, %v741
    %v856 = vadd.f32 %v134, %v746
    %v857 = vadd.f32 %v135, %v751
    %v858 = vadd.f32 %v136, %v756
    %v859 = vadd.f32 %v137, %v761
    %v860 = vadd.f32 %v138, %v766
    %v861 = vadd.f32 %v139, %v771
    %v862 = vadd.f32 %v140, %v776
    %v863 = vadd.f32 %v141, %v781
    %v864 = vadd.f32 %v142, %v786
    %v865 = vadd.f32 %v143, %v791
    %v866 = vadd.f32 %v144, %v796
    %v867 = vadd.f32 %v145, %v801
    %v868 = vadd.f32 %v146, %v806
    %v869 = vadd.f32 %v147, %v811
    %v870 = vadd.f32 %v148, %v816
    %v871 = vadd.f32 %v149, %v821
    %v872 = vadd.f32 %v150, %v826
    %v873 = vadd.f32 %v151, %v831
    %v874 = vadd.f32 %v152, %v836
    %v875 = vadd.f32 %v153, %v841
    %v876 = vld [vmem:[%s4] sm:$0x1]
    %v878 = vlaneseq
    %v879 = vshrl.u32 %v878, 7
    %v880 = vsub.s32 0, %v879
    %v881 = vrot.slane %v876, %v880
    %v883 = vadd.f32 %v844, %v881
    %v884 = vadd.f32 %v845, %v881
    %v885 = vadd.f32 %v846, %v881
    %v886 = vadd.f32 %v847, %v881
    %v887 = vadd.f32 %v848, %v881
    %v888 = vadd.f32 %v849, %v881
    %v889 = vadd.f32 %v850, %v881
    %v890 = vadd.f32 %v851, %v881
    %v891 = vadd.f32 %v852, %v881
    %v892 = vadd.f32 %v853, %v881
    %v893 = vadd.f32 %v854, %v881
    %v894 = vadd.f32 %v855, %v881
    %v895 = vadd.f32 %v856, %v881
    %v896 = vadd.f32 %v857, %v881
    %v897 = vadd.f32 %v858, %v881
    %v898 = vadd.f32 %v859, %v881
    %v899 = vadd.f32 %v860, %v881
    %v900 = vadd.f32 %v861, %v881
    %v901 = vadd.f32 %v862, %v881
    %v902 = vadd.f32 %v863, %v881
    %v903 = vadd.f32 %v864, %v881
    %v904 = vadd.f32 %v865, %v881
    %v905 = vadd.f32 %v866, %v881
    %v906 = vadd.f32 %v867, %v881
    %v907 = vadd.f32 %v868, %v881
    %v908 = vadd.f32 %v869, %v881
    %v909 = vadd.f32 %v870, %v881
    %v910 = vadd.f32 %v871, %v881
    %v911 = vadd.f32 %v872, %v881
    %v912 = vadd.f32 %v873, %v881
    %v913 = vadd.f32 %v874, %v881
    %v914 = vadd.f32 %v875, %v881
    %v915 = vsel %vm165, %v883, 0.0
    %v916 = vsel %vm165, %v884, 0.0
    %v917 = vadd.f32 %v915, %v916
    %v918 = vsel %vm165, %v885, 0.0
    %v919 = vadd.f32 %v917, %v918
    %v920 = vsel %vm165, %v886, 0.0
    %v921 = vadd.f32 %v919, %v920
    %v922 = vsel %vm165, %v887, 0.0
    %v923 = vadd.f32 %v921, %v922
    %v924 = vsel %vm165, %v888, 0.0
    %v925 = vadd.f32 %v923, %v924
    %v926 = vsel %vm165, %v889, 0.0
    %v927 = vadd.f32 %v925, %v926
    %v928 = vsel %vm165, %v890, 0.0
    %v929 = vadd.f32 %v927, %v928
    %v930 = vsel %vm165, %v891, 0.0
    %v931 = vadd.f32 %v929, %v930
    %v932 = vsel %vm165, %v892, 0.0
    %v933 = vadd.f32 %v931, %v932
    %v934 = vsel %vm165, %v893, 0.0
    %v935 = vadd.f32 %v933, %v934
    %v936 = vsel %vm165, %v894, 0.0
    %v937 = vadd.f32 %v935, %v936
    %v938 = vsel %vm165, %v895, 0.0
    %v939 = vadd.f32 %v937, %v938
    %v940 = vsel %vm165, %v896, 0.0
    %v941 = vadd.f32 %v939, %v940
    %v942 = vsel %vm165, %v897, 0.0
    %v943 = vadd.f32 %v941, %v942
    %v944 = vsel %vm165, %v898, 0.0
    %v945 = vadd.f32 %v943, %v944
    %v946 = vsel %vm165, %v899, 0.0
    %v947 = vadd.f32 %v945, %v946
    %v948 = vsel %vm165, %v900, 0.0
    %v949 = vadd.f32 %v947, %v948
    %v950 = vsel %vm165, %v901, 0.0
    %v951 = vadd.f32 %v949, %v950
    %v952 = vsel %vm165, %v902, 0.0
    %v953 = vadd.f32 %v951, %v952
    %v954 = vsel %vm165, %v903, 0.0
    %v955 = vadd.f32 %v953, %v954
    %v956 = vsel %vm165, %v904, 0.0
    %v957 = vadd.f32 %v955, %v956
    %v958 = vsel %vm165, %v905, 0.0
    %v959 = vadd.f32 %v957, %v958
    %v960 = vsel %vm165, %v906, 0.0
    %v961 = vadd.f32 %v959, %v960
    %v962 = vsel %vm165, %v907, 0.0
    %v963 = vadd.f32 %v961, %v962
    %v964 = vsel %vm165, %v908, 0.0
    %v965 = vadd.f32 %v963, %v964
    %v966 = vsel %vm165, %v909, 0.0
    %v967 = vadd.f32 %v965, %v966
    %v968 = vsel %vm165, %v910, 0.0
    %v969 = vadd.f32 %v967, %v968
    %v970 = vsel %vm165, %v911, 0.0
    %v971 = vadd.f32 %v969, %v970
    %v972 = vsel %vm165, %v912, 0.0
    %v973 = vadd.f32 %v971, %v972
    %v974 = vsel %vm165, %v913, 0.0
    %v975 = vadd.f32 %v973, %v974
    %v976 = vsel %vm165, %v914, 0.0
    %v977 = vadd.f32 %v975, %v976
    %v978 = vrot.slane %v977, 4
    %v979 = vadd.f32 %v977, %v978
    %v980 = vrot.slane %v979, 2
    %v981 = vadd.f32 %v979, %v980
    %v982 = vrot.slane %v981, 1
    %v983 = vadd.f32 %v981, %v982
    %v984 = vrcp.pop 256.0
    %v985 = vmul.f32 %v983, %v984
    %v986 = vsub.f32 %v883, %v985
    %v987 = vsub.f32 %v884, %v985
    %v988 = vsub.f32 %v885, %v985
    %v989 = vsub.f32 %v886, %v985
    %v990 = vsub.f32 %v887, %v985
    %v991 = vsub.f32 %v888, %v985
    %v992 = vsub.f32 %v889, %v985
    %v993 = vsub.f32 %v890, %v985
    %v994 = vsub.f32 %v891, %v985
    %v995 = vsub.f32 %v892, %v985
    %v996 = vsub.f32 %v893, %v985
    %v997 = vsub.f32 %v894, %v985
    %v998 = vsub.f32 %v895, %v985
    %v999 = vsub.f32 %v896, %v985
    %v1000 = vsub.f32 %v897, %v985
    %v1001 = vsub.f32 %v898, %v985
    %v1002 = vsub.f32 %v899, %v985
    %v1003 = vsub.f32 %v900, %v985
    %v1004 = vsub.f32 %v901, %v985
    %v1005 = vsub.f32 %v902, %v985
    %v1006 = vsub.f32 %v903, %v985
    %v1007 = vsub.f32 %v904, %v985
    %v1008 = vsub.f32 %v905, %v985
    %v1009 = vsub.f32 %v906, %v985
    %v1010 = vsub.f32 %v907, %v985
    %v1011 = vsub.f32 %v908, %v985
    %v1012 = vsub.f32 %v909, %v985
    %v1013 = vsub.f32 %v910, %v985
    %v1014 = vsub.f32 %v911, %v985
    %v1015 = vsub.f32 %v912, %v985
    %v1016 = vsub.f32 %v913, %v985
    %v1017 = vsub.f32 %v914, %v985
    %v1018 = vmul.f32 %v986, %v986
    %v1019 = vmul.f32 %v987, %v987
    %v1020 = vmul.f32 %v988, %v988
    %v1021 = vmul.f32 %v989, %v989
    %v1022 = vmul.f32 %v990, %v990
    %v1023 = vmul.f32 %v991, %v991
    %v1024 = vmul.f32 %v992, %v992
    %v1025 = vmul.f32 %v993, %v993
    %v1026 = vmul.f32 %v994, %v994
    %v1027 = vmul.f32 %v995, %v995
    %v1028 = vmul.f32 %v996, %v996
    %v1029 = vmul.f32 %v997, %v997
    %v1030 = vmul.f32 %v998, %v998
    %v1031 = vmul.f32 %v999, %v999
    %v1032 = vmul.f32 %v1000, %v1000
    %v1033 = vmul.f32 %v1001, %v1001
    %v1034 = vmul.f32 %v1002, %v1002
    %v1035 = vmul.f32 %v1003, %v1003
    %v1036 = vmul.f32 %v1004, %v1004
    %v1037 = vmul.f32 %v1005, %v1005
    %v1038 = vmul.f32 %v1006, %v1006
    %v1039 = vmul.f32 %v1007, %v1007
    %v1040 = vmul.f32 %v1008, %v1008
    %v1041 = vmul.f32 %v1009, %v1009
    %v1042 = vmul.f32 %v1010, %v1010
    %v1043 = vmul.f32 %v1011, %v1011
    %v1044 = vmul.f32 %v1012, %v1012
    %v1045 = vmul.f32 %v1013, %v1013
    %v1046 = vmul.f32 %v1014, %v1014
    %v1047 = vmul.f32 %v1015, %v1015
    %v1048 = vmul.f32 %v1016, %v1016
    %v1049 = vmul.f32 %v1017, %v1017
    %v1050 = vsel %vm165, %v1018, 0.0
    %v1051 = vsel %vm165, %v1019, 0.0
    %v1052 = vadd.f32 %v1050, %v1051
    %v1053 = vsel %vm165, %v1020, 0.0
    %v1054 = vadd.f32 %v1052, %v1053
    %v1055 = vsel %vm165, %v1021, 0.0
    %v1056 = vadd.f32 %v1054, %v1055
    %v1057 = vsel %vm165, %v1022, 0.0
    %v1058 = vadd.f32 %v1056, %v1057
    %v1059 = vsel %vm165, %v1023, 0.0
    %v1060 = vadd.f32 %v1058, %v1059
    %v1061 = vsel %vm165, %v1024, 0.0
    %v1062 = vadd.f32 %v1060, %v1061
    %v1063 = vsel %vm165, %v1025, 0.0
    %v1064 = vadd.f32 %v1062, %v1063
    %v1065 = vsel %vm165, %v1026, 0.0
    %v1066 = vadd.f32 %v1064, %v1065
    %v1067 = vsel %vm165, %v1027, 0.0
    %v1068 = vadd.f32 %v1066, %v1067
    %v1069 = vsel %vm165, %v1028, 0.0
    %v1070 = vadd.f32 %v1068, %v1069
    %v1071 = vsel %vm165, %v1029, 0.0
    %v1072 = vadd.f32 %v1070, %v1071
    %v1073 = vsel %vm165, %v1030, 0.0
    %v1074 = vadd.f32 %v1072, %v1073
    %v1075 = vsel %vm165, %v1031, 0.0
    %v1076 = vadd.f32 %v1074, %v1075
    %v1077 = vsel %vm165, %v1032, 0.0
    %v1078 = vadd.f32 %v1076, %v1077
    %v1079 = vsel %vm165, %v1033, 0.0
    %v1080 = vadd.f32 %v1078, %v1079
    %v1081 = vsel %vm165, %v1034, 0.0
    %v1082 = vadd.f32 %v1080, %v1081
    %v1083 = vsel %vm165, %v1035, 0.0
    %v1084 = vadd.f32 %v1082, %v1083
    %v1085 = vsel %vm165, %v1036, 0.0
    %v1086 = vadd.f32 %v1084, %v1085
    %v1087 = vsel %vm165, %v1037, 0.0
    %v1088 = vadd.f32 %v1086, %v1087
    %v1089 = vsel %vm165, %v1038, 0.0
    %v1090 = vadd.f32 %v1088, %v1089
    %v1091 = vsel %vm165, %v1039, 0.0
    %v1092 = vadd.f32 %v1090, %v1091
    %v1093 = vsel %vm165, %v1040, 0.0
    %v1094 = vadd.f32 %v1092, %v1093
    %v1095 = vsel %vm165, %v1041, 0.0
    %v1096 = vadd.f32 %v1094, %v1095
    %v1097 = vsel %vm165, %v1042, 0.0
    %v1098 = vadd.f32 %v1096, %v1097
    %v1099 = vsel %vm165, %v1043, 0.0
    %v1100 = vadd.f32 %v1098, %v1099
    %v1101 = vsel %vm165, %v1044, 0.0
    %v1102 = vadd.f32 %v1100, %v1101
    %v1103 = vsel %vm165, %v1045, 0.0
    %v1104 = vadd.f32 %v1102, %v1103
    %v1105 = vsel %vm165, %v1046, 0.0
    %v1106 = vadd.f32 %v1104, %v1105
    %v1107 = vsel %vm165, %v1047, 0.0
    %v1108 = vadd.f32 %v1106, %v1107
    %v1109 = vsel %vm165, %v1048, 0.0
    %v1110 = vadd.f32 %v1108, %v1109
    %v1111 = vsel %vm165, %v1049, 0.0
    %v1112 = vadd.f32 %v1110, %v1111
    %v1113 = vrot.slane %v1112, 4
    %v1114 = vadd.f32 %v1112, %v1113
    %v1115 = vrot.slane %v1114, 2
    %v1116 = vadd.f32 %v1114, %v1115
    %v1117 = vrot.slane %v1116, 1
    %v1118 = vadd.f32 %v1116, %v1117
    %v1119 = vmul.f32 %v1118, %v984
    %v1120 = vadd.f32 %v1119, 1e-05
    %v1121 = vrsqrt.pop %v1120
    %v1122 = vmul.f32 %v986, %v1121
    %v1123 = vmul.f32 %v987, %v1121
    %v1124 = vmul.f32 %v988, %v1121
    %v1125 = vmul.f32 %v989, %v1121
    %v1126 = vmul.f32 %v990, %v1121
    %v1127 = vmul.f32 %v991, %v1121
    %v1128 = vmul.f32 %v992, %v1121
    %v1129 = vmul.f32 %v993, %v1121
    %v1130 = vmul.f32 %v994, %v1121
    %v1131 = vmul.f32 %v995, %v1121
    %v1132 = vmul.f32 %v996, %v1121
    %v1133 = vmul.f32 %v997, %v1121
    %v1134 = vmul.f32 %v998, %v1121
    %v1135 = vmul.f32 %v999, %v1121
    %v1136 = vmul.f32 %v1000, %v1121
    %v1137 = vmul.f32 %v1001, %v1121
    %v1138 = vmul.f32 %v1002, %v1121
    %v1139 = vmul.f32 %v1003, %v1121
    %v1140 = vmul.f32 %v1004, %v1121
    %v1141 = vmul.f32 %v1005, %v1121
    %v1142 = vmul.f32 %v1006, %v1121
    %v1143 = vmul.f32 %v1007, %v1121
    %v1144 = vmul.f32 %v1008, %v1121
    %v1145 = vmul.f32 %v1009, %v1121
    %v1146 = vmul.f32 %v1010, %v1121
    %v1147 = vmul.f32 %v1011, %v1121
    %v1148 = vmul.f32 %v1012, %v1121
    %v1149 = vmul.f32 %v1013, %v1121
    %v1150 = vmul.f32 %v1014, %v1121
    %v1151 = vmul.f32 %v1015, %v1121
    %v1152 = vmul.f32 %v1016, %v1121
    %v1153 = vmul.f32 %v1017, %v1121
    %v1154 = vld [vmem:[%s5] sm:$0x1]
    %v1156 = vlaneseq
    %v1157 = vshrl.u32 %v1156, 7
    %v1158 = vsub.s32 0, %v1157
    %v1159 = vrot.slane %v1154, %v1158
    %v1161 = vmul.f32 %v1122, %v1159
    %v1162 = vmul.f32 %v1123, %v1159
    %v1163 = vmul.f32 %v1124, %v1159
    %v1164 = vmul.f32 %v1125, %v1159
    %v1165 = vmul.f32 %v1126, %v1159
    %v1166 = vmul.f32 %v1127, %v1159
    %v1167 = vmul.f32 %v1128, %v1159
    %v1168 = vmul.f32 %v1129, %v1159
    %v1169 = vmul.f32 %v1130, %v1159
    %v1170 = vmul.f32 %v1131, %v1159
    %v1171 = vmul.f32 %v1132, %v1159
    %v1172 = vmul.f32 %v1133, %v1159
    %v1173 = vmul.f32 %v1134, %v1159
    %v1174 = vmul.f32 %v1135, %v1159
    %v1175 = vmul.f32 %v1136, %v1159
    %v1176 = vmul.f32 %v1137, %v1159
    %v1177 = vmul.f32 %v1138, %v1159
    %v1178 = vmul.f32 %v1139, %v1159
    %v1179 = vmul.f32 %v1140, %v1159
    %v1180 = vmul.f32 %v1141, %v1159
    %v1181 = vmul.f32 %v1142, %v1159
    %v1182 = vmul.f32 %v1143, %v1159
    %v1183 = vmul.f32 %v1144, %v1159
    %v1184 = vmul.f32 %v1145, %v1159
    %v1185 = vmul.f32 %v1146, %v1159
    %v1186 = vmul.f32 %v1147, %v1159
    %v1187 = vmul.f32 %v1148, %v1159
    %v1188 = vmul.f32 %v1149, %v1159
    %v1189 = vmul.f32 %v1150, %v1159
    %v1190 = vmul.f32 %v1151, %v1159
    %v1191 = vmul.f32 %v1152, %v1159
    %v1192 = vmul.f32 %v1153, %v1159
    %v1193 = vld [vmem:[#allocation2] sm:$0x1]
    %v1195 = vlaneseq
    %v1196 = vshrl.u32 %v1195, 7
    %v1197 = vsub.s32 0, %v1196
    %v1198 = vrot.slane %v1193, %v1197
    %v1200 = vadd.f32 %v1161, %v1198
    %v1201 = vadd.f32 %v1162, %v1198
    %v1202 = vadd.f32 %v1163, %v1198
    %v1203 = vadd.f32 %v1164, %v1198
    %v1204 = vadd.f32 %v1165, %v1198
    %v1205 = vadd.f32 %v1166, %v1198
    %v1206 = vadd.f32 %v1167, %v1198
    %v1207 = vadd.f32 %v1168, %v1198
    %v1208 = vadd.f32 %v1169, %v1198
    %v1209 = vadd.f32 %v1170, %v1198
    %v1210 = vadd.f32 %v1171, %v1198
    %v1211 = vadd.f32 %v1172, %v1198
    %v1212 = vadd.f32 %v1173, %v1198
    %v1213 = vadd.f32 %v1174, %v1198
    %v1214 = vadd.f32 %v1175, %v1198
    %v1215 = vadd.f32 %v1176, %v1198
    %v1216 = vadd.f32 %v1177, %v1198
    %v1217 = vadd.f32 %v1178, %v1198
    %v1218 = vadd.f32 %v1179, %v1198
    %v1219 = vadd.f32 %v1180, %v1198
    %v1220 = vadd.f32 %v1181, %v1198
    %v1221 = vadd.f32 %v1182, %v1198
    %v1222 = vadd.f32 %v1183, %v1198
    %v1223 = vadd.f32 %v1184, %v1198
    %v1224 = vadd.f32 %v1185, %v1198
    %v1225 = vadd.f32 %v1186, %v1198
    %v1226 = vadd.f32 %v1187, %v1198
    %v1227 = vadd.f32 %v1188, %v1198
    %v1228 = vadd.f32 %v1189, %v1198
    %v1229 = vadd.f32 %v1190, %v1198
    %v1230 = vadd.f32 %v1191, %v1198
    %v1231 = vadd.f32 %v1192, %v1198
    %v1232 = vld [vmem:[#allocation4] sm:$0x1]
    %v1234 = vlaneseq
    %v1235 = vshrl.u32 %v1234, 7
    %v1236 = vsub.s32 0, %v1235
    %v1237 = vrot.slane %v1232, %v1236
    %v1239 = vmul.f32 %v1237, %v1200
    %v1240 = vmul.f32 %v1237, %v1201
    %v1241 = vmul.f32 %v1237, %v1202
    %v1242 = vmul.f32 %v1237, %v1203
    %v1243 = vmul.f32 %v1237, %v1204
    %v1244 = vmul.f32 %v1237, %v1205
    %v1245 = vmul.f32 %v1237, %v1206
    %v1246 = vmul.f32 %v1237, %v1207
    %v1247 = vmul.f32 %v1237, %v1208
    %v1248 = vmul.f32 %v1237, %v1209
    %v1249 = vmul.f32 %v1237, %v1210
    %v1250 = vmul.f32 %v1237, %v1211
    %v1251 = vmul.f32 %v1237, %v1212
    %v1252 = vmul.f32 %v1237, %v1213
    %v1253 = vmul.f32 %v1237, %v1214
    %v1254 = vmul.f32 %v1237, %v1215
    %v1255 = vmul.f32 %v1237, %v1216
    %v1256 = vmul.f32 %v1237, %v1217
    %v1257 = vmul.f32 %v1237, %v1218
    %v1258 = vmul.f32 %v1237, %v1219
    %v1259 = vmul.f32 %v1237, %v1220
    %v1260 = vmul.f32 %v1237, %v1221
    %v1261 = vmul.f32 %v1237, %v1222
    %v1262 = vmul.f32 %v1237, %v1223
    %v1263 = vmul.f32 %v1237, %v1224
    %v1264 = vmul.f32 %v1237, %v1225
    %v1265 = vmul.f32 %v1237, %v1226
    %v1266 = vmul.f32 %v1237, %v1227
    %v1267 = vmul.f32 %v1237, %v1228
    %v1268 = vmul.f32 %v1237, %v1229
    %v1269 = vmul.f32 %v1237, %v1230
    %v1270 = vmul.f32 %v1237, %v1231
    %v1271 = vld [vmem:[#allocation6] sm:$0x1]
    %v1273 = vlaneseq
    %v1274 = vshrl.u32 %v1273, 7
    %v1275 = vsub.s32 0, %v1274
    %v1276 = vrot.slane %v1271, %v1275
    %v1278 = vadd.f32 %v1239, %v1276
    %v1279 = vadd.f32 %v1240, %v1276
    %v1280 = vadd.f32 %v1241, %v1276
    %v1281 = vadd.f32 %v1242, %v1276
    %v1282 = vadd.f32 %v1243, %v1276
    %v1283 = vadd.f32 %v1244, %v1276
    %v1284 = vadd.f32 %v1245, %v1276
    %v1285 = vadd.f32 %v1246, %v1276
    %v1286 = vadd.f32 %v1247, %v1276
    %v1287 = vadd.f32 %v1248, %v1276
    %v1288 = vadd.f32 %v1249, %v1276
    %v1289 = vadd.f32 %v1250, %v1276
    %v1290 = vadd.f32 %v1251, %v1276
    %v1291 = vadd.f32 %v1252, %v1276
    %v1292 = vadd.f32 %v1253, %v1276
    %v1293 = vadd.f32 %v1254, %v1276
    %v1294 = vadd.f32 %v1255, %v1276
    %v1295 = vadd.f32 %v1256, %v1276
    %v1296 = vadd.f32 %v1257, %v1276
    %v1297 = vadd.f32 %v1258, %v1276
    %v1298 = vadd.f32 %v1259, %v1276
    %v1299 = vadd.f32 %v1260, %v1276
    %v1300 = vadd.f32 %v1261, %v1276
    %v1301 = vadd.f32 %v1262, %v1276
    %v1302 = vadd.f32 %v1263, %v1276
    %v1303 = vadd.f32 %v1264, %v1276
    %v1304 = vadd.f32 %v1265, %v1276
    %v1305 = vadd.f32 %v1266, %v1276
    %v1306 = vadd.f32 %v1267, %v1276
    %v1307 = vadd.f32 %v1268, %v1276
    %v1308 = vadd.f32 %v1269, %v1276
    %v1309 = vadd.f32 %v1270, %v1276
    %v1310 = vld [vmem:[#allocation7] sm:$0xff]
    %v1311 = vld [vmem:[#allocation7 + $0x8] sm:$0xff]
    %v1312 = vld [vmem:[#allocation7 + $0x10] sm:$0xff]
    %v1313 = vld [vmem:[#allocation7 + $0x18] sm:$0xff]
    %v1314 = vld [vmem:[#allocation9] sm:$0x1]
    %v1316 = vlaneseq
    %v1317 = vshrl.u32 %v1316, 7
    %v1318 = vsub.s32 0, %v1317
    %v1319 = vrot.slane %v1314, %v1318
    %v1322 = vsel %vm165, %v1278, 0
    %v1325 = vsel %vm165, %v1279, 0
    %v1328 = vsel %vm165, %v1280, 0
    %v1331 = vsel %vm165, %v1281, 0
    %v1334 = vsel %vm165, %v1282, 0
    %v1337 = vsel %vm165, %v1283, 0
    %v1340 = vsel %vm165, %v1284, 0
    %v1343 = vsel %vm165, %v1285, 0
    %v1346 = vsel %vm165, %v1286, 0
    %v1349 = vsel %vm165, %v1287, 0
    %v1352 = vsel %vm165, %v1288, 0
    %v1355 = vsel %vm165, %v1289, 0
    %v1358 = vsel %vm165, %v1290, 0
    %v1361 = vsel %vm165, %v1291, 0
    %v1364 = vsel %vm165, %v1292, 0
    %v1367 = vsel %vm165, %v1293, 0
    %v1370 = vsel %vm165, %v1294, 0
    %v1373 = vsel %vm165, %v1295, 0
    %v1376 = vsel %vm165, %v1296, 0
    %v1379 = vsel %vm165, %v1297, 0
    %v1382 = vsel %vm165, %v1298, 0
    %v1385 = vsel %vm165, %v1299, 0
    %v1388 = vsel %vm165, %v1300, 0
    %v1391 = vsel %vm165, %v1301, 0
    %v1394 = vsel %vm165, %v1302, 0
    %v1397 = vsel %vm165, %v1303, 0
    %v1400 = vsel %vm165, %v1304, 0
    %v1403 = vsel %vm165, %v1305, 0
    %v1406 = vsel %vm165, %v1306, 0
    %v1409 = vsel %vm165, %v1307, 0
    %v1412 = vsel %vm165, %v1308, 0
    %v1415 = vsel %vm165, %v1309, 0
    %1417 = vmatprep.subr.mxu0 0.0
    %1418 = vmatpush1.msra.mxu0 %v1310
    %1419 = vmatprep.subr.mxu0 0.0
    %1420 = vmatpush1.msra.mxu0 %v1311
    %1421 = vmatprep.subr.mxu0 0.0
    %1422 = vmatpush1.msra.mxu0 %v1312
    %1423 = vmatprep.subr.mxu0 0.0
    %1424 = vmatpush1.msra.mxu0 %v1313
    %1425 = vmatprep.subr.mxu0 0.0
    %1426 = vmatpush1.msra.mxu0 0.0
    %1427 = vmatprep.subr.mxu0 0.0
    %1428 = vmatpush1.msra.mxu0 0.0
    %1429 = vmatprep.subr.mxu0 0.0
    %1430 = vmatpush1.msra.mxu0 0.0
    %1431 = vmatprep.subr.mxu0 0.0
    %1432 = vmatpush1.msra.mxu0 0.0
    %1433 = vmatprep.subr.mxu0 0.0
    %1434 = vmatpush1.msra.mxu0 0.0
    %1435 = vmatprep.subr.mxu0 0.0
    %1436 = vmatpush1.msra.mxu0 0.0
    %1437 = vmatprep.subr.mxu0 0.0
    %1438 = vmatpush1.msra.mxu0 0.0
    %1439 = vmatprep.subr.mxu0 0.0
    %1440 = vmatpush1.msra.mxu0 0.0
    %1441 = vmatprep.subr.mxu0 0.0
    %1442 = vmatpush1.msra.mxu0 0.0
    %1443 = vmatprep.subr.mxu0 0.0
    %1444 = vmatpush1.msra.mxu0 0.0
    %1445 = vmatprep.subr.mxu0 0.0
    %1446 = vmatpush1.msra.mxu0 0.0
    %1447 = vmatprep.subr.mxu0 0.0
    %1448 = vmatpush1.msra.mxu0 0.0
    %1449 = vmatprep.subr.mxu0 0.0
    %1450 = vmatpush1.msra.mxu0 0.0
    %1451 = vmatprep.subr.mxu0 0.0
    %1452 = vmatpush1.msra.mxu0 0.0
    %1453 = vmatprep.subr.mxu0 0.0
    %1454 = vmatpush1.msra.mxu0 0.0
    %1455 = vmatprep.subr.mxu0 0.0
    %1456 = vmatpush1.msra.mxu0 0.0
    %1457 = vmatprep.subr.mxu0 0.0
    %1458 = vmatpush1.msra.mxu0 0.0
    %1459 = vmatprep.subr.mxu0 0.0
    %1460 = vmatpush1.msra.mxu0 0.0
    %1461 = vmatprep.subr.mxu0 0.0
    %1462 = vmatpush1.msra.mxu0 0.0
    %1463 = vmatprep.subr.mxu0 0.0
    %1464 = vmatpush1.msra.mxu0 0.0
    %1465 = vmatprep.subr.mxu0 0.0
    %1466 = vmatpush1.msra.mxu0 0.0
    %1467 = vmatprep.subr.mxu0 0.0
    %1468 = vmatpush1.msra.mxu0 0.0
    %1469 = vmatprep.subr.mxu0 0.0
    %1470 = vmatpush1.msra.mxu0 0.0
    %1471 = vmatprep.subr.mxu0 0.0
    %1472 = vmatpush1.msra.mxu0 0.0
    %1473 = vmatprep.subr.mxu0 0.0
    %1474 = vmatpush1.msra.mxu0 0.0
    %1475 = vmatprep.subr.mxu0 0.0
    %1476 = vmatpush1.msra.mxu0 0.0
    %1477 = vmatprep.subr.mxu0 0.0
    %1478 = vmatpush1.msra.mxu0 0.0
    %1479 = vmatprep.subr.mxu0 0.0
    %1480 = vmatpush1.msra.mxu0 0.0
    %1481 = vmatprep.mubr.f32.mxu0 0.0
    %1482 = vmatmul.mubr.f32.gmra.mrb[0].mxu0 %v1322
    %v1483 = vpop.f32.mrb[0].mxu0
    %v1484 = vadd.f32 %v1319, %v1483
    %v1485 = vpop.f32.mrb[0].mxu0
    %1486 = vmatprep.mubr.f32.mxu0 0.0
    %1487 = vmatmul.mubr.f32.gmra.mrb[0].mxu0 %v1325
    %v1488 = vpop.f32.mrb[0].mxu0
    %v1489 = vadd.f32 %v1319, %v1488
    %v1490 = vpop.f32.mrb[0].mxu0
    %1491 = vmatprep.mubr.f32.mxu0 0.0
    %1492 = vmatmul.mubr.f32.gmra.mrb[0].mxu0 %v1328
    %v1493 = vpop.f32.mrb[0].mxu0
    %v1494 = vadd.f32 %v1319, %v1493
    %v1495 = vpop.f32.mrb[0].mxu0
    %1496 = vmatprep.mubr.f32.mxu0 0.0
    %1497 = vmatmul.mubr.f32.gmra.mrb[0].mxu0 %v1331
    %v1498 = vpop.f32.mrb[0].mxu0
    %v1499 = vadd.f32 %v1319, %v1498
    %v1500 = vpop.f32.mrb[0].mxu0
    %1501 = vmatprep.mubr.f32.mxu0 0.0
    %1502 = vmatmul.mubr.f32.gmra.mrb[0].mxu0 %v1334
    %v1503 = vpop.f32.mrb[0].mxu0
    %v1504 = vadd.f32 %v1319, %v1503
    %v1505 = vpop.f32.mrb[0].mxu0
    %1506 = vmatprep.mubr.f32.mxu0 0.0
    %1507 = vmatmul.mubr.f32.gmra.mrb[0].mxu0 %v1337
    %v1508 = vpop.f32.mrb[0].mxu0
    %v1509 = vadd.f32 %v1319, %v1508
    %v1510 = vpop.f32.mrb[0].mxu0
    %1511 = vmatprep.mubr.f32.mxu0 0.0
    %1512 = vmatmul.mubr.f32.gmra.mrb[0].mxu0 %v1340
    %v1513 = vpop.f32.mrb[0].mxu0
    %v1514 = vadd.f32 %v1319, %v1513
    %v1515 = vpop.f32.mrb[0].mxu0
    %1516 = vmatprep.mubr.f32.mxu0 0.0
    %1517 = vmatmul.mubr.f32.gmra.mrb[0].mxu0 %v1343
    %v1518 = vpop.f32.mrb[0].mxu0
    %v1519 = vadd.f32 %v1319, %v1518
    %v1520 = vpop.f32.mrb[0].mxu0
    %1521 = vmatprep.mubr.f32.mxu0 0.0
    %1522 = vmatmul.mubr.f32.gmra.mrb[0].mxu0 %v1346
    %v1523 = vpop.f32.mrb[0].mxu0
    %v1524 = vadd.f32 %v1319, %v1523
    %v1525 = vpop.f32.mrb[0].mxu0
    %1526 = vmatprep.mubr.f32.mxu0 0.0
    %1527 = vmatmul.mubr.f32.gmra.mrb[0].mxu0 %v1349
    %v1528 = vpop.f32.mrb[0].mxu0
    %v1529 = vadd.f32 %v1319, %v1528
    %v1530 = vpop.f32.mrb[0].mxu0
    %1531 = vmatprep.mubr.f32.mxu0 0.0
    %1532 = vmatmul.mubr.f32.gmra.mrb[0].mxu0 %v1352
    %v1533 = vpop.f32.mrb[0].mxu0
    %v1534 = vadd.f32 %v1319, %v1533
    %v1535 = vpop.f32.mrb[0].mxu0
    %1536 = vmatprep.mubr.f32.mxu0 0.0
    %1537 = vmatmul.mubr.f32.gmra.mrb[0].mxu0 %v1355
    %v1538 = vpop.f32.mrb[0].mxu0
    %v1539 = vadd.f32 %v1319, %v1538
    %v1540 = vpop.f32.mrb[0].mxu0
    %1541 = vmatprep.mubr.f32.mxu0 0.0
    %1542 = vmatmul.mubr.f32.gmra.mrb[0].mxu0 %v1358
    %v1543 = vpop.f32.mrb[0].mxu0
    %v1544 = vadd.f32 %v1319, %v1543
    %v1545 = vpop.f32.mrb[0].mxu0
    %1546 = vmatprep.mubr.f32.mxu0 0.0
    %1547 = vmatmul.mubr.f32.gmra.mrb[0].mxu0 %v1361
    %v1548 = vpop.f32.mrb[0].mxu0
    %v1549 = vadd.f32 %v1319, %v1548
    %v1550 = vpop.f32.mrb[0].mxu0
    %1551 = vmatprep.mubr.f32.mxu0 0.0
    %1552 = vmatmul.mubr.f32.gmra.mrb[0].mxu0 %v1364
    %v1553 = vpop.f32.mrb[0].mxu0
    %v1554 = vadd.f32 %v1319, %v1553
    %v1555 = vpop.f32.mrb[0].mxu0
    %1556 = vmatprep.mubr.f32.mxu0 0.0
    %1557 = vmatmul.mubr.f32.gmra.mrb[0].mxu0 %v1367
    %v1558 = vpop.f32.mrb[0].mxu0
    %v1559 = vadd.f32 %v1319, %v1558
    %v1560 = vpop.f32.mrb[0].mxu0
    %1561 = vmatprep.mubr.f32.mxu0 0.0
    %1562 = vmatmul.mubr.f32.gmra.mrb[0].mxu0 %v1370
    %v1563 = vpop.f32.mrb[0].mxu0
    %v1564 = vadd.f32 %v1319, %v1563
    %v1565 = vpop.f32.mrb[0].mxu0
    %1566 = vmatprep.mubr.f32.mxu0 0.0
    %1567 = vmatmul.mubr.f32.gmra.mrb[0].mxu0 %v1373
    %v1568 = vpop.f32.mrb[0].mxu0
    %v1569 = vadd.f32 %v1319, %v1568
    %v1570 = vpop.f32.mrb[0].mxu0
    %1571 = vmatprep.mubr.f32.mxu0 0.0
    %1572 = vmatmul.mubr.f32.gmra.mrb[0].mxu0 %v1376
    %v1573 = vpop.f32.mrb[0].mxu0
    %v1574 = vadd.f32 %v1319, %v1573
    %v1575 = vpop.f32.mrb[0].mxu0
    %1576 = vmatprep.mubr.f32.mxu0 0.0
    %1577 = vmatmul.mubr.f32.gmra.mrb[0].mxu0 %v1379
    %v1578 = vpop.f32.mrb[0].mxu0
    %v1579 = vadd.f32 %v1319, %v1578
    %v1580 = vpop.f32.mrb[0].mxu0
    %1581 = vmatprep.mubr.f32.mxu0 0.0
    %1582 = vmatmul.mubr.f32.gmra.mrb[0].mxu0 %v1382
    %v1583 = vpop.f32.mrb[0].mxu0
    %v1584 = vadd.f32 %v1319, %v1583
    %v1585 = vpop.f32.mrb[0].mxu0
    %1586 = vmatprep.mubr.f32.mxu0 0.0
    %1587 = vmatmul.mubr.f32.gmra.mrb[0].mxu0 %v1385
    %v1588 = vpop.f32.mrb[0].mxu0
    %v1589 = vadd.f32 %v1319, %v1588
    %v1590 = vpop.f32.mrb[0].mxu0
    %1591 = vmatprep.mubr.f32.mxu0 0.0
    %1592 = vmatmul.mubr.f32.gmra.mrb[0].mxu0 %v1388
    %v1593 = vpop.f32.mrb[0].mxu0
    %v1594 = vadd.f32 %v1319, %v1593
    %v1595 = vpop.f32.mrb[0].mxu0
    %1596 = vmatprep.mubr.f32.mxu0 0.0
    %1597 = vmatmul.mubr.f32.gmra.mrb[0].mxu0 %v1391
    %v1598 = vpop.f32.mrb[0].mxu0
    %v1599 = vadd.f32 %v1319, %v1598
    %v1600 = vpop.f32.mrb[0].mxu0
    %1601 = vmatprep.mubr.f32.mxu0 0.0
    %1602 = vmatmul.mubr.f32.gmra.mrb[0].mxu0 %v1394
    %v1603 = vpop.f32.mrb[0].mxu0
    %v1604 = vadd.f32 %v1319, %v1603
    %v1605 = vpop.f32.mrb[0].mxu0
    %1606 = vmatprep.mubr.f32.mxu0 0.0
    %1607 = vmatmul.mubr.f32.gmra.mrb[0].mxu0 %v1397
    %v1608 = vpop.f32.mrb[0].mxu0
    %v1609 = vadd.f32 %v1319, %v1608
    %v1610 = vpop.f32.mrb[0].mxu0
    %1611 = vmatprep.mubr.f32.mxu0 0.0
    %1612 = vmatmul.mubr.f32.gmra.mrb[0].mxu0 %v1400
    %v1613 = vpop.f32.mrb[0].mxu0
    %v1614 = vadd.f32 %v1319, %v1613
    %v1615 = vpop.f32.mrb[0].mxu0
    %1616 = vmatprep.mubr.f32.mxu0 0.0
    %1617 = vmatmul.mubr.f32.gmra.mrb[0].mxu0 %v1403
    %v1618 = vpop.f32.mrb[0].mxu0
    %v1619 = vadd.f32 %v1319, %v1618
    %v1620 = vpop.f32.mrb[0].mxu0
    %1621 = vmatprep.mubr.f32.mxu0 0.0
    %1622 = vmatmul.mubr.f32.gmra.mrb[0].mxu0 %v1406
    %v1623 = vpop.f32.mrb[0].mxu0
    %v1624 = vadd.f32 %v1319, %v1623
    %v1625 = vpop.f32.mrb[0].mxu0
    %1626 = vmatprep.mubr.f32.mxu0 0.0
    %1627 = vmatmul.mubr.f32.gmra.mrb[0].mxu0 %v1409
    %v1628 = vpop.f32.mrb[0].mxu0
    %v1629 = vadd.f32 %v1319, %v1628
    %v1630 = vpop.f32.mrb[0].mxu0
    %1631 = vmatprep.mubr.f32.mxu0 0.0
    %1632 = vmatmul.mubr.f32.gmra.mrb[0].mxu0 %v1412
    %v1633 = vpop.f32.mrb[0].mxu0
    %v1634 = vadd.f32 %v1319, %v1633
    %v1635 = vpop.f32.mrb[0].mxu0
    %1636 = vmatprep.mubr.f32.mxu0 0.0
    %1637 = vmatmul.mubr.f32.gmra.mrb[0].mxu0 %v1415
    %v1638 = vpop.f32.mrb[0].mxu0
    %v1639 = vadd.f32 %v1319, %v1638
    %v1640 = vpop.f32.mrb[0].mxu0
    %1641 = vdwg.mxu0
    %v1642 = vmax.f32 %v1484, 0.0
    %v1643 = vmax.f32 %v1489, 0.0
    %v1644 = vmax.f32 %v1494, 0.0
    %v1645 = vmax.f32 %v1499, 0.0
    %v1646 = vmax.f32 %v1504, 0.0
    %v1647 = vmax.f32 %v1509, 0.0
    %v1648 = vmax.f32 %v1514, 0.0
    %v1649 = vmax.f32 %v1519, 0.0
    %v1650 = vmax.f32 %v1524, 0.0
    %v1651 = vmax.f32 %v1529, 0.0
    %v1652 = vmax.f32 %v1534, 0.0
    %v1653 = vmax.f32 %v1539, 0.0
    %v1654 = vmax.f32 %v1544, 0.0
    %v1655 = vmax.f32 %v1549, 0.0
    %v1656 = vmax.f32 %v1554, 0.0
    %v1657 = vmax.f32 %v1559, 0.0
    %v1658 = vmax.f32 %v1564, 0.0
    %v1659 = vmax.f32 %v1569, 0.0
    %v1660 = vmax.f32 %v1574, 0.0
    %v1661 = vmax.f32 %v1579, 0.0
    %v1662 = vmax.f32 %v1584, 0.0
    %v1663 = vmax.f32 %v1589, 0.0
    %v1664 = vmax.f32 %v1594, 0.0
    %v1665 = vmax.f32 %v1599, 0.0
    %v1666 = vmax.f32 %v1604, 0.0
    %v1667 = vmax.f32 %v1609, 0.0
    %v1668 = vmax.f32 %v1614, 0.0
    %v1669 = vmax.f32 %v1619, 0.0
    %v1670 = vmax.f32 %v1624, 0.0
    %v1671 = vmax.f32 %v1629, 0.0
    %v1672 = vmax.f32 %v1634, 0.0
    %v1673 = vmax.f32 %v1639, 0.0
    %v1674 = vld [vmem:[%s11] sm:$0xff]
    %v1675 = vld [vmem:[%s11 + $0x8] sm:$0xff]
    %v1676 = vld [vmem:[%s11 + $0x10] sm:$0xff]
    %v1677 = vld [vmem:[%s11 + $0x18] sm:$0xff]
    %v1678 = vld [vmem:[#allocation10] sm:$0x1]
    %v1680 = vlaneseq
    %v1681 = vshrl.u32 %v1680, 7
    %v1682 = vsub.s32 0, %v1681
    %v1683 = vrot.slane %v1678, %v1682
    %v1686 = vsel %vm165, %v1642, 0
    %v1689 = vsel %vm165, %v1643, 0
    %v1692 = vsel %vm165, %v1644, 0
    %v1695 = vsel %vm165, %v1645, 0
    %v1698 = vsel %vm165, %v1646, 0
    %v1701 = vsel %vm165, %v1647, 0
    %v1704 = vsel %vm165, %v1648, 0
    %v1707 = vsel %vm165, %v1649, 0
    %v1710 = vsel %vm165, %v1650, 0
    %v1713 = vsel %vm165, %v1651, 0
    %v1716 = vsel %vm165, %v1652, 0
    %v1719 = vsel %vm165, %v1653, 0
    %v1722 = vsel %vm165, %v1654, 0
    %v1725 = vsel %vm165, %v1655, 0
    %v1728 = vsel %vm165, %v1656, 0
    %v1731 = vsel %vm165, %v1657, 0
    %v1734 = vsel %vm165, %v1658, 0
    %v1737 = vsel %vm165, %v1659, 0
    %v1740 = vsel %vm165, %v1660, 0
    %v1743 = vsel %vm165, %v1661, 0
    %v1746 = vsel %vm165, %v1662, 0
    %v1749 = vsel %vm165, %v1663, 0
    %v1752 = vsel %vm165, %v1664, 0
    %v1755 = vsel %vm165, %v1665, 0
    %v1758 = vsel %vm165, %v1666, 0
    %v1761 = vsel %vm165, %v1667, 0
    %v1764 = vsel %vm165, %v1668, 0
    %v1767 = vsel %vm165, %v1669, 0
    %v1770 = vsel %vm165, %v1670, 0
    %v1773 = vsel %vm165, %v1671, 0
    %v1776 = vsel %vm165, %v1672, 0
    %v1779 = vsel %vm165, %v1673, 0
    %1781 = vmatprep.subr.mxu0 0.0
    %1782 = vmatpush1.msra.mxu0 %v1674
    %1783 = vmatprep.subr.mxu0 0.0
    %1784 = vmatpush1.msra.mxu0 %v1675
    %1785 = vmatprep.subr.mxu0 0.0
    %1786 = vmatpush1.msra.mxu0 %v1676
    %1787 = vmatprep.subr.mxu0 0.0
    %1788 = vmatpush1.msra.mxu0 %v1677
    %1789 = vmatprep.subr.mxu0 0.0
    %1790 = vmatpush1.msra.mxu0 0.0
    %1791 = vmatprep.subr.mxu0 0.0
    %1792 = vmatpush1.msra.mxu0 0.0
    %1793 = vmatprep.subr.mxu0 0.0
    %1794 = vmatpush1.msra.mxu0 0.0
    %1795 = vmatprep.subr.mxu0 0.0
    %1796 = vmatpush1.msra.mxu0 0.0
    %1797 = vmatprep.subr.mxu0 0.0
    %1798 = vmatpush1.msra.mxu0 0.0
    %1799 = vmatprep.subr.mxu0 0.0
    %1800 = vmatpush1.msra.mxu0 0.0
    %1801 = vmatprep.subr.mxu0 0.0
    %1802 = vmatpush1.msra.mxu0 0.0
    %1803 = vmatprep.subr.mxu0 0.0
    %1804 = vmatpush1.msra.mxu0 0.0
    %1805 = vmatprep.subr.mxu0 0.0
    %1806 = vmatpush1.msra.mxu0 0.0
    %1807 = vmatprep.subr.mxu0 0.0
    %1808 = vmatpush1.msra.mxu0 0.0
    %1809 = vmatprep.subr.mxu0 0.0
    %1810 = vmatpush1.msra.mxu0 0.0
    %1811 = vmatprep.subr.mxu0 0.0
    %1812 = vmatpush1.msra.mxu0 0.0
    %1813 = vmatprep.subr.mxu0 0.0
    %1814 = vmatpush1.msra.mxu0 0.0
    %1815 = vmatprep.subr.mxu0 0.0
    %1816 = vmatpush1.msra.mxu0 0.0
    %1817 = vmatprep.subr.mxu0 0.0
    %1818 = vmatpush1.msra.mxu0 0.0
    %1819 = vmatprep.subr.mxu0 0.0
    %1820 = vmatpush1.msra.mxu0 0.0
    %1821 = vmatprep.subr.mxu0 0.0
    %1822 = vmatpush1.msra.mxu0 0.0
    %1823 = vmatprep.subr.mxu0 0.0
    %1824 = vmatpush1.msra.mxu0 0.0
    %1825 = vmatprep.subr.mxu0 0.0
    %1826 = vmatpush1.msra.mxu0 0.0
    %1827 = vmatprep.subr.mxu0 0.0
    %1828 = vmatpush1.msra.mxu0 0.0
    %1829 = vmatprep.subr.mxu0 0.0
    %1830 = vmatpush1.msra.mxu0 0.0
    %1831 = vmatprep.subr.mxu0 0.0
    %1832 = vmatpush1.msra.mxu0 0.0
    %1833 = vmatprep.subr.mxu0 0.0
    %1834 = vmatpush1.msra.mxu0 0.0
    %1835 = vmatprep.subr.mxu0 0.0
    %1836 = vmatpush1.msra.mxu0 0.0
    %1837 = vmatprep.subr.mxu0 0.0
    %1838 = vmatpush1.msra.mxu0 0.0
    %1839 = vmatprep.subr.mxu0 0.0
    %1840 = vmatpush1.msra.mxu0 0.0
    %1841 = vmatprep.subr.mxu0 0.0
    %1842 = vmatpush1.msra.mxu0 0.0
    %1843 = vmatprep.subr.mxu0 0.0
    %1844 = vmatpush1.msra.mxu0 0.0
    %1845 = vmatprep.mubr.f32.mxu0 0.0
    %1846 = vmatmul.mubr.f32.gmra.mrb[0].mxu0 %v1686
    %v1847 = vpop.f32.mrb[0].mxu0
    %v1848 = vadd.f32 %v1683, %v1847
    %v1849 = vpop.f32.mrb[0].mxu0
    %1850 = vmatprep.mubr.f32.mxu0 0.0
    %1851 = vmatmul.mubr.f32.gmra.mrb[0].mxu0 %v1689
    %v1852 = vpop.f32.mrb[0].mxu0
    %v1853 = vadd.f32 %v1683, %v1852
    %v1854 = vpop.f32.mrb[0].mxu0
    %1855 = vmatprep.mubr.f32.mxu0 0.0
    %1856 = vmatmul.mubr.f32.gmra.mrb[0].mxu0 %v1692
    %v1857 = vpop.f32.mrb[0].mxu0
    %v1858 = vadd.f32 %v1683, %v1857
    %v1859 = vpop.f32.mrb[0].mxu0
    %1860 = vmatprep.mubr.f32.mxu0 0.0
    %1861 = vmatmul.mubr.f32.gmra.mrb[0].mxu0 %v1695
    %v1862 = vpop.f32.mrb[0].mxu0
    %v1863 = vadd.f32 %v1683, %v1862
    %v1864 = vpop.f32.mrb[0].mxu0
    %1865 = vmatprep.mubr.f32.mxu0 0.0
    %1866 = vmatmul.mubr.f32.gmra.mrb[0].mxu0 %v1698
    %v1867 = vpop.f32.mrb[0].mxu0
    %v1868 = vadd.f32 %v1683, %v1867
    %v1869 = vpop.f32.mrb[0].mxu0
    %1870 = vmatprep.mubr.f32.mxu0 0.0
    %1871 = vmatmul.mubr.f32.gmra.mrb[0].mxu0 %v1701
    %v1872 = vpop.f32.mrb[0].mxu0
    %v1873 = vadd.f32 %v1683, %v1872
    %v1874 = vpop.f32.mrb[0].mxu0
    %1875 = vmatprep.mubr.f32.mxu0 0.0
    %1876 = vmatmul.mubr.f32.gmra.mrb[0].mxu0 %v1704
    %v1877 = vpop.f32.mrb[0].mxu0
    %v1878 = vadd.f32 %v1683, %v1877
    %v1879 = vpop.f32.mrb[0].mxu0
    %1880 = vmatprep.mubr.f32.mxu0 0.0
    %1881 = vmatmul.mubr.f32.gmra.mrb[0].mxu0 %v1707
    %v1882 = vpop.f32.mrb[0].mxu0
    %v1883 = vadd.f32 %v1683, %v1882
    %v1884 = vpop.f32.mrb[0].mxu0
    %1885 = vmatprep.mubr.f32.mxu0 0.0
    %1886 = vmatmul.mubr.f32.gmra.mrb[0].mxu0 %v1710
    %v1887 = vpop.f32.mrb[0].mxu0
    %v1888 = vadd.f32 %v1683, %v1887
    %v1889 = vpop.f32.mrb[0].mxu0
    %1890 = vmatprep.mubr.f32.mxu0 0.0
    %1891 = vmatmul.mubr.f32.gmra.mrb[0].mxu0 %v1713
    %v1892 = vpop.f32.mrb[0].mxu0
    %v1893 = vadd.f32 %v1683, %v1892
    %v1894 = vpop.f32.mrb[0].mxu0
    %1895 = vmatprep.mubr.f32.mxu0 0.0
    %1896 = vmatmul.mubr.f32.gmra.mrb[0].mxu0 %v1716
    %v1897 = vpop.f32.mrb[0].mxu0
    %v1898 = vadd.f32 %v1683, %v1897
    %v1899 = vpop.f32.mrb[0].mxu0
    %1900 = vmatprep.mubr.f32.mxu0 0.0
    %1901 = vmatmul.mubr.f32.gmra.mrb[0].mxu0 %v1719
    %v1902 = vpop.f32.mrb[0].mxu0
    %v1903 = vadd.f32 %v1683, %v1902
    %v1904 = vpop.f32.mrb[0].mxu0
    %1905 = vmatprep.mubr.f32.mxu0 0.0
    %1906 = vmatmul.mubr.f32.gmra.mrb[0].mxu0 %v1722
    %v1907 = vpop.f32.mrb[0].mxu0
    %v1908 = vadd.f32 %v1683, %v1907
    %v1909 = vpop.f32.mrb[0].mxu0
    %1910 = vmatprep.mubr.f32.mxu0 0.0
    %1911 = vmatmul.mubr.f32.gmra.mrb[0].mxu0 %v1725
    %v1912 = vpop.f32.mrb[0].mxu0
    %v1913 = vadd.f32 %v1683, %v1912
    %v1914 = vpop.f32.mrb[0].mxu0
    %1915 = vmatprep.mubr.f32.mxu0 0.0
    %1916 = vmatmul.mubr.f32.gmra.mrb[0].mxu0 %v1728
    %v1917 = vpop.f32.mrb[0].mxu0
    %v1918 = vadd.f32 %v1683, %v1917
    %v1919 = vpop.f32.mrb[0].mxu0
    %1920 = vmatprep.mubr.f32.mxu0 0.0
    %1921 = vmatmul.mubr.f32.gmra.mrb[0].mxu0 %v1731
    %v1922 = vpop.f32.mrb[0].mxu0
    %v1923 = vadd.f32 %v1683, %v1922
    %v1924 = vpop.f32.mrb[0].mxu0
    %1925 = vmatprep.mubr.f32.mxu0 0.0
    %1926 = vmatmul.mubr.f32.gmra.mrb[0].mxu0 %v1734
    %v1927 = vpop.f32.mrb[0].mxu0
    %v1928 = vadd.f32 %v1683, %v1927
    %v1929 = vpop.f32.mrb[0].mxu0
    %1930 = vmatprep.mubr.f32.mxu0 0.0
    %1931 = vmatmul.mubr.f32.gmra.mrb[0].mxu0 %v1737
    %v1932 = vpop.f32.mrb[0].mxu0
    %v1933 = vadd.f32 %v1683, %v1932
    %v1934 = vpop.f32.mrb[0].mxu0
    %1935 = vmatprep.mubr.f32.mxu0 0.0
    %1936 = vmatmul.mubr.f32.gmra.mrb[0].mxu0 %v1740
    %v1937 = vpop.f32.mrb[0].mxu0
    %v1938 = vadd.f32 %v1683, %v1937
    %v1939 = vpop.f32.mrb[0].mxu0
    %1940 = vmatprep.mubr.f32.mxu0 0.0
    %1941 = vmatmul.mubr.f32.gmra.mrb[0].mxu0 %v1743
    %v1942 = vpop.f32.mrb[0].mxu0
    %v1943 = vadd.f32 %v1683, %v1942
    %v1944 = vpop.f32.mrb[0].mxu0
    %1945 = vmatprep.mubr.f32.mxu0 0.0
    %1946 = vmatmul.mubr.f32.gmra.mrb[0].mxu0 %v1746
    %v1947 = vpop.f32.mrb[0].mxu0
    %v1948 = vadd.f32 %v1683, %v1947
    %v1949 = vpop.f32.mrb[0].mxu0
    %1950 = vmatprep.mubr.f32.mxu0 0.0
    %1951 = vmatmul.mubr.f32.gmra.mrb[0].mxu0 %v1749
    %v1952 = vpop.f32.mrb[0].mxu0
    %v1953 = vadd.f32 %v1683, %v1952
    %v1954 = vpop.f32.mrb[0].mxu0
    %1955 = vmatprep.mubr.f32.mxu0 0.0
    %1956 = vmatmul.mubr.f32.gmra.mrb[0].mxu0 %v1752
    %v1957 = vpop.f32.mrb[0].mxu0
    %v1958 = vadd.f32 %v1683, %v1957
    %v1959 = vpop.f32.mrb[0].mxu0
    %1960 = vmatprep.mubr.f32.mxu0 0.0
    %1961 = vmatmul.mubr.f32.gmra.mrb[0].mxu0 %v1755
    %v1962 = vpop.f32.mrb[0].mxu0
    %v1963 = vadd.f32 %v1683, %v1962
    %v1964 = vpop.f32.mrb[0].mxu0
    %1965 = vmatprep.mubr.f32.mxu0 0.0
    %1966 = vmatmul.mubr.f32.gmra.mrb[0].mxu0 %v1758
    %v1967 = vpop.f32.mrb[0].mxu0
    %v1968 = vadd.f32 %v1683, %v1967
    %v1969 = vpop.f32.mrb[0].mxu0
    %1970 = vmatprep.mubr.f32.mxu0 0.0
    %1971 = vmatmul.mubr.f32.gmra.mrb[0].mxu0 %v1761
    %v1972 = vpop.f32.mrb[0].mxu0
    %v1973 = vadd.f32 %v1683, %v1972
    %v1974 = vpop.f32.mrb[0].mxu0
    %1975 = vmatprep.mubr.f32.mxu0 0.0
    %1976 = vmatmul.mubr.f32.gmra.mrb[0].mxu0 %v1764
    %v1977 = vpop.f32.mrb[0].mxu0
    %v1978 = vadd.f32 %v1683, %v1977
    %v1979 = vpop.f32.mrb[0].mxu0
    %1980 = vmatprep.mubr.f32.mxu0 0.0
    %1981 = vmatmul.mubr.f32.gmra.mrb[0].mxu0 %v1767
    %v1982 = vpop.f32.mrb[0].mxu0
    %v1983 = vadd.f32 %v1683, %v1982
    %v1984 = vpop.f32.mrb[0].mxu0
    %1985 = vmatprep.mubr.f32.mxu0 0.0
    %1986 = vmatmul.mubr.f32.gmra.mrb[0].mxu0 %v1770
    %v1987 = vpop.f32.mrb[0].mxu0
    %v1988 = vadd.f32 %v1683, %v1987
    %v1989 = vpop.f32.mrb[0].mxu0
    %1990 = vmatprep.mubr.f32.mxu0 0.0
    %1991 = vmatmul.mubr.f32.gmra.mrb[0].mxu0 %v1773
    %v1992 = vpop.f32.mrb[0].mxu0
    %v1993 = vadd.f32 %v1683, %v1992
    %v1994 = vpop.f32.mrb[0].mxu0
    %1995 = vmatprep.mubr.f32.mxu0 0.0
    %1996 = vmatmul.mubr.f32.gmra.mrb[0].mxu0 %v1776
    %v1997 = vpop.f32.mrb[0].mxu0
    %v1998 = vadd.f32 %v1683, %v1997
    %v1999 = vpop.f32.mrb[0].mxu0
    %2000 = vmatprep.mubr.f32.mxu0 0.0
    %2001 = vmatmul.mubr.f32.gmra.mrb[0].mxu0 %v1779
    %v2002 = vpop.f32.mrb[0].mxu0
    %v2003 = vadd.f32 %v1683, %v2002
    %v2004 = vpop.f32.mrb[0].mxu0
    %2005 = vdwg.mxu0
    %v2006 = vld [vmem:[%s13] sm:$0xff]
    %v2007 = vld [vmem:[%s13 + $0x8] sm:$0xff]
    %v2008 = vld [vmem:[%s13 + $0x10] sm:$0xff]
    %v2009 = vld [vmem:[%s13 + $0x18] sm:$0xff]
    %v2010 = vld [vmem:[%s13 + $0x20] sm:$0xff]
    %v2011 = vld [vmem:[%s13 + $0x28] sm:$0xff]
    %v2012 = vld [vmem:[%s13 + $0x30] sm:$0xff]
    %v2013 = vld [vmem:[%s13 + $0x38] sm:$0xff]
    %v2015 = vsel %vm165, %v1858, 0
    %v2018 = vsel %vm165, %v1863, 0
    %v2021 = vsel %vm165, %v1938, 0
    %v2024 = vsel %vm165, %v1943, 0
    %2026 = vmatprep.subr.mxu0 0.0
    %2027 = vmatpush1.msra.mxu0 %v2010
    %2028 = vmatprep.subr.mxu0 0.0
    %2029 = vmatpush1.msra.mxu0 %v2011
    %2030 = vmatprep.subr.mxu0 0.0
    %2031 = vmatpush1.msra.mxu0 %v2012
    %2032 = vmatprep.subr.mxu0 0.0
    %2033 = vmatpush1.msra.mxu0 %v2013
    %2034 = vmatprep.subr.mxu0 0.0
    %2035 = vmatpush1.msra.mxu0 0.0
    %2036 = vmatprep.subr.mxu0 0.0
    %2037 = vmatpush1.msra.mxu0 0.0
    %2038 = vmatprep.subr.mxu0 0.0
    %2039 = vmatpush1.msra.mxu0 0.0
    %2040 = vmatprep.subr.mxu0 0.0
    %2041 = vmatpush1.msra.mxu0 0.0
    %2042 = vmatprep.subr.mxu0 0.0
    %2043 = vmatpush1.msra.mxu0 0.0
    %2044 = vmatprep.subr.mxu0 0.0
    %2045 = vmatpush1.msra.mxu0 0.0
    %2046 = vmatprep.subr.mxu0 0.0
    %2047 = vmatpush1.msra.mxu0 0.0
    %2048 = vmatprep.subr.mxu0 0.0
    %2049 = vmatpush1.msra.mxu0 0.0
    %2050 = vmatprep.subr.mxu0 0.0
    %2051 = vmatpush1.msra.mxu0 0.0
    %2052 = vmatprep.subr.mxu0 0.0
    %2053 = vmatpush1.msra.mxu0 0.0
    %2054 = vmatprep.subr.mxu0 0.0
    %2055 = vmatpush1.msra.mxu0 0.0
    %2056 = vmatprep.subr.mxu0 0.0
    %2057 = vmatpush1.msra.mxu0 0.0
    %2058 = vmatprep.subr.mxu0 0.0
    %2059 = vmatpush1.msra.mxu0 0.0
    %2060 = vmatprep.subr.mxu0 0.0
    %2061 = vmatpush1.msra.mxu0 0.0
    %2062 = vmatprep.subr.mxu0 0.0
    %2063 = vmatpush1.msra.mxu0 0.0
    %2064 = vmatprep.subr.mxu0 0.0
    %2065 = vmatpush1.msra.mxu0 0.0
    %2066 = vmatprep.subr.mxu0 0.0
    %2067 = vmatpush1.msra.mxu0 0.0
    %2068 = vmatprep.subr.mxu0 0.0
    %2069 = vmatpush1.msra.mxu0 0.0
    %2070 = vmatprep.subr.mxu0 0.0
    %2071 = vmatpush1.msra.mxu0 0.0
    %2072 = vmatprep.subr.mxu0 0.0
    %2073 = vmatpush1.msra.mxu0 0.0
    %2074 = vmatprep.subr.mxu0 0.0
    %2075 = vmatpush1.msra.mxu0 0.0
    %2076 = vmatprep.subr.mxu0 0.0
    %2077 = vmatpush1.msra.mxu0 0.0
    %2078 = vmatprep.subr.mxu0 0.0
    %2079 = vmatpush1.msra.mxu0 0.0
    %2080 = vmatprep.subr.mxu0 0.0
    %2081 = vmatpush1.msra.mxu0 0.0
    %2082 = vmatprep.subr.mxu0 0.0
    %2083 = vmatpush1.msra.mxu0 0.0
    %2084 = vmatprep.subr.mxu0 0.0
    %2085 = vmatpush1.msra.mxu0 0.0
    %2086 = vmatprep.subr.mxu0 0.0
    %2087 = vmatpush1.msra.mxu0 0.0
    %2088 = vmatprep.subr.mxu0 0.0
    %2089 = vmatpush1.msra.mxu0 0.0
    %2090 = vmatprep.mubr.f32.mxu0 0.0
    %2091 = vmatmul.mubr.f32.gmra.mrb[0].mxu0 %v2015
    %v2092 = vpop.f32.mrb[0].mxu0
    %v2093 = vadd.f32 0.0, %v2092
    %v2094 = vpop.f32.mrb[0].mxu0
    %2095 = vmatprep.mubr.f32.mxu0 0.0
    %2096 = vmatmul.mubr.f32.gmra.mrb[0].mxu0 %v2018
    %v2097 = vpop.f32.mrb[0].mxu0
    %v2098 = vadd.f32 0.0, %v2097
    %v2099 = vpop.f32.mrb[0].mxu0
    %2100 = vmatprep.mubr.f32.mxu0 0.0
    %2101 = vmatmul.mubr.f32.gmra.mrb[0].mxu0 %v2021
    %v2102 = vpop.f32.mrb[0].mxu0
    %v2103 = vadd.f32 0.0, %v2102
    %v2104 = vpop.f32.mrb[0].mxu0
    %2105 = vmatprep.mubr.f32.mxu0 0.0
    %2106 = vmatmul.mubr.f32.gmra.mrb[0].mxu0 %v2024
    %v2107 = vpop.f32.mrb[0].mxu0
    %v2108 = vadd.f32 0.0, %v2107
    %v2109 = vpop.f32.mrb[0].mxu0
    %2110 = vdwg.mxu0
    %v2112 = vsel %vm165, %v1848, 0
    %v2115 = vsel %vm165, %v1853, 0
    %v2118 = vsel %vm165, %v1928, 0
    %v2121 = vsel %vm165, %v1933, 0
    %2123 = vmatprep.subr.mxu0 0.0
    %2124 = vmatpush1.msra.mxu0 %v2006
    %2125 = vmatprep.subr.mxu0 0.0
    %2126 = vmatpush1.msra.mxu0 %v2007
    %2127 = vmatprep.subr.mxu0 0.0
    %2128 = vmatpush1.msra.mxu0 %v2008
    %2129 = vmatprep.subr.mxu0 0.0
    %2130 = vmatpush1.msra.mxu0 %v2009
    %2131 = vmatprep.subr.mxu0 0.0
    %2132 = vmatpush1.msra.mxu0 0.0
    %2133 = vmatprep.subr.mxu0 0.0
    %2134 = vmatpush1.msra.mxu0 0.0
    %2135 = vmatprep.subr.mxu0 0.0
    %2136 = vmatpush1.msra.mxu0 0.0
    %2137 = vmatprep.subr.mxu0 0.0
    %2138 = vmatpush1.msra.mxu0 0.0
    %2139 = vmatprep.subr.mxu0 0.0
    %2140 = vmatpush1.msra.mxu0 0.0
    %2141 = vmatprep.subr.mxu0 0.0
    %2142 = vmatpush1.msra.mxu0 0.0
    %2143 = vmatprep.subr.mxu0 0.0
    %2144 = vmatpush1.msra.mxu0 0.0
    %2145 = vmatprep.subr.mxu0 0.0
    %2146 = vmatpush1.msra.mxu0 0.0
    %2147 = vmatprep.subr.mxu0 0.0
    %2148 = vmatpush1.msra.mxu0 0.0
    %2149 = vmatprep.subr.mxu0 0.0
    %2150 = vmatpush1.msra.mxu0 0.0
    %2151 = vmatprep.subr.mxu0 0.0
    %2152 = vmatpush1.msra.mxu0 0.0
    %2153 = vmatprep.subr.mxu0 0.0
    %2154 = vmatpush1.msra.mxu0 0.0
    %2155 = vmatprep.subr.mxu0 0.0
    %2156 = vmatpush1.msra.mxu0 0.0
    %2157 = vmatprep.subr.mxu0 0.0
    %2158 = vmatpush1.msra.mxu0 0.0
    %2159 = vmatprep.subr.mxu0 0.0
    %2160 = vmatpush1.msra.mxu0 0.0
    %2161 = vmatprep.subr.mxu0 0.0
    %2162 = vmatpush1.msra.mxu0 0.0
    %2163 = vmatprep.subr.mxu0 0.0
    %2164 = vmatpush1.msra.mxu0 0.0
    %2165 = vmatprep.subr.mxu0 0.0
    %2166 = vmatpush1.msra.mxu0 0.0
    %2167 = vmatprep.subr.mxu0 0.0
    %2168 = vmatpush1.msra.mxu0 0.0
    %2169 = vmatprep.subr.mxu0 0.0
    %2170 = vmatpush1.msra.mxu0 0.0
    %2171 = vmatprep.subr.mxu0 0.0
    %2172 = vmatpush1.msra.mxu0 0.0
    %2173 = vmatprep.subr.mxu0 0.0
    %2174 = vmatpush1.msra.mxu0 0.0
    %2175 = vmatprep.subr.mxu0 0.0
    %2176 = vmatpush1.msra.mxu0 0.0
    %2177 = vmatprep.subr.mxu0 0.0
    %2178 = vmatpush1.msra.mxu0 0.0
    %2179 = vmatprep.subr.mxu0 0.0
    %2180 = vmatpush1.msra.mxu0 0.0
    %2181 = vmatprep.subr.mxu0 0.0
    %2182 = vmatpush1.msra.mxu0 0.0
    %2183 = vmatprep.subr.mxu0 0.0
    %2184 = vmatpush1.msra.mxu0 0.0
    %2185 = vmatprep.subr.mxu0 0.0
    %2186 = vmatpush1.msra.mxu0 0.0
    %2187 = vmatprep.mubr.f32.mxu0 0.0
    %2188 = vmatmul.mubr.f32.gmra.mrb[0].mxu0 %v2112
    %v2189 = vpop.f32.mrb[0].mxu0
    %v2190 = vadd.f32 %v2093, %v2189
    %v2191 = vpop.f32.mrb[0].mxu0
    %2192 = vmatprep.mubr.f32.mxu0 0.0
    %2193 = vmatmul.mubr.f32.gmra.mrb[0].mxu0 %v2115
    %v2194 = vpop.f32.mrb[0].mxu0
    %v2195 = vadd.f32 %v2098, %v2194
    %v2196 = vpop.f32.mrb[0].mxu0
    %2197 = vmatprep.mubr.f32.mxu0 0.0
    %2198 = vmatmul.mubr.f32.gmra.mrb[0].mxu0 %v2118
    %v2199 = vpop.f32.mrb[0].mxu0
    %v2200 = vadd.f32 %v2103, %v2199
    %v2201 = vpop.f32.mrb[0].mxu0
    %2202 = vmatprep.mubr.f32.mxu0 0.0
    %2203 = vmatmul.mubr.f32.gmra.mrb[0].mxu0 %v2121
    %v2204 = vpop.f32.mrb[0].mxu0
    %v2205 = vadd.f32 %v2108, %v2204
    %v2206 = vpop.f32.mrb[0].mxu0
    %2207 = vdwg.mxu0
    %v2208 = vld [vmem:[%s13 + $0x40] sm:$0xff]
    %v2209 = vld [vmem:[%s13 + $0x48] sm:$0xff]
    %v2210 = vld [vmem:[%s13 + $0x50] sm:$0xff]
    %v2211 = vld [vmem:[%s13 + $0x58] sm:$0xff]
    %v2213 = vsel %vm165, %v1868, 0
    %v2216 = vsel %vm165, %v1873, 0
    %v2219 = vsel %vm165, %v1948, 0
    %v2222 = vsel %vm165, %v1953, 0
    %2224 = vmatprep.subr.mxu0 0.0
    %2225 = vmatpush1.msra.mxu0 %v2208
    %2226 = vmatprep.subr.mxu0 0.0
    %2227 = vmatpush1.msra.mxu0 %v2209
    %2228 = vmatprep.subr.mxu0 0.0
    %2229 = vmatpush1.msra.mxu0 %v2210
    %2230 = vmatprep.subr.mxu0 0.0
    %2231 = vmatpush1.msra.mxu0 %v2211
    %2232 = vmatprep.subr.mxu0 0.0
    %2233 = vmatpush1.msra.mxu0 0.0
    %2234 = vmatprep.subr.mxu0 0.0
    %2235 = vmatpush1.msra.mxu0 0.0
    %2236 = vmatprep.subr.mxu0 0.0
    %2237 = vmatpush1.msra.mxu0 0.0
    %2238 = vmatprep.subr.mxu0 0.0
    %2239 = vmatpush1.msra.mxu0 0.0
    %2240 = vmatprep.subr.mxu0 0.0
    %2241 = vmatpush1.msra.mxu0 0.0
    %2242 = vmatprep.subr.mxu0 0.0
    %2243 = vmatpush1.msra.mxu0 0.0
    %2244 = vmatprep.subr.mxu0 0.0
    %2245 = vmatpush1.msra.mxu0 0.0
    %2246 = vmatprep.subr.mxu0 0.0
    %2247 = vmatpush1.msra.mxu0 0.0
    %2248 = vmatprep.subr.mxu0 0.0
    %2249 = vmatpush1.msra.mxu0 0.0
    %2250 = vmatprep.subr.mxu0 0.0
    %2251 = vmatpush1.msra.mxu0 0.0
    %2252 = vmatprep.subr.mxu0 0.0
    %2253 = vmatpush1.msra.mxu0 0.0
    %2254 = vmatprep.subr.mxu0 0.0
    %2255 = vmatpush1.msra.mxu0 0.0
    %2256 = vmatprep.subr.mxu0 0.0
    %2257 = vmatpush1.msra.mxu0 0.0
    %2258 = vmatprep.subr.mxu0 0.0
    %2259 = vmatpush1.msra.mxu0 0.0
    %2260 = vmatprep.subr.mxu0 0.0
    %2261 = vmatpush1.msra.mxu0 0.0
    %2262 = vmatprep.subr.mxu0 0.0
    %2263 = vmatpush1.msra.mxu0 0.0
    %2264 = vmatprep.subr.mxu0 0.0
    %2265 = vmatpush1.msra.mxu0 0.0
    %2266 = vmatprep.subr.mxu0 0.0
    %2267 = vmatpush1.msra.mxu0 0.0
    %2268 = vmatprep.subr.mxu0 0.0
    %2269 = vmatpush1.msra.mxu0 0.0
    %2270 = vmatprep.subr.mxu0 0.0
    %2271 = vmatpush1.msra.mxu0 0.0
    %2272 = vmatprep.subr.mxu0 0.0
    %2273 = vmatpush1.msra.mxu0 0.0
    %2274 = vmatprep.subr.mxu0 0.0
    %2275 = vmatpush1.msra.mxu0 0.0
    %2276 = vmatprep.subr.mxu0 0.0
    %2277 = vmatpush1.msra.mxu0 0.0
    %2278 = vmatprep.subr.mxu0 0.0
    %2279 = vmatpush1.msra.mxu0 0.0
    %2280 = vmatprep.subr.mxu0 0.0
    %2281 = vmatpush1.msra.mxu0 0.0
    %2282 = vmatprep.subr.mxu0 0.0
    %2283 = vmatpush1.msra.mxu0 0.0
    %2284 = vmatprep.subr.mxu0 0.0
    %2285 = vmatpush1.msra.mxu0 0.0
    %2286 = vmatprep.subr.mxu0 0.0
    %2287 = vmatpush1.msra.mxu0 0.0
    %2288 = vmatprep.mubr.f32.mxu0 0.0
    %2289 = vmatmul.mubr.f32.gmra.mrb[0].mxu0 %v2213
    %v2290 = vpop.f32.mrb[0].mxu0
    %v2291 = vadd.f32 0.0, %v2290
    %v2292 = vpop.f32.mrb[0].mxu0
    %2293 = vmatprep.mubr.f32.mxu0 0.0
    %2294 = vmatmul.mubr.f32.gmra.mrb[0].mxu0 %v2216
    %v2295 = vpop.f32.mrb[0].mxu0
    %v2296 = vadd.f32 0.0, %v2295
    %v2297 = vpop.f32.mrb[0].mxu0
    %2298 = vmatprep.mubr.f32.mxu0 0.0
    %2299 = vmatmul.mubr.f32.gmra.mrb[0].mxu0 %v2219
    %v2300 = vpop.f32.mrb[0].mxu0
    %v2301 = vadd.f32 0.0, %v2300
    %v2302 = vpop.f32.mrb[0].mxu0
    %2303 = vmatprep.mubr.f32.mxu0 0.0
    %2304 = vmatmul.mubr.f32.gmra.mrb[0].mxu0 %v2222
    %v2305 = vpop.f32.mrb[0].mxu0
    %v2306 = vadd.f32 0.0, %v2305
    %v2307 = vpop.f32.mrb[0].mxu0
    %2308 = vdwg.mxu0
    %v2309 = vadd.f32 %v2190, %v2291
    %v2310 = vadd.f32 %v2195, %v2296
    %v2311 = vadd.f32 %v2200, %v2301
    %v2312 = vadd.f32 %v2205, %v2306
    %v2313 = vld [vmem:[%s13 + $0x60] sm:$0xff]
    %v2314 = vld [vmem:[%s13 + $0x68] sm:$0xff]
    %v2315 = vld [vmem:[%s13 + $0x70] sm:$0xff]
    %v2316 = vld [vmem:[%s13 + $0x78] sm:$0xff]
    %v2318 = vsel %vm165, %v1878, 0
    %v2321 = vsel %vm165, %v1883, 0
    %v2324 = vsel %vm165, %v1958, 0
    %v2327 = vsel %vm165, %v1963, 0
    %2329 = vmatprep.subr.mxu0 0.0
    %2330 = vmatpush1.msra.mxu0 %v2313
    %2331 = vmatprep.subr.mxu0 0.0
    %2332 = vmatpush1.msra.mxu0 %v2314
    %2333 = vmatprep.subr.mxu0 0.0
    %2334 = vmatpush1.msra.mxu0 %v2315
    %2335 = vmatprep.subr.mxu0 0.0
    %2336 = vmatpush1.msra.mxu0 %v2316
    %2337 = vmatprep.subr.mxu0 0.0
    %2338 = vmatpush1.msra.mxu0 0.0
    %2339 = vmatprep.subr.mxu0 0.0
    %2340 = vmatpush1.msra.mxu0 0.0
    %2341 = vmatprep.subr.mxu0 0.0
    %2342 = vmatpush1.msra.mxu0 0.0
    %2343 = vmatprep.subr.mxu0 0.0
    %2344 = vmatpush1.msra.mxu0 0.0
    %2345 = vmatprep.subr.mxu0 0.0
    %2346 = vmatpush1.msra.mxu0 0.0
    %2347 = vmatprep.subr.mxu0 0.0
    %2348 = vmatpush1.msra.mxu0 0.0
    %2349 = vmatprep.subr.mxu0 0.0
    %2350 = vmatpush1.msra.mxu0 0.0
    %2351 = vmatprep.subr.mxu0 0.0
    %2352 = vmatpush1.msra.mxu0 0.0
    %2353 = vmatprep.subr.mxu0 0.0
    %2354 = vmatpush1.msra.mxu0 0.0
    %2355 = vmatprep.subr.mxu0 0.0
    %2356 = vmatpush1.msra.mxu0 0.0
    %2357 = vmatprep.subr.mxu0 0.0
    %2358 = vmatpush1.msra.mxu0 0.0
    %2359 = vmatprep.subr.mxu0 0.0
    %2360 = vmatpush1.msra.mxu0 0.0
    %2361 = vmatprep.subr.mxu0 0.0
    %2362 = vmatpush1.msra.mxu0 0.0
    %2363 = vmatprep.subr.mxu0 0.0
    %2364 = vmatpush1.msra.mxu0 0.0
    %2365 = vmatprep.subr.mxu0 0.0
    %2366 = vmatpush1.msra.mxu0 0.0
    %2367 = vmatprep.subr.mxu0 0.0
    %2368 = vmatpush1.msra.mxu0 0.0
    %2369 = vmatprep.subr.mxu0 0.0
    %2370 = vmatpush1.msra.mxu0 0.0
    %2371 = vmatprep.subr.mxu0 0.0
    %2372 = vmatpush1.msra.mxu0 0.0
    %2373 = vmatprep.subr.mxu0 0.0
    %2374 = vmatpush1.msra.mxu0 0.0
    %2375 = vmatprep.subr.mxu0 0.0
    %2376 = vmatpush1.msra.mxu0 0.0
    %2377 = vmatprep.subr.mxu0 0.0
    %2378 = vmatpush1.msra.mxu0 0.0
    %2379 = vmatprep.subr.mxu0 0.0
    %2380 = vmatpush1.msra.mxu0 0.0
    %2381 = vmatprep.subr.mxu0 0.0
    %2382 = vmatpush1.msra.mxu0 0.0
    %2383 = vmatprep.subr.mxu0 0.0
    %2384 = vmatpush1.msra.mxu0 0.0
    %2385 = vmatprep.subr.mxu0 0.0
    %2386 = vmatpush1.msra.mxu0 0.0
    %2387 = vmatprep.subr.mxu0 0.0
    %2388 = vmatpush1.msra.mxu0 0.0
    %2389 = vmatprep.subr.mxu0 0.0
    %2390 = vmatpush1.msra.mxu0 0.0
    %2391 = vmatprep.subr.mxu0 0.0
    %2392 = vmatpush1.msra.mxu0 0.0
    %2393 = vmatprep.mubr.f32.mxu0 0.0
    %2394 = vmatmul.mubr.f32.gmra.mrb[0].mxu0 %v2318
    %v2395 = vpop.f32.mrb[0].mxu0
    %v2396 = vadd.f32 0.0, %v2395
    %v2397 = vpop.f32.mrb[0].mxu0
    %2398 = vmatprep.mubr.f32.mxu0 0.0
    %2399 = vmatmul.mubr.f32.gmra.mrb[0].mxu0 %v2321
    %v2400 = vpop.f32.mrb[0].mxu0
    %v2401 = vadd.f32 0.0, %v2400
    %v2402 = vpop.f32.mrb[0].mxu0
    %2403 = vmatprep.mubr.f32.mxu0 0.0
    %2404 = vmatmul.mubr.f32.gmra.mrb[0].mxu0 %v2324
    %v2405 = vpop.f32.mrb[0].mxu0
    %v2406 = vadd.f32 0.0, %v2405
    %v2407 = vpop.f32.mrb[0].mxu0
    %2408 = vmatprep.mubr.f32.mxu0 0.0
    %2409 = vmatmul.mubr.f32.gmra.mrb[0].mxu0 %v2327
    %v2410 = vpop.f32.mrb[0].mxu0
    %v2411 = vadd.f32 0.0, %v2410
    %v2412 = vpop.f32.mrb[0].mxu0
    %2413 = vdwg.mxu0
    %v2414 = vadd.f32 %v2309, %v2396
    %v2415 = vadd.f32 %v2310, %v2401
    %v2416 = vadd.f32 %v2311, %v2406
    %v2417 = vadd.f32 %v2312, %v2411
    %v2418 = vld [vmem:[%s13 + $0x80] sm:$0xff]
    %v2419 = vld [vmem:[%s13 + $0x88] sm:$0xff]
    %v2420 = vld [vmem:[%s13 + $0x90] sm:$0xff]
    %v2421 = vld [vmem:[%s13 + $0x98] sm:$0xff]
    %v2423 = vsel %vm165, %v1888, 0
    %v2426 = vsel %vm165, %v1893, 0
    %v2429 = vsel %vm165, %v1968, 0
    %v2432 = vsel %vm165, %v1973, 0
    %2434 = vmatprep.subr.mxu0 0.0
    %2435 = vmatpush1.msra.mxu0 %v2418
    %2436 = vmatprep.subr.mxu0 0.0
    %2437 = vmatpush1.msra.mxu0 %v2419
    %2438 = vmatprep.subr.mxu0 0.0
    %2439 = vmatpush1.msra.mxu0 %v2420
    %2440 = vmatprep.subr.mxu0 0.0
    %2441 = vmatpush1.msra.mxu0 %v2421
    %2442 = vmatprep.subr.mxu0 0.0
    %2443 = vmatpush1.msra.mxu0 0.0
    %2444 = vmatprep.subr.mxu0 0.0
    %2445 = vmatpush1.msra.mxu0 0.0
    %2446 = vmatprep.subr.mxu0 0.0
    %2447 = vmatpush1.msra.mxu0 0.0
    %2448 = vmatprep.subr.mxu0 0.0
    %2449 = vmatpush1.msra.mxu0 0.0
    %2450 = vmatprep.subr.mxu0 0.0
    %2451 = vmatpush1.msra.mxu0 0.0
    %2452 = vmatprep.subr.mxu0 0.0
    %2453 = vmatpush1.msra.mxu0 0.0
    %2454 = vmatprep.subr.mxu0 0.0
    %2455 = vmatpush1.msra.mxu0 0.0
    %2456 = vmatprep.subr.mxu0 0.0
    %2457 = vmatpush1.msra.mxu0 0.0
    %2458 = vmatprep.subr.mxu0 0.0
    %2459 = vmatpush1.msra.mxu0 0.0
    %2460 = vmatprep.subr.mxu0 0.0
    %2461 = vmatpush1.msra.mxu0 0.0
    %2462 = vmatprep.subr.mxu0 0.0
    %2463 = vmatpush1.msra.mxu0 0.0
    %2464 = vmatprep.subr.mxu0 0.0
    %2465 = vmatpush1.msra.mxu0 0.0
    %2466 = vmatprep.subr.mxu0 0.0
    %2467 = vmatpush1.msra.mxu0 0.0
    %2468 = vmatprep.subr.mxu0 0.0
    %2469 = vmatpush1.msra.mxu0 0.0
    %2470 = vmatprep.subr.mxu0 0.0
    %2471 = vmatpush1.msra.mxu0 0.0
    %2472 = vmatprep.subr.mxu0 0.0
    %2473 = vmatpush1.msra.mxu0 0.0
    %2474 = vmatprep.subr.mxu0 0.0
    %2475 = vmatpush1.msra.mxu0 0.0
    %2476 = vmatprep.subr.mxu0 0.0
    %2477 = vmatpush1.msra.mxu0 0.0
    %2478 = vmatprep.subr.mxu0 0.0
    %2479 = vmatpush1.msra.mxu0 0.0
    %2480 = vmatprep.subr.mxu0 0.0
    %2481 = vmatpush1.msra.mxu0 0.0
    %2482 = vmatprep.subr.mxu0 0.0
    %2483 = vmatpush1.msra.mxu0 0.0
    %2484 = vmatprep.subr.mxu0 0.0
    %2485 = vmatpush1.msra.mxu0 0.0
    %2486 = vmatprep.subr.mxu0 0.0
    %2487 = vmatpush1.msra.mxu0 0.0
    %2488 = vmatprep.subr.mxu0 0.0
    %2489 = vmatpush1.msra.mxu0 0.0
    %2490 = vmatprep.subr.mxu0 0.0
    %2491 = vmatpush1.msra.mxu0 0.0
    %2492 = vmatprep.subr.mxu0 0.0
    %2493 = vmatpush1.msra.mxu0 0.0
    %2494 = vmatprep.subr.mxu0 0.0
    %2495 = vmatpush1.msra.mxu0 0.0
    %2496 = vmatprep.subr.mxu0 0.0
    %2497 = vmatpush1.msra.mxu0 0.0
    %2498 = vmatprep.mubr.f32.mxu0 0.0
    %2499 = vmatmul.mubr.f32.gmra.mrb[0].mxu0 %v2423
    %v2500 = vpop.f32.mrb[0].mxu0
    %v2501 = vadd.f32 0.0, %v2500
    %v2502 = vpop.f32.mrb[0].mxu0
    %2503 = vmatprep.mubr.f32.mxu0 0.0
    %2504 = vmatmul.mubr.f32.gmra.mrb[0].mxu0 %v2426
    %v2505 = vpop.f32.mrb[0].mxu0
    %v2506 = vadd.f32 0.0, %v2505
    %v2507 = vpop.f32.mrb[0].mxu0
    %2508 = vmatprep.mubr.f32.mxu0 0.0
    %2509 = vmatmul.mubr.f32.gmra.mrb[0].mxu0 %v2429
    %v2510 = vpop.f32.mrb[0].mxu0
    %v2511 = vadd.f32 0.0, %v2510
    %v2512 = vpop.f32.mrb[0].mxu0
    %2513 = vmatprep.mubr.f32.mxu0 0.0
    %2514 = vmatmul.mubr.f32.gmra.mrb[0].mxu0 %v2432
    %v2515 = vpop.f32.mrb[0].mxu0
    %v2516 = vadd.f32 0.0, %v2515
    %v2517 = vpop.f32.mrb[0].mxu0
    %2518 = vdwg.mxu0
    %v2519 = vadd.f32 %v2414, %v2501
    %v2520 = vadd.f32 %v2415, %v2506
    %v2521 = vadd.f32 %v2416, %v2511
    %v2522 = vadd.f32 %v2417, %v2516
    %v2523 = vld [vmem:[%s13 + $0xa0] sm:$0xff]
    %v2524 = vld [vmem:[%s13 + $0xa8] sm:$0xff]
    %v2525 = vld [vmem:[%s13 + $0xb0] sm:$0xff]
    %v2526 = vld [vmem:[%s13 + $0xb8] sm:$0xff]
    %v2528 = vsel %vm165, %v1898, 0
    %v2531 = vsel %vm165, %v1903, 0
    %v2534 = vsel %vm165, %v1978, 0
    %v2537 = vsel %vm165, %v1983, 0
    %2539 = vmatprep.subr.mxu0 0.0
    %2540 = vmatpush1.msra.mxu0 %v2523
    %2541 = vmatprep.subr.mxu0 0.0
    %2542 = vmatpush1.msra.mxu0 %v2524
    %2543 = vmatprep.subr.mxu0 0.0
    %2544 = vmatpush1.msra.mxu0 %v2525
    %2545 = vmatprep.subr.mxu0 0.0
    %2546 = vmatpush1.msra.mxu0 %v2526
    %2547 = vmatprep.subr.mxu0 0.0
    %2548 = vmatpush1.msra.mxu0 0.0
    %2549 = vmatprep.subr.mxu0 0.0
    %2550 = vmatpush1.msra.mxu0 0.0
    %2551 = vmatprep.subr.mxu0 0.0
    %2552 = vmatpush1.msra.mxu0 0.0
    %2553 = vmatprep.subr.mxu0 0.0
    %2554 = vmatpush1.msra.mxu0 0.0
    %2555 = vmatprep.subr.mxu0 0.0
    %2556 = vmatpush1.msra.mxu0 0.0
    %2557 = vmatprep.subr.mxu0 0.0
    %2558 = vmatpush1.msra.mxu0 0.0
    %2559 = vmatprep.subr.mxu0 0.0
    %2560 = vmatpush1.msra.mxu0 0.0
    %2561 = vmatprep.subr.mxu0 0.0
    %2562 = vmatpush1.msra.mxu0 0.0
    %2563 = vmatprep.subr.mxu0 0.0
    %2564 = vmatpush1.msra.mxu0 0.0
    %2565 = vmatprep.subr.mxu0 0.0
    %2566 = vmatpush1.msra.mxu0 0.0
    %2567 = vmatprep.subr.mxu0 0.0
    %2568 = vmatpush1.msra.mxu0 0.0
    %2569 = vmatprep.subr.mxu0 0.0
    %2570 = vmatpush1.msra.mxu0 0.0
    %2571 = vmatprep.subr.mxu0 0.0
    %2572 = vmatpush1.msra.mxu0 0.0
    %2573 = vmatprep.subr.mxu0 0.0
    %2574 = vmatpush1.msra.mxu0 0.0
    %2575 = vmatprep.subr.mxu0 0.0
    %2576 = vmatpush1.msra.mxu0 0.0
    %2577 = vmatprep.subr.mxu0 0.0
    %2578 = vmatpush1.msra.mxu0 0.0
    %2579 = vmatprep.subr.mxu0 0.0
    %2580 = vmatpush1.msra.mxu0 0.0
    %2581 = vmatprep.subr.mxu0 0.0
    %2582 = vmatpush1.msra.mxu0 0.0
    %2583 = vmatprep.subr.mxu0 0.0
    %2584 = vmatpush1.msra.mxu0 0.0
    %2585 = vmatprep.subr.mxu0 0.0
    %2586 = vmatpush1.msra.mxu0 0.0
    %2587 = vmatprep.subr.mxu0 0.0
    %2588 = vmatpush1.msra.mxu0 0.0
    %2589 = vmatprep.subr.mxu0 0.0
    %2590 = vmatpush1.msra.mxu0 0.0
    %2591 = vmatprep.subr.mxu0 0.0
    %2592 = vmatpush1.msra.mxu0 0.0
    %2593 = vmatprep.subr.mxu0 0.0
    %2594 = vmatpush1.msra.mxu0 0.0
    %2595 = vmatprep.subr.mxu0 0.0
    %2596 = vmatpush1.msra.mxu0 0.0
    %2597 = vmatprep.subr.mxu0 0.0
    %2598 = vmatpush1.msra.mxu0 0.0
    %2599 = vmatprep.subr.mxu0 0.0
    %2600 = vmatpush1.msra.mxu0 0.0
    %2601 = vmatprep.subr.mxu0 0.0
    %2602 = vmatpush1.msra.mxu0 0.0
    %2603 = vmatprep.mubr.f32.mxu0 0.0
    %2604 = vmatmul.mubr.f32.gmra.mrb[0].mxu0 %v2528
    %v2605 = vpop.f32.mrb[0].mxu0
    %v2606 = vadd.f32 0.0, %v2605
    %v2607 = vpop.f32.mrb[0].mxu0
    %2608 = vmatprep.mubr.f32.mxu0 0.0
    %2609 = vmatmul.mubr.f32.gmra.mrb[0].mxu0 %v2531
    %v2610 = vpop.f32.mrb[0].mxu0
    %v2611 = vadd.f32 0.0, %v2610
    %v2612 = vpop.f32.mrb[0].mxu0
    %2613 = vmatprep.mubr.f32.mxu0 0.0
    %2614 = vmatmul.mubr.f32.gmra.mrb[0].mxu0 %v2534
    %v2615 = vpop.f32.mrb[0].mxu0
    %v2616 = vadd.f32 0.0, %v2615
    %v2617 = vpop.f32.mrb[0].mxu0
    %2618 = vmatprep.mubr.f32.mxu0 0.0
    %2619 = vmatmul.mubr.f32.gmra.mrb[0].mxu0 %v2537
    %v2620 = vpop.f32.mrb[0].mxu0
    %v2621 = vadd.f32 0.0, %v2620
    %v2622 = vpop.f32.mrb[0].mxu0
    %2623 = vdwg.mxu0
    %v2624 = vadd.f32 %v2519, %v2606
    %v2625 = vadd.f32 %v2520, %v2611
    %v2626 = vadd.f32 %v2521, %v2616
    %v2627 = vadd.f32 %v2522, %v2621
    %v2628 = vld [vmem:[%s13 + $0xc0] sm:$0xff]
    %v2629 = vld [vmem:[%s13 + $0xc8] sm:$0xff]
    %v2630 = vld [vmem:[%s13 + $0xd0] sm:$0xff]
    %v2631 = vld [vmem:[%s13 + $0xd8] sm:$0xff]
    %v2633 = vsel %vm165, %v1908, 0
    %v2636 = vsel %vm165, %v1913, 0
    %v2639 = vsel %vm165, %v1988, 0
    %v2642 = vsel %vm165, %v1993, 0
    %2644 = vmatprep.subr.mxu0 0.0
    %2645 = vmatpush1.msra.mxu0 %v2628
    %2646 = vmatprep.subr.mxu0 0.0
    %2647 = vmatpush1.msra.mxu0 %v2629
    %2648 = vmatprep.subr.mxu0 0.0
    %2649 = vmatpush1.msra.mxu0 %v2630
    %2650 = vmatprep.subr.mxu0 0.0
    %2651 = vmatpush1.msra.mxu0 %v2631
    %2652 = vmatprep.subr.mxu0 0.0
    %2653 = vmatpush1.msra.mxu0 0.0
    %2654 = vmatprep.subr.mxu0 0.0
    %2655 = vmatpush1.msra.mxu0 0.0
    %2656 = vmatprep.subr.mxu0 0.0
    %2657 = vmatpush1.msra.mxu0 0.0
    %2658 = vmatprep.subr.mxu0 0.0
    %2659 = vmatpush1.msra.mxu0 0.0
    %2660 = vmatprep.subr.mxu0 0.0
    %2661 = vmatpush1.msra.mxu0 0.0
    %2662 = vmatprep.subr.mxu0 0.0
    %2663 = vmatpush1.msra.mxu0 0.0
    %2664 = vmatprep.subr.mxu0 0.0
    %2665 = vmatpush1.msra.mxu0 0.0
    %2666 = vmatprep.subr.mxu0 0.0
    %2667 = vmatpush1.msra.mxu0 0.0
    %2668 = vmatprep.subr.mxu0 0.0
    %2669 = vmatpush1.msra.mxu0 0.0
    %2670 = vmatprep.subr.mxu0 0.0
    %2671 = vmatpush1.msra.mxu0 0.0
    %2672 = vmatprep.subr.mxu0 0.0
    %2673 = vmatpush1.msra.mxu0 0.0
    %2674 = vmatprep.subr.mxu0 0.0
    %2675 = vmatpush1.msra.mxu0 0.0
    %2676 = vmatprep.subr.mxu0 0.0
    %2677 = vmatpush1.msra.mxu0 0.0
    %2678 = vmatprep.subr.mxu0 0.0
    %2679 = vmatpush1.msra.mxu0 0.0
    %2680 = vmatprep.subr.mxu0 0.0
    %2681 = vmatpush1.msra.mxu0 0.0
    %2682 = vmatprep.subr.mxu0 0.0
    %2683 = vmatpush1.msra.mxu0 0.0
    %2684 = vmatprep.subr.mxu0 0.0
    %2685 = vmatpush1.msra.mxu0 0.0
    %2686 = vmatprep.subr.mxu0 0.0
    %2687 = vmatpush1.msra.mxu0 0.0
    %2688 = vmatprep.subr.mxu0 0.0
    %2689 = vmatpush1.msra.mxu0 0.0
    %2690 = vmatprep.subr.mxu0 0.0
    %2691 = vmatpush1.msra.mxu0 0.0
    %2692 = vmatprep.subr.mxu0 0.0
    %2693 = vmatpush1.msra.mxu0 0.0
    %2694 = vmatprep.subr.mxu0 0.0
    %2695 = vmatpush1.msra.mxu0 0.0
    %2696 = vmatprep.subr.mxu0 0.0
    %2697 = vmatpush1.msra.mxu0 0.0
    %2698 = vmatprep.subr.mxu0 0.0
    %2699 = vmatpush1.msra.mxu0 0.0
    %2700 = vmatprep.subr.mxu0 0.0
    %2701 = vmatpush1.msra.mxu0 0.0
    %2702 = vmatprep.subr.mxu0 0.0
    %2703 = vmatpush1.msra.mxu0 0.0
    %2704 = vmatprep.subr.mxu0 0.0
    %2705 = vmatpush1.msra.mxu0 0.0
    %2706 = vmatprep.subr.mxu0 0.0
    %2707 = vmatpush1.msra.mxu0 0.0
    %2708 = vmatprep.mubr.f32.mxu0 0.0
    %2709 = vmatmul.mubr.f32.gmra.mrb[0].mxu0 %v2633
    %v2710 = vpop.f32.mrb[0].mxu0
    %v2711 = vadd.f32 0.0, %v2710
    %v2712 = vpop.f32.mrb[0].mxu0
    %2713 = vmatprep.mubr.f32.mxu0 0.0
    %2714 = vmatmul.mubr.f32.gmra.mrb[0].mxu0 %v2636
    %v2715 = vpop.f32.mrb[0].mxu0
    %v2716 = vadd.f32 0.0, %v2715
    %v2717 = vpop.f32.mrb[0].mxu0
    %2718 = vmatprep.mubr.f32.mxu0 0.0
    %2719 = vmatmul.mubr.f32.gmra.mrb[0].mxu0 %v2639
    %v2720 = vpop.f32.mrb[0].mxu0
    %v2721 = vadd.f32 0.0, %v2720
    %v2722 = vpop.f32.mrb[0].mxu0
    %2723 = vmatprep.mubr.f32.mxu0 0.0
    %2724 = vmatmul.mubr.f32.gmra.mrb[0].mxu0 %v2642
    %v2725 = vpop.f32.mrb[0].mxu0
    %v2726 = vadd.f32 0.0, %v2725
    %v2727 = vpop.f32.mrb[0].mxu0
    %2728 = vdwg.mxu0
    %v2729 = vadd.f32 %v2624, %v2711
    %v2730 = vadd.f32 %v2625, %v2716
    %v2731 = vadd.f32 %v2626, %v2721
    %v2732 = vadd.f32 %v2627, %v2726
    %v2733 = vld [vmem:[%s13 + $0xe0] sm:$0xff]
    %v2734 = vld [vmem:[%s13 + $0xe8] sm:$0xff]
    %v2735 = vld [vmem:[%s13 + $0xf0] sm:$0xff]
    %v2736 = vld [vmem:[%s13 + $0xf8] sm:$0xff]
    %v2738 = vsel %vm165, %v1918, 0
    %v2741 = vsel %vm165, %v1923, 0
    %v2744 = vsel %vm165, %v1998, 0
    %v2747 = vsel %vm165, %v2003, 0
    %2749 = vmatprep.subr.mxu0 0.0
    %2750 = vmatpush1.msra.mxu0 %v2733
    %2751 = vmatprep.subr.mxu0 0.0
    %2752 = vmatpush1.msra.mxu0 %v2734
    %2753 = vmatprep.subr.mxu0 0.0
    %2754 = vmatpush1.msra.mxu0 %v2735
    %2755 = vmatprep.subr.mxu0 0.0
    %2756 = vmatpush1.msra.mxu0 %v2736
    %2757 = vmatprep.subr.mxu0 0.0
    %2758 = vmatpush1.msra.mxu0 0.0
    %2759 = vmatprep.subr.mxu0 0.0
    %2760 = vmatpush1.msra.mxu0 0.0
    %2761 = vmatprep.subr.mxu0 0.0
    %2762 = vmatpush1.msra.mxu0 0.0
    %2763 = vmatprep.subr.mxu0 0.0
    %2764 = vmatpush1.msra.mxu0 0.0
    %2765 = vmatprep.subr.mxu0 0.0
    %2766 = vmatpush1.msra.mxu0 0.0
    %2767 = vmatprep.subr.mxu0 0.0
    %2768 = vmatpush1.msra.mxu0 0.0
    %2769 = vmatprep.subr.mxu0 0.0
    %2770 = vmatpush1.msra.mxu0 0.0
    %2771 = vmatprep.subr.mxu0 0.0
    %2772 = vmatpush1.msra.mxu0 0.0
    %2773 = vmatprep.subr.mxu0 0.0
    %2774 = vmatpush1.msra.mxu0 0.0
    %2775 = vmatprep.subr.mxu0 0.0
    %2776 = vmatpush1.msra.mxu0 0.0
    %2777 = vmatprep.subr.mxu0 0.0
    %2778 = vmatpush1.msra.mxu0 0.0
    %2779 = vmatprep.subr.mxu0 0.0
    %2780 = vmatpush1.msra.mxu0 0.0
    %2781 = vmatprep.subr.mxu0 0.0
    %2782 = vmatpush1.msra.mxu0 0.0
    %2783 = vmatprep.subr.mxu0 0.0
    %2784 = vmatpush1.msra.mxu0 0.0
    %2785 = vmatprep.subr.mxu0 0.0
    %2786 = vmatpush1.msra.mxu0 0.0
    %2787 = vmatprep.subr.mxu0 0.0
    %2788 = vmatpush1.msra.mxu0 0.0
    %2789 = vmatprep.subr.mxu0 0.0
    %2790 = vmatpush1.msra.mxu0 0.0
    %2791 = vmatprep.subr.mxu0 0.0
    %2792 = vmatpush1.msra.mxu0 0.0
    %2793 = vmatprep.subr.mxu0 0.0
    %2794 = vmatpush1.msra.mxu0 0.0
    %2795 = vmatprep.subr.mxu0 0.0
    %2796 = vmatpush1.msra.mxu0 0.0
    %2797 = vmatprep.subr.mxu0 0.0
    %2798 = vmatpush1.msra.mxu0 0.0
    %2799 = vmatprep.subr.mxu0 0.0
    %2800 = vmatpush1.msra.mxu0 0.0
    %2801 = vmatprep.subr.mxu0 0.0
    %2802 = vmatpush1.msra.mxu0 0.0
    %2803 = vmatprep.subr.mxu0 0.0
    %2804 = vmatpush1.msra.mxu0 0.0
    %2805 = vmatprep.subr.mxu0 0.0
    %2806 = vmatpush1.msra.mxu0 0.0
    %2807 = vmatprep.subr.mxu0 0.0
    %2808 = vmatpush1.msra.mxu0 0.0
    %2809 = vmatprep.subr.mxu0 0.0
    %2810 = vmatpush1.msra.mxu0 0.0
    %2811 = vmatprep.subr.mxu0 0.0
    %2812 = vmatpush1.msra.mxu0 0.0
    %2813 = vmatprep.mubr.f32.mxu0 0.0
    %2814 = vmatmul.mubr.f32.gmra.mrb[0].mxu0 %v2738
    %v2815 = vpop.f32.mrb[0].mxu0
    %v2816 = vadd.f32 0.0, %v2815
    %v2817 = vpop.f32.mrb[0].mxu0
    %2818 = vmatprep.mubr.f32.mxu0 0.0
    %2819 = vmatmul.mubr.f32.gmra.mrb[0].mxu0 %v2741
    %v2820 = vpop.f32.mrb[0].mxu0
    %v2821 = vadd.f32 0.0, %v2820
    %v2822 = vpop.f32.mrb[0].mxu0
    %2823 = vmatprep.mubr.f32.mxu0 0.0
    %2824 = vmatmul.mubr.f32.gmra.mrb[0].mxu0 %v2744
    %v2825 = vpop.f32.mrb[0].mxu0
    %v2826 = vadd.f32 0.0, %v2825
    %v2827 = vpop.f32.mrb[0].mxu0
    %2828 = vmatprep.mubr.f32.mxu0 0.0
    %2829 = vmatmul.mubr.f32.gmra.mrb[0].mxu0 %v2747
    %v2830 = vpop.f32.mrb[0].mxu0
    %v2831 = vadd.f32 0.0, %v2830
    %v2832 = vpop.f32.mrb[0].mxu0
    %2833 = vdwg.mxu0
    %v2834 = vadd.f32 %v2729, %v2816
    %v2835 = vadd.f32 %v2730, %v2821
    %v2836 = vadd.f32 %v2731, %v2826
    %v2837 = vadd.f32 %v2732, %v2831
    %v2838 = vld [vmem:[%s14] sm:$0x1]
    %v2840 = vlaneseq
    %v2841 = vshrl.u32 %v2840, 7
    %v2842 = vsub.s32 0, %v2841
    %v2843 = vrot.slane %v2838, %v2842
    %v2845 = vadd.f32 %v2834, %v2843
    %v2846 = vadd.f32 %v2835, %v2843
    %v2847 = vadd.f32 %v2836, %v2843
    %v2848 = vadd.f32 %v2837, %v2843
    %vm2849 = vcmask 15360
    %2850 = vst.msk [vmem:[%s15] sm:$0xff] %vm2849, %v2845
    %2851 = vst.msk [vmem:[%s15 + $0x8] sm:$0xff] %vm2849, %v2846
    %2854 = vrot.lane.b32.xlu0 %v2845, 126
    %v2855 = vpop.permute.xlu0 %2854
    %2856 = vrot.lane.b32.xlu0 %v2846, 126
    %v2857 = vpop.permute.xlu0 %2856
    %s2860 = scalar_lea.vmem %s15, 16
    %2861 = vst.msk [vmem:[%s2860] sm:$0xff] %vm2849, %v2855
    %2862 = vst.msk [vmem:[%s2860 + $0x8] sm:$0xff] %vm2849, %v2857
    %2863 = vrot.lane.b32.xlu0 %v2845, 124
    %v2864 = vpop.permute.xlu0 %2863
    %2865 = vrot.lane.b32.xlu0 %v2846, 124
    %v2866 = vpop.permute.xlu0 %2865
    %s2869 = scalar_lea.vmem %s15, 32
    %2870 = vst.msk [vmem:[%s2869] sm:$0xff] %vm2849, %v2864
    %2871 = vst.msk [vmem:[%s2869 + $0x8] sm:$0xff] %vm2849, %v2866
    %2872 = vrot.lane.b32.xlu0 %v2845, 122
    %v2873 = vpop.permute.xlu0 %2872
    %2874 = vrot.lane.b32.xlu0 %v2846, 122
    %v2875 = vpop.permute.xlu0 %2874
    %s2878 = scalar_lea.vmem %s15, 48
    %2879 = vst.msk [vmem:[%s2878] sm:$0xff] %vm2849, %v2873
    %2880 = vst.msk [vmem:[%s2878 + $0x8] sm:$0xff] %vm2849, %v2875
    %s2881 = scalar_lea.vmem %s15, 64
    %2882 = vst.msk [vmem:[%s2881] sm:$0xff] %vm2849, %v2847
    %2883 = vst.msk [vmem:[%s2881 + $0x8] sm:$0xff] %vm2849, %v2848
    %2886 = vrot.lane.b32.xlu0 %v2847, 126
    %v2887 = vpop.permute.xlu0 %2886
    %2888 = vrot.lane.b32.xlu0 %v2848, 126
    %v2889 = vpop.permute.xlu0 %2888
    %s2892 = scalar_lea.vmem %s15, 80
    %2893 = vst.msk [vmem:[%s2892] sm:$0xff] %vm2849, %v2887
    %2894 = vst.msk [vmem:[%s2892 + $0x8] sm:$0xff] %vm2849, %v2889
    %2895 = vrot.lane.b32.xlu0 %v2847, 124
    %v2896 = vpop.permute.xlu0 %2895
    %2897 = vrot.lane.b32.xlu0 %v2848, 124
    %v2898 = vpop.permute.xlu0 %2897
    %s2901 = scalar_lea.vmem %s15, 96
    %2902 = vst.msk [vmem:[%s2901] sm:$0xff] %vm2849, %v2896
    %2903 = vst.msk [vmem:[%s2901 + $0x8] sm:$0xff] %vm2849, %v2898
    %2904 = vrot.lane.b32.xlu0 %v2847, 122
    %v2905 = vpop.permute.xlu0 %2904
    %2906 = vrot.lane.b32.xlu0 %v2848, 122
    %v2907 = vpop.permute.xlu0 %2906
    %s2910 = scalar_lea.vmem %s15, 112
    %2911 = vst.msk [vmem:[%s2910] sm:$0xff] %vm2849, %v2905
    %2912 = vst.msk [vmem:[%s2910 + $0x8] sm:$0xff] %vm2849, %v2907
    // Predicated region
    $region86: #{output_block_forward.1} parent=1 // pred_check
      _
    $region87: #{output_block_forward.1} parent=1 // pred_check_branch
      %2914 = sbr.rel (0) target = $region89
    $region88: #{output_block_forward.1} parent=1 // pred_region
      _
    $region89: #{output_block_forward.1} parent=1 // pred_fallthru
      _
    // Predicated region
    $region90: #{output_block_forward.1} parent=1 // pred_check
      _
    $region91: #{output_block_forward.1} parent=1 // pred_check_branch
      %2916 = sbr.rel (0) target = $region93
    $region92: #{output_block_forward.1} parent=1 // pred_region
      _
    $region93: #{output_block_forward.1} parent=1 // pred_fallthru
      _
    %2917 = vsyncpa [#allocation3], 1
    %2918 = vsyncpa [#allocation5], 1
    %2919 = vsyncpa [#allocation8], 1
    %2920 = vsyncpa [#allocation11], 1

</llo_original>
